<compile_context>
chip_gen: v6e
topology: v6e:2x2x1
jax: 0.10.0
libtpu: 0.0.40
codegen_flags: <defaults>
</compile_context>

<pallas_src>
import jax
import jax.numpy as jnp
from jax import lax
from jax.experimental import pallas as pl
from jax.experimental.pallas import tpu as pltpu

BN_EPS = 1e-5
_VMEM = pltpu.MemorySpace.VMEM


# ----------------------------------------------------------------------------
# Pallas kernels
# ----------------------------------------------------------------------------
def _bn_relu(z, gamma, beta):
    """Training-mode BatchNorm (batch stats over all rows) + ReLU, on f32 z."""
    mean = jnp.mean(z, axis=0, keepdims=True)                    # (1, Cout)
    var = jnp.mean(jnp.square(z - mean), axis=0, keepdims=True)  # biased, as torch
    scale = gamma * lax.rsqrt(var + BN_EPS)
    shift = beta - mean * scale
    return jnp.maximum(z * scale + shift, 0.0)


def _conv_bn_relu_kernel(a_ref, w_ref, g_ref, b_ref, o_ref):
    # a: (M, K) bf16 im2col patches; w: (K, Cout) bf16; g/b: (1, Cout) f32.
    z = jnp.dot(a_ref[...], w_ref[...], preferred_element_type=jnp.float32)
    o_ref[...] = _bn_relu(z, g_ref[...], b_ref[...])


def _conv_bn_relu_pool_kernel(a_ref, w_ref, g_ref, b_ref, o_ref):
    # Rows of `a` are ordered (dy, dx, n, ho, wo): the four 2x2-window taps of
    # every output pixel live in four contiguous row slabs of size Mo, so the
    # maxpool is a slab-wise elementwise max on the resident ReLU output.
    z = jnp.dot(a_ref[...], w_ref[...], preferred_element_type=jnp.float32)
    r = _bn_relu(z, g_ref[...], b_ref[...])                      # (4*Mo, Cout)
    mo = o_ref.shape[0]
    o_ref[...] = jnp.maximum(
        jnp.maximum(r[0:mo], r[mo:2 * mo]),
        jnp.maximum(r[2 * mo:3 * mo], r[3 * mo:4 * mo]),
    )


def _head_kernel(x_ref, w_ref, b_ref, o_ref):
    # 1x1 conv with a single output channel on the VPU/XLU path:
    # x: (N*HW, C) rows in (n, h, w) order; w: (1, C); b: (1, 1); out: (N, 1).
    n_batch = o_ref.shape[0]
    hw = x_ref.shape[0] // n_batch
    v = jnp.sum(x_ref[...] * w_ref[...], axis=1, keepdims=True) + b_ref[...]
    # numerically-stable logsigmoid(v) = min(v, 0) - log(1 + exp(-|v|))
    ls = jnp.minimum(v, 0.0) - jnp.log(1.0 + jnp.exp(-jnp.abs(v)))
    for n in range(n_batch):  # static, tiny N: per-batch spatial mean (avgpool)
        o_ref[n:n + 1, :] = jnp.mean(ls[n * hw:(n + 1) * hw], axis=0,
                                     keepdims=True)


# ----------------------------------------------------------------------------
# JAX glue + Pallas wrappers
# ----------------------------------------------------------------------------
def _im2col_3x3(x_nhwc):
    """3x3 taps, padding=1; returns (N, H, W, 9*C) with K ordered (ky, kx, c)."""
    N, H, W, C = x_nhwc.shape
    xp = jnp.pad(x_nhwc, ((0, 0), (1, 1), (1, 1), (0, 0)))
    taps = [xp[:, dy:dy + H, dx:dx + W, :] for dy in range(3) for dx in range(3)]
    return jnp.stack(taps, axis=3).reshape(N, H, W, 9 * C)


def conv_bn_relu_stage(x_nhwc, w, gamma, beta, *, pool):
    """Conv2d(3x3, pad=1) + BatchNorm2d(train) + ReLU (+ optional 2x2 maxpool),
    fused into a single Pallas call."""
    N, H, W, Cin = x_nhwc.shape
    Cout = w.shape[0]
    K = 9 * Cin

    patches = _im2col_3x3(x_nhwc)                                # (N, H, W, K)
    if pool:
        H2, W2 = H // 2, W // 2
        patches = patches.reshape(N, H2, 2, W2, 2, K)
        patches = jnp.transpose(patches, (2, 4, 0, 1, 3, 5))     # (2,2,N,H2,W2,K)
        m_out = N * H2 * W2
        kernel = _conv_bn_relu_pool_kernel
    else:
        m_out = N * H * W
        kernel = _conv_bn_relu_kernel

    # bf16 matmul operands (halves patch HBM bytes, MXU-native); f32 accumulate.
    a = patches.reshape(N * H * W, K).astype(jnp.bfloat16)
    wmat = jnp.transpose(w, (2, 3, 1, 0)).reshape(K, Cout).astype(jnp.bfloat16)

    out = pl.pallas_call(
        kernel,
        out_shape=jax.ShapeDtypeStruct((m_out, Cout), jnp.float32),
        in_specs=[pl.BlockSpec(memory_space=_VMEM)] * 4,
        out_specs=pl.BlockSpec(memory_space=_VMEM),
    )(a, wmat, gamma.reshape(1, Cout), beta.reshape(1, Cout))

    if pool:
        return out.reshape(N, H // 2, W // 2, Cout)
    return out.reshape(N, H, W, Cout)


def head_logsig_avgpool(x_nhwc, w_last, b_last):
    """conv_last (1x1, 1 channel) + logsigmoid + AdaptiveAvgPool2d((1,1))."""
    N, H, W, C = x_nhwc.shape
    out = pl.pallas_call(
        _head_kernel,
        out_shape=jax.ShapeDtypeStruct((N, 1), jnp.float32),
        in_specs=[pl.BlockSpec(memory_space=_VMEM)] * 3,
        out_specs=pl.BlockSpec(memory_space=_VMEM),
    )(x_nhwc.reshape(N * H * W, C),
      w_last.reshape(1, C).astype(jnp.float32),
      b_last.reshape(1, 1).astype(jnp.float32))
    return out[:, 0]                                             # (N,)


def discriminator_forward(params, x_nchw, y_nchw):
    # torch.cat((x, y), dim=1), then NCHW -> NHWC
    x = jnp.concatenate([x_nchw, y_nchw], axis=1)
    x = jnp.transpose(x, (0, 2, 3, 1)).astype(jnp.float32)

    w1, _b1, g1, be1 = params["down1"]   # conv bias cancelled by train-mode BN
    w2, _b2, g2, be2 = params["down2"]
    w3, _b3, g3, be3 = params["down3"]

    x = conv_bn_relu_stage(x, w1, g1, be1, pool=True)    # (N, H/2, W/2, 64)
    x = conv_bn_relu_stage(x, w2, g2, be2, pool=True)    # (N, H/4, W/4, 128)
    x = conv_bn_relu_stage(x, w3, g3, be3, pool=False)   # (N, H/4, W/4, 64)

    w_last, b_last = params["last"]
    return head_logsig_avgpool(x, w_last, b_last)        # (N,)


# ----------------------------------------------------------------------------
# Deterministic parameter init (synthetic; mirrors the nn.Module shapes)
# ----------------------------------------------------------------------------
def init_params(key):
    def conv_block(key, cin, cout):
        k1, k2 = jax.random.split(key)
        w = 0.05 * jax.random.normal(k1, (cout, cin, 3, 3), jnp.float32)
        b = 0.01 * jax.random.normal(k2, (cout,), jnp.float32)  # unused (BN cancels)
        gamma = jnp.ones((cout,), jnp.float32)
        beta = jnp.zeros((cout,), jnp.float32)
        return (w, b, gamma, beta)

    k1, k2, k3, k4, k5 = jax.random.split(key, 5)
    return {
        "down1": conv_block(k1, 6, 64),
        "down2": conv_block(k2, 64, 128),
        "down3": conv_block(k3, 128, 64),
        "last": (
            0.05 * jax.random.normal(k4, (1, 64, 1, 1), jnp.float32),
            0.01 * jax.random.normal(k5, (1,), jnp.float32),
        ),
    }


if __name__ == "__main__":
    key = jax.random.PRNGKey(0)
    kx, ky, kp = jax.random.split(key, 3)
    x = jax.random.normal(kx, (2, 3, 16, 16), jnp.float32)
    y = jax.random.normal(ky, (2, 3, 16, 16), jnp.float32)
    params = init_params(kp)

    out = jax.jit(discriminator_forward)(params, x, y)
    out = jax.block_until_ready(out)
    assert out.shape == (2,) and out.dtype == jnp.float32
    assert bool(jnp.all(jnp.isfinite(out)))
    print("KERNEL_OK")
</pallas_src>

<mosaic_0001>
module attributes {stable_mosaic.version = 11 : i64} {
  func.func @_conv_bn_relu_pool_kernel(%arg0: memref<512x54xbf16, #tpu.memory_space<vmem>>, %arg1: memref<54x64xbf16, #tpu.memory_space<vmem>>, %arg2: memref<1x64xf32, #tpu.memory_space<vmem>>, %arg3: memref<1x64xf32, #tpu.memory_space<vmem>>, %arg4: memref<128x64xf32, #tpu.memory_space<vmem>>) attributes {dimension_semantics = [], scalar_prefetch = 0 : i64, scratch_operands = 0 : i64, tpu.core_type = #tpu.core_type<tc>} {
    %c0 = arith.constant 0 : index
    %c0_0 = arith.constant 0 : index
    %0 = vector.load %arg0[%c0, %c0_0] : memref<512x54xbf16, #tpu.memory_space<vmem>>, vector<512x54xbf16>
    %c0_1 = arith.constant 0 : index
    %c0_2 = arith.constant 0 : index
    %1 = vector.load %arg1[%c0_1, %c0_2] : memref<54x64xbf16, #tpu.memory_space<vmem>>, vector<54x64xbf16>
    %cst = arith.constant dense<0.000000e+00> : vector<512x64xf32>
    %2 = tpu.matmul %0, %1, %cst {dimension_numbers = #tpu.dot_dimension_numbers<[1], [0], [0], [1], [0, 0, 1, 1], [], []>} : vector<512x54xbf16>, vector<54x64xbf16>, vector<512x64xf32> -> vector<512x64xf32>
    %c0_3 = arith.constant 0 : index
    %c0_4 = arith.constant 0 : index
    %3 = vector.load %arg2[%c0_3, %c0_4] : memref<1x64xf32, #tpu.memory_space<vmem>>, vector<1x64xf32>
    %c0_5 = arith.constant 0 : index
    %c0_6 = arith.constant 0 : index
    %4 = vector.load %arg3[%c0_5, %c0_6] : memref<1x64xf32, #tpu.memory_space<vmem>>, vector<1x64xf32>
    %cst_7 = arith.constant dense<0.000000e+00> : vector<64xf32>
    %5 = vector.multi_reduction <add>, %2, %cst_7 [0] : vector<512x64xf32> to vector<64xf32>
    %6 = vector.shape_cast %5 : vector<64xf32> to vector<1x64xf32>
    %cst_8 = arith.constant 5.120000e+02 : f32
    %7 = vector.broadcast %cst_8 : f32 to vector<1x64xf32>
    %8 = arith.divf %6, %7 : vector<1x64xf32>
    %9 = vector.broadcast %8 : vector<1x64xf32> to vector<512x64xf32>
    %10 = arith.subf %2, %9 : vector<512x64xf32>
    %11 = arith.mulf %10, %10 : vector<512x64xf32>
    %cst_9 = arith.constant dense<0.000000e+00> : vector<64xf32>
    %12 = vector.multi_reduction <add>, %11, %cst_9 [0] : vector<512x64xf32> to vector<64xf32>
    %13 = vector.shape_cast %12 : vector<64xf32> to vector<1x64xf32>
    %cst_10 = arith.constant 5.120000e+02 : f32
    %14 = vector.broadcast %cst_10 : f32 to vector<1x64xf32>
    %15 = arith.divf %13, %14 : vector<1x64xf32>
    %cst_11 = arith.constant 9.99999974E-6 : f32
    %16 = vector.broadcast %cst_11 : f32 to vector<1x64xf32>
    %17 = arith.addf %15, %16 : vector<1x64xf32>
    %18 = math.rsqrt %17 : vector<1x64xf32>
    %19 = arith.mulf %3, %18 : vector<1x64xf32>
    %20 = arith.mulf %8, %19 : vector<1x64xf32>
    %21 = arith.subf %4, %20 : vector<1x64xf32>
    %22 = vector.broadcast %19 : vector<1x64xf32> to vector<512x64xf32>
    %23 = arith.mulf %2, %22 : vector<512x64xf32>
    %24 = vector.broadcast %21 : vector<1x64xf32> to vector<512x64xf32>
    %25 = arith.addf %23, %24 : vector<512x64xf32>
    %cst_12 = arith.constant 0.000000e+00 : f32
    %26 = vector.broadcast %cst_12 : f32 to vector<512x64xf32>
    %27 = arith.maximumf %25, %26 : vector<512x64xf32>
    %28 = vector.extract_strided_slice %27 {offsets = [0, 0], sizes = [128, 64], strides = [1, 1]} : vector<512x64xf32> to vector<128x64xf32>
    %29 = vector.extract_strided_slice %27 {offsets = [128, 0], sizes = [128, 64], strides = [1, 1]} : vector<512x64xf32> to vector<128x64xf32>
    %30 = arith.maximumf %28, %29 : vector<128x64xf32>
    %31 = vector.extract_strided_slice %27 {offsets = [256, 0], sizes = [128, 64], strides = [1, 1]} : vector<512x64xf32> to vector<128x64xf32>
    %32 = vector.extract_strided_slice %27 {offsets = [384, 0], sizes = [128, 64], strides = [1, 1]} : vector<512x64xf32> to vector<128x64xf32>
    %33 = arith.maximumf %31, %32 : vector<128x64xf32>
    %34 = arith.maximumf %30, %33 : vector<128x64xf32>
    %c0_13 = arith.constant 0 : index
    %c0_14 = arith.constant 0 : index
    %35 = vector.load %arg4[%c0_13, %c0_14] : memref<128x64xf32, #tpu.memory_space<vmem>>, vector<128x64xf32>
    tpu.vector_store %arg4[%c0_13, %c0_14], %34 {strides = array<i32>} : memref<128x64xf32, #tpu.memory_space<vmem>>, vector<128x64xf32>,
    return
  }
}

module attributes {stable_mosaic.version = 11 : i64} {
  func.func @_conv_bn_relu_pool_kernel(%arg0: memref<128x576xbf16, #tpu.memory_space<vmem>>, %arg1: memref<576x128xbf16, #tpu.memory_space<vmem>>, %arg2: memref<1x128xf32, #tpu.memory_space<vmem>>, %arg3: memref<1x128xf32, #tpu.memory_space<vmem>>, %arg4: memref<32x128xf32, #tpu.memory_space<vmem>>) attributes {dimension_semantics = [], scalar_prefetch = 0 : i64, scratch_operands = 0 : i64, tpu.core_type = #tpu.core_type<tc>} {
    %c0 = arith.constant 0 : index
    %c0_0 = arith.constant 0 : index
    %0 = vector.load %arg0[%c0, %c0_0] : memref<128x576xbf16, #tpu.memory_space<vmem>>, vector<128x576xbf16>
    %c0_1 = arith.constant 0 : index
    %c0_2 = arith.constant 0 : index
    %1 = vector.load %arg1[%c0_1, %c0_2] : memref<576x128xbf16, #tpu.memory_space<vmem>>, vector<576x128xbf16>
    %cst = arith.constant dense<0.000000e+00> : vector<128x128xf32>
    %2 = tpu.matmul %0, %1, %cst {dimension_numbers = #tpu.dot_dimension_numbers<[1], [0], [0], [1], [0, 0, 1, 1], [], []>} : vector<128x576xbf16>, vector<576x128xbf16>, vector<128x128xf32> -> vector<128x128xf32>
    %c0_3 = arith.constant 0 : index
    %c0_4 = arith.constant 0 : index
    %3 = vector.load %arg2[%c0_3, %c0_4] : memref<1x128xf32, #tpu.memory_space<vmem>>, vector<1x128xf32>
    %c0_5 = arith.constant 0 : index
    %c0_6 = arith.constant 0 : index
    %4 = vector.load %arg3[%c0_5, %c0_6] : memref<1x128xf32, #tpu.memory_space<vmem>>, vector<1x128xf32>
    %cst_7 = arith.constant dense<0.000000e+00> : vector<128xf32>
    %5 = vector.multi_reduction <add>, %2, %cst_7 [0] : vector<128x128xf32> to vector<128xf32>
    %6 = vector.shape_cast %5 : vector<128xf32> to vector<1x128xf32>
    %cst_8 = arith.constant 1.280000e+02 : f32
    %7 = vector.broadcast %cst_8 : f32 to vector<1x128xf32>
    %8 = arith.divf %6, %7 : vector<1x128xf32>
    %9 = vector.broadcast %8 : vector<1x128xf32> to vector<128x128xf32>
    %10 = arith.subf %2, %9 : vector<128x128xf32>
    %11 = arith.mulf %10, %10 : vector<128x128xf32>
    %cst_9 = arith.constant dense<0.000000e+00> : vector<128xf32>
    %12 = vector.multi_reduction <add>, %11, %cst_9 [0] : vector<128x128xf32> to vector<128xf32>
    %13 = vector.shape_cast %12 : vector<128xf32> to vector<1x128xf32>
    %cst_10 = arith.constant 1.280000e+02 : f32
    %14 = vector.broadcast %cst_10 : f32 to vector<1x128xf32>
    %15 = arith.divf %13, %14 : vector<1x128xf32>
    %cst_11 = arith.constant 9.99999974E-6 : f32
    %16 = vector.broadcast %cst_11 : f32 to vector<1x128xf32>
    %17 = arith.addf %15, %16 : vector<1x128xf32>
    %18 = math.rsqrt %17 : vector<1x128xf32>
    %19 = arith.mulf %3, %18 : vector<1x128xf32>
    %20 = arith.mulf %8, %19 : vector<1x128xf32>
    %21 = arith.subf %4, %20 : vector<1x128xf32>
    %22 = vector.broadcast %19 : vector<1x128xf32> to vector<128x128xf32>
    %23 = arith.mulf %2, %22 : vector<128x128xf32>
    %24 = vector.broadcast %21 : vector<1x128xf32> to vector<128x128xf32>
    %25 = arith.addf %23, %24 : vector<128x128xf32>
    %cst_12 = arith.constant 0.000000e+00 : f32
    %26 = vector.broadcast %cst_12 : f32 to vector<128x128xf32>
    %27 = arith.maximumf %25, %26 : vector<128x128xf32>
    %28 = vector.extract_strided_slice %27 {offsets = [0, 0], sizes = [32, 128], strides = [1, 1]} : vector<128x128xf32> to vector<32x128xf32>
    %29 = vector.extract_strided_slice %27 {offsets = [32, 0], sizes = [32, 128], strides = [1, 1]} : vector<128x128xf32> to vector<32x128xf32>
    %30 = arith.maximumf %28, %29 : vector<32x128xf32>
    %31 = vector.extract_strided_slice %27 {offsets = [64, 0], sizes = [32, 128], strides = [1, 1]} : vector<128x128xf32> to vector<32x128xf32>
    %32 = vector.extract_strided_slice %27 {offsets = [96, 0], sizes = [32, 128], strides = [1, 1]} : vector<128x128xf32> to vector<32x128xf32>
    %33 = arith.maximumf %31, %32 : vector<32x128xf32>
    %34 = arith.maximumf %30, %33 : vector<32x128xf32>
    %c0_13 = arith.constant 0 : index
    %c0_14 = arith.constant 0 : index
    %35 = vector.load %arg4[%c0_13, %c0_14] : memref<32x128xf32, #tpu.memory_space<vmem>>, vector<32x128xf32>
    tpu.vector_store %arg4[%c0_13, %c0_14], %34 {strides = array<i32>} : memref<32x128xf32, #tpu.memory_space<vmem>>, vector<32x128xf32>,
    return
  }
}

module attributes {stable_mosaic.version = 11 : i64} {
  func.func @_conv_bn_relu_kernel(%arg0: memref<32x1152xbf16, #tpu.memory_space<vmem>>, %arg1: memref<1152x64xbf16, #tpu.memory_space<vmem>>, %arg2: memref<1x64xf32, #tpu.memory_space<vmem>>, %arg3: memref<1x64xf32, #tpu.memory_space<vmem>>, %arg4: memref<32x64xf32, #tpu.memory_space<vmem>>) attributes {dimension_semantics = [], scalar_prefetch = 0 : i64, scratch_operands = 0 : i64, tpu.core_type = #tpu.core_type<tc>} {
    %c0 = arith.constant 0 : index
    %c0_0 = arith.constant 0 : index
    %0 = vector.load %arg0[%c0, %c0_0] : memref<32x1152xbf16, #tpu.memory_space<vmem>>, vector<32x1152xbf16>
    %c0_1 = arith.constant 0 : index
    %c0_2 = arith.constant 0 : index
    %1 = vector.load %arg1[%c0_1, %c0_2] : memref<1152x64xbf16, #tpu.memory_space<vmem>>, vector<1152x64xbf16>
    %cst = arith.constant dense<0.000000e+00> : vector<32x64xf32>
    %2 = tpu.matmul %0, %1, %cst {dimension_numbers = #tpu.dot_dimension_numbers<[1], [0], [0], [1], [0, 0, 1, 1], [], []>} : vector<32x1152xbf16>, vector<1152x64xbf16>, vector<32x64xf32> -> vector<32x64xf32>
    %c0_3 = arith.constant 0 : index
    %c0_4 = arith.constant 0 : index
    %3 = vector.load %arg2[%c0_3, %c0_4] : memref<1x64xf32, #tpu.memory_space<vmem>>, vector<1x64xf32>
    %c0_5 = arith.constant 0 : index
    %c0_6 = arith.constant 0 : index
    %4 = vector.load %arg3[%c0_5, %c0_6] : memref<1x64xf32, #tpu.memory_space<vmem>>, vector<1x64xf32>
    %cst_7 = arith.constant dense<0.000000e+00> : vector<64xf32>
    %5 = vector.multi_reduction <add>, %2, %cst_7 [0] : vector<32x64xf32> to vector<64xf32>
    %6 = vector.shape_cast %5 : vector<64xf32> to vector<1x64xf32>
    %cst_8 = arith.constant 3.200000e+01 : f32
    %7 = vector.broadcast %cst_8 : f32 to vector<1x64xf32>
    %8 = arith.divf %6, %7 : vector<1x64xf32>
    %9 = vector.broadcast %8 : vector<1x64xf32> to vector<32x64xf32>
    %10 = arith.subf %2, %9 : vector<32x64xf32>
    %11 = arith.mulf %10, %10 : vector<32x64xf32>
    %cst_9 = arith.constant dense<0.000000e+00> : vector<64xf32>
    %12 = vector.multi_reduction <add>, %11, %cst_9 [0] : vector<32x64xf32> to vector<64xf32>
    %13 = vector.shape_cast %12 : vector<64xf32> to vector<1x64xf32>
    %cst_10 = arith.constant 3.200000e+01 : f32
    %14 = vector.broadcast %cst_10 : f32 to vector<1x64xf32>
    %15 = arith.divf %13, %14 : vector<1x64xf32>
    %cst_11 = arith.constant 9.99999974E-6 : f32
    %16 = vector.broadcast %cst_11 : f32 to vector<1x64xf32>
    %17 = arith.addf %15, %16 : vector<1x64xf32>
    %18 = math.rsqrt %17 : vector<1x64xf32>
    %19 = arith.mulf %3, %18 : vector<1x64xf32>
    %20 = arith.mulf %8, %19 : vector<1x64xf32>
    %21 = arith.subf %4, %20 : vector<1x64xf32>
    %22 = vector.broadcast %19 : vector<1x64xf32> to vector<32x64xf32>
    %23 = arith.mulf %2, %22 : vector<32x64xf32>
    %24 = vector.broadcast %21 : vector<1x64xf32> to vector<32x64xf32>
    %25 = arith.addf %23, %24 : vector<32x64xf32>
    %cst_12 = arith.constant 0.000000e+00 : f32
    %26 = vector.broadcast %cst_12 : f32 to vector<32x64xf32>
    %27 = arith.maximumf %25, %26 : vector<32x64xf32>
    %c0_13 = arith.constant 0 : index
    %c0_14 = arith.constant 0 : index
    %28 = vector.load %arg4[%c0_13, %c0_14] : memref<32x64xf32, #tpu.memory_space<vmem>>, vector<32x64xf32>
    tpu.vector_store %arg4[%c0_13, %c0_14], %27 {strides = array<i32>} : memref<32x64xf32, #tpu.memory_space<vmem>>, vector<32x64xf32>,
    return
  }
}

module attributes {stable_mosaic.version = 11 : i64} {
  func.func @_head_kernel(%arg0: memref<32x64xf32, #tpu.memory_space<vmem>>, %arg1: memref<1x64xf32, #tpu.memory_space<vmem>>, %arg2: memref<1x1xf32, #tpu.memory_space<vmem>>, %arg3: memref<2x1xf32, #tpu.memory_space<vmem>>) attributes {dimension_semantics = [], scalar_prefetch = 0 : i64, scratch_operands = 0 : i64, tpu.core_type = #tpu.core_type<tc>} {
    %c0 = arith.constant 0 : index
    %c0_0 = arith.constant 0 : index
    %0 = vector.load %arg0[%c0, %c0_0] : memref<32x64xf32, #tpu.memory_space<vmem>>, vector<32x64xf32>
    %c0_1 = arith.constant 0 : index
    %c0_2 = arith.constant 0 : index
    %1 = vector.load %arg1[%c0_1, %c0_2] : memref<1x64xf32, #tpu.memory_space<vmem>>, vector<1x64xf32>
    %2 = vector.broadcast %1 : vector<1x64xf32> to vector<32x64xf32>
    %3 = arith.mulf %0, %2 : vector<32x64xf32>
    %cst = arith.constant dense<0.000000e+00> : vector<32xf32>
    %4 = vector.multi_reduction <add>, %3, %cst [1] : vector<32x64xf32> to vector<32xf32>
    %5 = vector.shape_cast %4 : vector<32xf32> to vector<32x1xf32>
    %c0_3 = arith.constant 0 : index
    %c0_4 = arith.constant 0 : index
    %6 = vector.load %arg2[%c0_3, %c0_4] : memref<1x1xf32, #tpu.memory_space<vmem>>, vector<1x1xf32>
    %7 = vector.broadcast %6 : vector<1x1xf32> to vector<32x1xf32>
    %8 = arith.addf %5, %7 : vector<32x1xf32>
    %cst_5 = arith.constant 0.000000e+00 : f32
    %9 = vector.broadcast %cst_5 : f32 to vector<32x1xf32>
    %10 = arith.minimumf %8, %9 : vector<32x1xf32>
    %11 = math.absf %8 : vector<32x1xf32>
    %cst_6 = arith.constant 0.000000e+00 : f32
    %12 = vector.broadcast %cst_6 : f32 to vector<32x1xf32>
    %13 = arith.subf %12, %11 : vector<32x1xf32>
    %14 = math.exp %13 : vector<32x1xf32>
    %cst_7 = arith.constant 1.000000e+00 : f32
    %15 = vector.broadcast %cst_7 : f32 to vector<32x1xf32>
    %16 = arith.addf %15, %14 : vector<32x1xf32>
    %17 = math.log %16 : vector<32x1xf32>
    %18 = arith.subf %10, %17 : vector<32x1xf32>
    %19 = vector.extract_strided_slice %18 {offsets = [0, 0], sizes = [16, 1], strides = [1, 1]} : vector<32x1xf32> to vector<16x1xf32>
    %cst_8 = arith.constant dense<0.000000e+00> : vector<1xf32>
    %20 = vector.multi_reduction <add>, %19, %cst_8 [0] : vector<16x1xf32> to vector<1xf32>
    %21 = vector.shape_cast %20 : vector<1xf32> to vector<1x1xf32>
    %cst_9 = arith.constant 1.600000e+01 : f32
    %22 = vector.broadcast %cst_9 : f32 to vector<1x1xf32>
    %23 = arith.divf %21, %22 : vector<1x1xf32>
    %c0_10 = arith.constant 0 : index
    %c0_11 = arith.constant 0 : index
    %24 = vector.load %arg3[%c0_10, %c0_11] : memref<2x1xf32, #tpu.memory_space<vmem>>, vector<1x1xf32>
    tpu.vector_store %arg3[%c0_10, %c0_11], %23 {strides = array<i32>} : memref<2x1xf32, #tpu.memory_space<vmem>>, vector<1x1xf32>,
    %25 = vector.extract_strided_slice %18 {offsets = [16, 0], sizes = [16, 1], strides = [1, 1]} : vector<32x1xf32> to vector<16x1xf32>
    %cst_12 = arith.constant dense<0.000000e+00> : vector<1xf32>
    %26 = vector.multi_reduction <add>, %25, %cst_12 [0] : vector<16x1xf32> to vector<1xf32>
    %27 = vector.shape_cast %26 : vector<1xf32> to vector<1x1xf32>
    %cst_13 = arith.constant 1.600000e+01 : f32
    %28 = vector.broadcast %cst_13 : f32 to vector<1x1xf32>
    %29 = arith.divf %27, %28 : vector<1x1xf32>
    %c1 = arith.constant 1 : index
    %c0_14 = arith.constant 0 : index
    %30 = vector.load %arg3[%c1, %c0_14] : memref<2x1xf32, #tpu.memory_space<vmem>>, vector<1x1xf32>
    tpu.vector_store %arg3[%c1, %c0_14], %29 {strides = array<i32>} : memref<2x1xf32, #tpu.memory_space<vmem>>, vector<1x1xf32>,
    return
  }
}

</mosaic_0001>

<llo_original>
// kernel: discriminator_forward.4
$region0: #{discriminator_forward.4}
  #allocation0 [shape = 'u32[]', space=smem, size = 0x4, offset = 0x4, fixed_abs, tag = 'smem constant byte address 0x4 - core index']
  #allocation1 [shape = 'u32[144,128]{1,0:T(1,128)}', space=vmem, size = 0x12000, scoped, tag = 'internal scratch']
  %s0 = inlined_call_operand.vmem [shape: bf16[512,54], index: 0, kind: input, shape index: {}]
  %s1 = inlined_call_operand.vmem [shape: bf16[54,64], index: 1, kind: input, shape index: {}]
  %s2 = inlined_call_operand.vmem [shape: f32[1,64], index: 2, kind: input, shape index: {}]
  %s3 = inlined_call_operand.vmem [shape: f32[1,64], index: 3, kind: input, shape index: {}]
  %s4 = inlined_call_operand.vmem [shape: f32[128,64], index: 4, kind: output, shape index: {}]
  %s5 = sld [smem:[#allocation0]]
  $region26: #{discriminator_forward.4} parent=0
    _
  %s7 = ssub.s32 1, %s5
  %s8 = scalar_select 0, %s7, %s5
  // Predicated region
  $region2: #{discriminator_forward.4} parent=0 // pred_check
    _
  $region3: #{discriminator_forward.4} parent=0 // pred_check_branch
    %10 = sbr.rel (0) target = $region5
  $region4: #{discriminator_forward.4} parent=0 // pred_region
    _
  $region5: #{discriminator_forward.4} parent=0 // pred_fallthru
    _
  // Predicated region
  $region6: #{discriminator_forward.4} parent=0 // pred_check
    _
  $region7: #{discriminator_forward.4} parent=0 // pred_check_branch
    %12 = sbr.rel (0) target = $region9
  $region8: #{discriminator_forward.4} parent=0 // pred_region
    _
  $region9: #{discriminator_forward.4} parent=0 // pred_fallthru
    _
  // Predicated region
  $region10: #{discriminator_forward.4} parent=0 // pred_check
    _
  $region11: #{discriminator_forward.4} parent=0 // pred_check_branch
    %14 = sbr.rel (0) target = $region13
  $region12: #{discriminator_forward.4} parent=0 // pred_region
    _
  $region13: #{discriminator_forward.4} parent=0 // pred_fallthru
    _
  // Predicated region
  $region14: #{discriminator_forward.4} parent=0 // pred_check
    _
  $region15: #{discriminator_forward.4} parent=0 // pred_check_branch
    %16 = sbr.rel (0) target = $region17
  $region16: #{discriminator_forward.4} parent=0 // pred_region
    _
  $region17: #{discriminator_forward.4} parent=0 // pred_fallthru
    _
  %v18 = vld [vmem:[%s0] sm:$0xf]
  %v19 = vld [vmem:[%s0 + $0x4] sm:$0xf]
  %v20 = vld [vmem:[%s0 + $0x8] sm:$0xf]
  %v21 = vld [vmem:[%s0 + $0xc] sm:$0xf]
  %v22 = vld [vmem:[%s0 + $0x10] sm:$0xf]
  %v23 = vld [vmem:[%s0 + $0x14] sm:$0xf]
  %v24 = vld [vmem:[%s0 + $0x18] sm:$0xf]
  %v25 = vld [vmem:[%s0 + $0x1c] sm:$0xf]
  %v26 = vld [vmem:[%s0 + $0x20] sm:$0xf]
  %v27 = vld [vmem:[%s0 + $0x24] sm:$0xf]
  %v28 = vld [vmem:[%s0 + $0x28] sm:$0xf]
  %v29 = vld [vmem:[%s0 + $0x2c] sm:$0xf]
  %v30 = vld [vmem:[%s0 + $0x30] sm:$0xf]
  %v31 = vld [vmem:[%s0 + $0x34] sm:$0xf]
  %v32 = vld [vmem:[%s0 + $0x38] sm:$0xf]
  %v33 = vld [vmem:[%s0 + $0x3c] sm:$0xf]
  %v34 = vld [vmem:[%s0 + $0x40] sm:$0xf]
  %v35 = vld [vmem:[%s0 + $0x44] sm:$0xf]
  %v36 = vld [vmem:[%s0 + $0x48] sm:$0xf]
  %v37 = vld [vmem:[%s0 + $0x4c] sm:$0xf]
  %v38 = vld [vmem:[%s0 + $0x50] sm:$0xf]
  %v39 = vld [vmem:[%s0 + $0x54] sm:$0xf]
  %v40 = vld [vmem:[%s0 + $0x58] sm:$0xf]
  %v41 = vld [vmem:[%s0 + $0x5c] sm:$0xf]
  %v42 = vld [vmem:[%s0 + $0x60] sm:$0xf]
  %v43 = vld [vmem:[%s0 + $0x64] sm:$0xf]
  %v44 = vld [vmem:[%s0 + $0x68] sm:$0xf]
  %v45 = vld [vmem:[%s0 + $0x6c] sm:$0xf]
  %v46 = vld [vmem:[%s0 + $0x70] sm:$0xf]
  %v47 = vld [vmem:[%s0 + $0x74] sm:$0xf]
  %v48 = vld [vmem:[%s0 + $0x78] sm:$0xf]
  %v49 = vld [vmem:[%s0 + $0x7c] sm:$0xf]
  %v50 = vld [vmem:[%s0 + $0x80] sm:$0xf]
  %v51 = vld [vmem:[%s0 + $0x84] sm:$0xf]
  %v52 = vld [vmem:[%s0 + $0x88] sm:$0xf]
  %v53 = vld [vmem:[%s0 + $0x8c] sm:$0xf]
  %v54 = vld [vmem:[%s0 + $0x90] sm:$0xf]
  %v55 = vld [vmem:[%s0 + $0x94] sm:$0xf]
  %v56 = vld [vmem:[%s0 + $0x98] sm:$0xf]
  %v57 = vld [vmem:[%s0 + $0x9c] sm:$0xf]
  %v58 = vld [vmem:[%s0 + $0xa0] sm:$0xf]
  %v59 = vld [vmem:[%s0 + $0xa4] sm:$0xf]
  %v60 = vld [vmem:[%s0 + $0xa8] sm:$0xf]
  %v61 = vld [vmem:[%s0 + $0xac] sm:$0xf]
  %v62 = vld [vmem:[%s0 + $0xb0] sm:$0xf]
  %v63 = vld [vmem:[%s0 + $0xb4] sm:$0xf]
  %v64 = vld [vmem:[%s0 + $0xb8] sm:$0xf]
  %v65 = vld [vmem:[%s0 + $0xbc] sm:$0xf]
  %v66 = vld [vmem:[%s0 + $0xc0] sm:$0xf]
  %v67 = vld [vmem:[%s0 + $0xc4] sm:$0xf]
  %v68 = vld [vmem:[%s0 + $0xc8] sm:$0xf]
  %v69 = vld [vmem:[%s0 + $0xcc] sm:$0xf]
  %v70 = vld [vmem:[%s0 + $0xd0] sm:$0xf]
  %v71 = vld [vmem:[%s0 + $0xd4] sm:$0xf]
  %v72 = vld [vmem:[%s0 + $0xd8] sm:$0xf]
  %v73 = vld [vmem:[%s0 + $0xdc] sm:$0xf]
  %v74 = vld [vmem:[%s0 + $0xe0] sm:$0xf]
  %v75 = vld [vmem:[%s0 + $0xe4] sm:$0xf]
  %v76 = vld [vmem:[%s0 + $0xe8] sm:$0xf]
  %v77 = vld [vmem:[%s0 + $0xec] sm:$0xf]
  %v78 = vld [vmem:[%s0 + $0xf0] sm:$0xf]
  %v79 = vld [vmem:[%s0 + $0xf4] sm:$0xf]
  %v80 = vld [vmem:[%s0 + $0xf8] sm:$0xf]
  %v81 = vld [vmem:[%s0 + $0xfc] sm:$0xf]
  %v82 = vld [vmem:[%s1] sm:$0xf]
  %v83 = vld [vmem:[%s1 + $0x4] sm:$0xf]
  %v84 = vld [vmem:[%s1 + $0x8] sm:$0xf]
  %v85 = vld [vmem:[%s1 + $0xc] sm:$0xf]
  %v86 = vld [vmem:[%s1 + $0x10] sm:$0xf]
  %v87 = vld [vmem:[%s1 + $0x14] sm:$0xf]
  %v88 = vld [vmem:[%s1 + $0x18] sm:$0x7]
  %v153 = vunpack.c.l.b16 %v18
  %v154 = vunpack.c.l.b16 %v19
  %v155 = vunpack.c.l.b16 %v20
  %v156 = vunpack.c.l.b16 %v21
  %v157 = vunpack.c.l.b16 %v22
  %v158 = vunpack.c.l.b16 %v23
  %v159 = vunpack.c.l.b16 %v24
  %v160 = vunpack.c.l.b16 %v25
  %v161 = vunpack.c.l.b16 %v26
  %v162 = vunpack.c.l.b16 %v27
  %v163 = vunpack.c.l.b16 %v28
  %v164 = vunpack.c.l.b16 %v29
  %v165 = vunpack.c.l.b16 %v30
  %v166 = vunpack.c.l.b16 %v31
  %v167 = vunpack.c.l.b16 %v32
  %v168 = vunpack.c.l.b16 %v33
  %v169 = vunpack.c.l.b16 %v34
  %v170 = vunpack.c.l.b16 %v35
  %v171 = vunpack.c.l.b16 %v36
  %v172 = vunpack.c.l.b16 %v37
  %v173 = vunpack.c.l.b16 %v38
  %v174 = vunpack.c.l.b16 %v39
  %v175 = vunpack.c.l.b16 %v40
  %v176 = vunpack.c.l.b16 %v41
  %v177 = vunpack.c.l.b16 %v42
  %v178 = vunpack.c.l.b16 %v43
  %v179 = vunpack.c.l.b16 %v44
  %v180 = vunpack.c.l.b16 %v45
  %v181 = vunpack.c.l.b16 %v46
  %v182 = vunpack.c.l.b16 %v47
  %v183 = vunpack.c.l.b16 %v48
  %v184 = vunpack.c.l.b16 %v49
  %v185 = vunpack.c.l.b16 %v50
  %v186 = vunpack.c.l.b16 %v51
  %v187 = vunpack.c.l.b16 %v52
  %v188 = vunpack.c.l.b16 %v53
  %v189 = vunpack.c.l.b16 %v54
  %v190 = vunpack.c.l.b16 %v55
  %v191 = vunpack.c.l.b16 %v56
  %v192 = vunpack.c.l.b16 %v57
  %v193 = vunpack.c.l.b16 %v58
  %v194 = vunpack.c.l.b16 %v59
  %v195 = vunpack.c.l.b16 %v60
  %v196 = vunpack.c.l.b16 %v61
  %v197 = vunpack.c.l.b16 %v62
  %v198 = vunpack.c.l.b16 %v63
  %v199 = vunpack.c.l.b16 %v64
  %v200 = vunpack.c.l.b16 %v65
  %v201 = vunpack.c.l.b16 %v66
  %v202 = vunpack.c.l.b16 %v67
  %v203 = vunpack.c.l.b16 %v68
  %v204 = vunpack.c.l.b16 %v69
  %v205 = vunpack.c.l.b16 %v70
  %v206 = vunpack.c.l.b16 %v71
  %v207 = vunpack.c.l.b16 %v72
  %v208 = vunpack.c.l.b16 %v73
  %v209 = vunpack.c.l.b16 %v74
  %v210 = vunpack.c.l.b16 %v75
  %v211 = vunpack.c.l.b16 %v76
  %v212 = vunpack.c.l.b16 %v77
  %v213 = vunpack.c.l.b16 %v78
  %v214 = vunpack.c.l.b16 %v79
  %v215 = vunpack.c.l.b16 %v80
  %v216 = vunpack.c.l.b16 %v81
  %v217 = vpack.c.b16 %v154, %v153
  %v218 = vpack.c.b16 %v156, %v155
  %v219 = vpack.c.b16 %v158, %v157
  %v220 = vpack.c.b16 %v160, %v159
  %v221 = vpack.c.b16 %v162, %v161
  %v222 = vpack.c.b16 %v164, %v163
  %v223 = vpack.c.b16 %v166, %v165
  %v224 = vpack.c.b16 %v168, %v167
  %v225 = vpack.c.b16 %v170, %v169
  %v226 = vpack.c.b16 %v172, %v171
  %v227 = vpack.c.b16 %v174, %v173
  %v228 = vpack.c.b16 %v176, %v175
  %v229 = vpack.c.b16 %v178, %v177
  %v230 = vpack.c.b16 %v180, %v179
  %v231 = vpack.c.b16 %v182, %v181
  %v232 = vpack.c.b16 %v184, %v183
  %v233 = vpack.c.b16 %v186, %v185
  %v234 = vpack.c.b16 %v188, %v187
  %v235 = vpack.c.b16 %v190, %v189
  %v236 = vpack.c.b16 %v192, %v191
  %v237 = vpack.c.b16 %v194, %v193
  %v238 = vpack.c.b16 %v196, %v195
  %v239 = vpack.c.b16 %v198, %v197
  %v240 = vpack.c.b16 %v200, %v199
  %v241 = vpack.c.b16 %v202, %v201
  %v242 = vpack.c.b16 %v204, %v203
  %v243 = vpack.c.b16 %v206, %v205
  %v244 = vpack.c.b16 %v208, %v207
  %v245 = vpack.c.b16 %v210, %v209
  %v246 = vpack.c.b16 %v212, %v211
  %v247 = vpack.c.b16 %v214, %v213
  %v248 = vpack.c.b16 %v216, %v215
  %v256 = vunpack.c.l.b16 %v82
  %v257 = vunpack.c.l.b16 %v83
  %v258 = vunpack.c.l.b16 %v84
  %v259 = vunpack.c.l.b16 %v85
  %v260 = vunpack.c.l.b16 %v86
  %v261 = vunpack.c.l.b16 %v87
  %v262 = vunpack.c.l.b16 %v88
  %v263 = vpack.c.b16 %v257, %v256
  %v264 = vpack.c.b16 %v259, %v258
  %v265 = vpack.c.b16 %v261, %v260
  %v266 = vpack.c.b16 %v262, %v262
  %vm270 = vcmask 441344
  %v272 = vsel %vm270, %v217, 0
  %v275 = vsel %vm270, %v218, 0
  %v278 = vsel %vm270, %v219, 0
  %v281 = vsel %vm270, %v220, 0
  %v284 = vsel %vm270, %v221, 0
  %v287 = vsel %vm270, %v222, 0
  %v290 = vsel %vm270, %v223, 0
  %v293 = vsel %vm270, %v224, 0
  %v296 = vsel %vm270, %v225, 0
  %v299 = vsel %vm270, %v226, 0
  %v302 = vsel %vm270, %v227, 0
  %v305 = vsel %vm270, %v228, 0
  %v308 = vsel %vm270, %v229, 0
  %v311 = vsel %vm270, %v230, 0
  %v314 = vsel %vm270, %v231, 0
  %v317 = vsel %vm270, %v232, 0
  %v320 = vsel %vm270, %v233, 0
  %v323 = vsel %vm270, %v234, 0
  %v326 = vsel %vm270, %v235, 0
  %v329 = vsel %vm270, %v236, 0
  %v332 = vsel %vm270, %v237, 0
  %v335 = vsel %vm270, %v238, 0
  %v338 = vsel %vm270, %v239, 0
  %v341 = vsel %vm270, %v240, 0
  %v344 = vsel %vm270, %v241, 0
  %v347 = vsel %vm270, %v242, 0
  %v350 = vsel %vm270, %v243, 0
  %v353 = vsel %vm270, %v244, 0
  %v356 = vsel %vm270, %v245, 0
  %v359 = vsel %vm270, %v246, 0
  %v362 = vsel %vm270, %v247, 0
  %v365 = vsel %vm270, %v248, 0
  %vm367 = vcmask 1042432
  %v369 = vsel %vm367, %v266, 0
  %371 = vmatprep.subr.bf16.mxu0 0
  %372 = vmatpush1.bf16.msra.mxu0 0
  %373 = vmatprep.subr.bf16.mxu0 0
  %374 = vmatpush1.bf16.msra.mxu0 0
  %375 = vmatprep.subr.bf16.mxu0 0
  %376 = vmatpush1.bf16.msra.mxu0 0
  %377 = vmatprep.subr.bf16.mxu0 0
  %378 = vmatpush1.bf16.msra.mxu0 0
  %379 = vmatprep.subr.bf16.mxu0 0
  %380 = vmatpush1.bf16.msra.mxu0 %v369
  %381 = vmatprep.subr.bf16.mxu0 0
  %382 = vmatpush1.bf16.msra.mxu0 %v265
  %383 = vmatprep.subr.bf16.mxu0 0
  %384 = vmatpush1.bf16.msra.mxu0 %v264
  %385 = vmatprep.subr.bf16.mxu0 0
  %386 = vmatpush1.bf16.msra.mxu0 %v263
  %387 = vmatprep.subr.bf16.mxu0 0
  %388 = vmatpush2.bf16.msra.mxu0 0
  %389 = vmatprep.subr.bf16.mxu0 0
  %390 = vmatpush2.bf16.msra.mxu0 0
  %391 = vmatprep.subr.bf16.mxu0 0
  %392 = vmatpush2.bf16.msra.mxu0 0
  %393 = vmatprep.subr.bf16.mxu0 0
  %394 = vmatpush2.bf16.msra.mxu0 0
  %395 = vmatprep.subr.bf16.mxu0 0
  %396 = vmatpush2.bf16.msra.mxu0 0
  %397 = vmatprep.subr.bf16.mxu0 0
  %398 = vmatpush2.bf16.msra.mxu0 0
  %399 = vmatprep.subr.bf16.mxu0 0
  %400 = vmatpush2.bf16.msra.mxu0 0
  %401 = vmatprep.subr.bf16.mxu0 0
  %402 = vmatpush2.bf16.msra.mxu0 0
  %403 = vmatprep.mubr.bf16.mxu0 0
  %404 = vmatmul.mubr.bf16.gmra.mxu0 %v272
  %v405 = vpop.f32.mrf.mxu0
  %v406 = vadd.f32 0.0, %v405
  %v407 = vpop.f32.mrf.mxu0
  %v408 = vpop.f32.mrf.mxu0
  %v409 = vadd.f32 0.0, %v408
  %v410 = vpop.f32.mrf.mxu0
  %411 = vmatprep.mubr.bf16.mxu0 0
  %412 = vmatmul.mubr.bf16.gmra.mxu0 %v275
  %v413 = vpop.f32.mrf.mxu0
  %v414 = vadd.f32 0.0, %v413
  %v415 = vpop.f32.mrf.mxu0
  %v416 = vpop.f32.mrf.mxu0
  %v417 = vadd.f32 0.0, %v416
  %v418 = vpop.f32.mrf.mxu0
  %419 = vmatprep.mubr.bf16.mxu0 0
  %420 = vmatmul.mubr.bf16.gmra.mxu0 %v278
  %v421 = vpop.f32.mrf.mxu0
  %v422 = vadd.f32 0.0, %v421
  %v423 = vpop.f32.mrf.mxu0
  %v424 = vpop.f32.mrf.mxu0
  %v425 = vadd.f32 0.0, %v424
  %v426 = vpop.f32.mrf.mxu0
  %427 = vmatprep.mubr.bf16.mxu0 0
  %428 = vmatmul.mubr.bf16.gmra.mxu0 %v281
  %v429 = vpop.f32.mrf.mxu0
  %v430 = vadd.f32 0.0, %v429
  %v431 = vpop.f32.mrf.mxu0
  %v432 = vpop.f32.mrf.mxu0
  %v433 = vadd.f32 0.0, %v432
  %v434 = vpop.f32.mrf.mxu0
  %435 = vmatprep.mubr.bf16.mxu0 0
  %436 = vmatmul.mubr.bf16.gmra.mxu0 %v284
  %v437 = vpop.f32.mrf.mxu0
  %v438 = vadd.f32 0.0, %v437
  %v439 = vpop.f32.mrf.mxu0
  %v440 = vpop.f32.mrf.mxu0
  %v441 = vadd.f32 0.0, %v440
  %v442 = vpop.f32.mrf.mxu0
  %443 = vmatprep.mubr.bf16.mxu0 0
  %444 = vmatmul.mubr.bf16.gmra.mxu0 %v287
  %v445 = vpop.f32.mrf.mxu0
  %v446 = vadd.f32 0.0, %v445
  %v447 = vpop.f32.mrf.mxu0
  %v448 = vpop.f32.mrf.mxu0
  %v449 = vadd.f32 0.0, %v448
  %v450 = vpop.f32.mrf.mxu0
  %451 = vmatprep.mubr.bf16.mxu0 0
  %452 = vmatmul.mubr.bf16.gmra.mxu0 %v290
  %v453 = vpop.f32.mrf.mxu0
  %v454 = vadd.f32 0.0, %v453
  %v455 = vpop.f32.mrf.mxu0
  %v456 = vpop.f32.mrf.mxu0
  %v457 = vadd.f32 0.0, %v456
  %v458 = vpop.f32.mrf.mxu0
  %459 = vmatprep.mubr.bf16.mxu0 0
  %460 = vmatmul.mubr.bf16.gmra.mxu0 %v293
  %v461 = vpop.f32.mrf.mxu0
  %v462 = vadd.f32 0.0, %v461
  %v463 = vpop.f32.mrf.mxu0
  %v464 = vpop.f32.mrf.mxu0
  %v465 = vadd.f32 0.0, %v464
  %v466 = vpop.f32.mrf.mxu0
  %467 = vmatprep.mubr.bf16.mxu0 0
  %468 = vmatmul.mubr.bf16.gmra.mxu0 %v296
  %v469 = vpop.f32.mrf.mxu0
  %v470 = vadd.f32 0.0, %v469
  %v471 = vpop.f32.mrf.mxu0
  %v472 = vpop.f32.mrf.mxu0
  %v473 = vadd.f32 0.0, %v472
  %v474 = vpop.f32.mrf.mxu0
  %475 = vmatprep.mubr.bf16.mxu0 0
  %476 = vmatmul.mubr.bf16.gmra.mxu0 %v299
  %v477 = vpop.f32.mrf.mxu0
  %v478 = vadd.f32 0.0, %v477
  %v479 = vpop.f32.mrf.mxu0
  %v480 = vpop.f32.mrf.mxu0
  %v481 = vadd.f32 0.0, %v480
  %v482 = vpop.f32.mrf.mxu0
  %483 = vmatprep.mubr.bf16.mxu0 0
  %484 = vmatmul.mubr.bf16.gmra.mxu0 %v302
  %v485 = vpop.f32.mrf.mxu0
  %v486 = vadd.f32 0.0, %v485
  %v487 = vpop.f32.mrf.mxu0
  %v488 = vpop.f32.mrf.mxu0
  %v489 = vadd.f32 0.0, %v488
  %v490 = vpop.f32.mrf.mxu0
  %491 = vmatprep.mubr.bf16.mxu0 0
  %492 = vmatmul.mubr.bf16.gmra.mxu0 %v305
  %v493 = vpop.f32.mrf.mxu0
  %v494 = vadd.f32 0.0, %v493
  %v495 = vpop.f32.mrf.mxu0
  %v496 = vpop.f32.mrf.mxu0
  %v497 = vadd.f32 0.0, %v496
  %v498 = vpop.f32.mrf.mxu0
  %499 = vmatprep.mubr.bf16.mxu0 0
  %500 = vmatmul.mubr.bf16.gmra.mxu0 %v308
  %v501 = vpop.f32.mrf.mxu0
  %v502 = vadd.f32 0.0, %v501
  %v503 = vpop.f32.mrf.mxu0
  %v504 = vpop.f32.mrf.mxu0
  %v505 = vadd.f32 0.0, %v504
  %v506 = vpop.f32.mrf.mxu0
  %507 = vmatprep.mubr.bf16.mxu0 0
  %508 = vmatmul.mubr.bf16.gmra.mxu0 %v311
  %v509 = vpop.f32.mrf.mxu0
  %v510 = vadd.f32 0.0, %v509
  %v511 = vpop.f32.mrf.mxu0
  %v512 = vpop.f32.mrf.mxu0
  %v513 = vadd.f32 0.0, %v512
  %v514 = vpop.f32.mrf.mxu0
  %515 = vmatprep.mubr.bf16.mxu0 0
  %516 = vmatmul.mubr.bf16.gmra.mxu0 %v314
  %v517 = vpop.f32.mrf.mxu0
  %v518 = vadd.f32 0.0, %v517
  %v519 = vpop.f32.mrf.mxu0
  %v520 = vpop.f32.mrf.mxu0
  %v521 = vadd.f32 0.0, %v520
  %v522 = vpop.f32.mrf.mxu0
  %523 = vmatprep.mubr.bf16.mxu0 0
  %524 = vmatmul.mubr.bf16.gmra.mxu0 %v317
  %v525 = vpop.f32.mrf.mxu0
  %v526 = vadd.f32 0.0, %v525
  %v527 = vpop.f32.mrf.mxu0
  %v528 = vpop.f32.mrf.mxu0
  %v529 = vadd.f32 0.0, %v528
  %v530 = vpop.f32.mrf.mxu0
  %531 = vmatprep.mubr.bf16.mxu0 0
  %532 = vmatmul.mubr.bf16.gmra.mxu0 %v320
  %v533 = vpop.f32.mrf.mxu0
  %v534 = vadd.f32 0.0, %v533
  %v535 = vpop.f32.mrf.mxu0
  %v536 = vpop.f32.mrf.mxu0
  %v537 = vadd.f32 0.0, %v536
  %v538 = vpop.f32.mrf.mxu0
  %539 = vmatprep.mubr.bf16.mxu0 0
  %540 = vmatmul.mubr.bf16.gmra.mxu0 %v323
  %v541 = vpop.f32.mrf.mxu0
  %v542 = vadd.f32 0.0, %v541
  %v543 = vpop.f32.mrf.mxu0
  %v544 = vpop.f32.mrf.mxu0
  %v545 = vadd.f32 0.0, %v544
  %v546 = vpop.f32.mrf.mxu0
  %547 = vmatprep.mubr.bf16.mxu0 0
  %548 = vmatmul.mubr.bf16.gmra.mxu0 %v326
  %v549 = vpop.f32.mrf.mxu0
  %v550 = vadd.f32 0.0, %v549
  %v551 = vpop.f32.mrf.mxu0
  %v552 = vpop.f32.mrf.mxu0
  %v553 = vadd.f32 0.0, %v552
  %v554 = vpop.f32.mrf.mxu0
  %555 = vmatprep.mubr.bf16.mxu0 0
  %556 = vmatmul.mubr.bf16.gmra.mxu0 %v329
  %v557 = vpop.f32.mrf.mxu0
  %v558 = vadd.f32 0.0, %v557
  %v559 = vpop.f32.mrf.mxu0
  %v560 = vpop.f32.mrf.mxu0
  %v561 = vadd.f32 0.0, %v560
  %v562 = vpop.f32.mrf.mxu0
  %563 = vmatprep.mubr.bf16.mxu0 0
  %564 = vmatmul.mubr.bf16.gmra.mxu0 %v332
  %v565 = vpop.f32.mrf.mxu0
  %v566 = vadd.f32 0.0, %v565
  %v567 = vpop.f32.mrf.mxu0
  %v568 = vpop.f32.mrf.mxu0
  %v569 = vadd.f32 0.0, %v568
  %v570 = vpop.f32.mrf.mxu0
  %571 = vmatprep.mubr.bf16.mxu0 0
  %572 = vmatmul.mubr.bf16.gmra.mxu0 %v335
  %v573 = vpop.f32.mrf.mxu0
  %v574 = vadd.f32 0.0, %v573
  %v575 = vpop.f32.mrf.mxu0
  %v576 = vpop.f32.mrf.mxu0
  %v577 = vadd.f32 0.0, %v576
  %v578 = vpop.f32.mrf.mxu0
  %579 = vmatprep.mubr.bf16.mxu0 0
  %580 = vmatmul.mubr.bf16.gmra.mxu0 %v338
  %v581 = vpop.f32.mrf.mxu0
  %v582 = vadd.f32 0.0, %v581
  %v583 = vpop.f32.mrf.mxu0
  %v584 = vpop.f32.mrf.mxu0
  %v585 = vadd.f32 0.0, %v584
  %v586 = vpop.f32.mrf.mxu0
  %587 = vmatprep.mubr.bf16.mxu0 0
  %588 = vmatmul.mubr.bf16.gmra.mxu0 %v341
  %v589 = vpop.f32.mrf.mxu0
  %v590 = vadd.f32 0.0, %v589
  %v591 = vpop.f32.mrf.mxu0
  %v592 = vpop.f32.mrf.mxu0
  %v593 = vadd.f32 0.0, %v592
  %v594 = vpop.f32.mrf.mxu0
  %595 = vmatprep.mubr.bf16.mxu0 0
  %596 = vmatmul.mubr.bf16.gmra.mxu0 %v344
  %v597 = vpop.f32.mrf.mxu0
  %v598 = vadd.f32 0.0, %v597
  %v599 = vpop.f32.mrf.mxu0
  %v600 = vpop.f32.mrf.mxu0
  %v601 = vadd.f32 0.0, %v600
  %v602 = vpop.f32.mrf.mxu0
  %603 = vmatprep.mubr.bf16.mxu0 0
  %604 = vmatmul.mubr.bf16.gmra.mxu0 %v347
  %v605 = vpop.f32.mrf.mxu0
  %v606 = vadd.f32 0.0, %v605
  %v607 = vpop.f32.mrf.mxu0
  %v608 = vpop.f32.mrf.mxu0
  %v609 = vadd.f32 0.0, %v608
  %v610 = vpop.f32.mrf.mxu0
  %611 = vmatprep.mubr.bf16.mxu0 0
  %612 = vmatmul.mubr.bf16.gmra.mxu0 %v350
  %v613 = vpop.f32.mrf.mxu0
  %v614 = vadd.f32 0.0, %v613
  %v615 = vpop.f32.mrf.mxu0
  %v616 = vpop.f32.mrf.mxu0
  %v617 = vadd.f32 0.0, %v616
  %v618 = vpop.f32.mrf.mxu0
  %619 = vmatprep.mubr.bf16.mxu0 0
  %620 = vmatmul.mubr.bf16.gmra.mxu0 %v353
  %v621 = vpop.f32.mrf.mxu0
  %v622 = vadd.f32 0.0, %v621
  %v623 = vpop.f32.mrf.mxu0
  %v624 = vpop.f32.mrf.mxu0
  %v625 = vadd.f32 0.0, %v624
  %v626 = vpop.f32.mrf.mxu0
  %627 = vmatprep.mubr.bf16.mxu0 0
  %628 = vmatmul.mubr.bf16.gmra.mxu0 %v356
  %v629 = vpop.f32.mrf.mxu0
  %v630 = vadd.f32 0.0, %v629
  %v631 = vpop.f32.mrf.mxu0
  %v632 = vpop.f32.mrf.mxu0
  %v633 = vadd.f32 0.0, %v632
  %v634 = vpop.f32.mrf.mxu0
  %635 = vmatprep.mubr.bf16.mxu0 0
  %636 = vmatmul.mubr.bf16.gmra.mxu0 %v359
  %v637 = vpop.f32.mrf.mxu0
  %v638 = vadd.f32 0.0, %v637
  %v639 = vpop.f32.mrf.mxu0
  %v640 = vpop.f32.mrf.mxu0
  %v641 = vadd.f32 0.0, %v640
  %v642 = vpop.f32.mrf.mxu0
  %643 = vmatprep.mubr.bf16.mxu0 0
  %644 = vmatmul.mubr.bf16.gmra.mxu0 %v362
  %v645 = vpop.f32.mrf.mxu0
  %v646 = vadd.f32 0.0, %v645
  %v647 = vpop.f32.mrf.mxu0
  %v648 = vpop.f32.mrf.mxu0
  %v649 = vadd.f32 0.0, %v648
  %v650 = vpop.f32.mrf.mxu0
  %651 = vmatprep.mubr.bf16.mxu0 0
  %652 = vmatmul.mubr.bf16.gmra.mxu0 %v365
  %v653 = vpop.f32.mrf.mxu0
  %v654 = vadd.f32 0.0, %v653
  %v655 = vpop.f32.mrf.mxu0
  %v656 = vpop.f32.mrf.mxu0
  %v657 = vadd.f32 0.0, %v656
  %v658 = vpop.f32.mrf.mxu0
  %659 = vdwg.mxu0
  %v660 = vld [vmem:[%s2] sm:$0x1]
  %v661 = vld [vmem:[%s3] sm:$0x1]
  %vm662 = vcmask 523264
  %v663 = vsel %vm662, %v406, 0.0
  %v664 = vsel %vm662, %v409, 0.0
  %v665 = vadd.f32 %v663, %v664
  %v666 = vsel %vm662, %v414, 0.0
  %v667 = vadd.f32 %v665, %v666
  %v668 = vsel %vm662, %v417, 0.0
  %v669 = vadd.f32 %v667, %v668
  %v670 = vsel %vm662, %v422, 0.0
  %v671 = vadd.f32 %v669, %v670
  %v672 = vsel %vm662, %v425, 0.0
  %v673 = vadd.f32 %v671, %v672
  %v674 = vsel %vm662, %v430, 0.0
  %v675 = vadd.f32 %v673, %v674
  %v676 = vsel %vm662, %v433, 0.0
  %v677 = vadd.f32 %v675, %v676
  %v678 = vsel %vm662, %v438, 0.0
  %v679 = vadd.f32 %v677, %v678
  %v680 = vsel %vm662, %v441, 0.0
  %v681 = vadd.f32 %v679, %v680
  %v682 = vsel %vm662, %v446, 0.0
  %v683 = vadd.f32 %v681, %v682
  %v684 = vsel %vm662, %v449, 0.0
  %v685 = vadd.f32 %v683, %v684
  %v686 = vsel %vm662, %v454, 0.0
  %v687 = vadd.f32 %v685, %v686
  %v688 = vsel %vm662, %v457, 0.0
  %v689 = vadd.f32 %v687, %v688
  %v690 = vsel %vm662, %v462, 0.0
  %v691 = vadd.f32 %v689, %v690
  %v692 = vsel %vm662, %v465, 0.0
  %v693 = vadd.f32 %v691, %v692
  %v694 = vsel %vm662, %v470, 0.0
  %v695 = vadd.f32 %v693, %v694
  %v696 = vsel %vm662, %v473, 0.0
  %v697 = vadd.f32 %v695, %v696
  %v698 = vsel %vm662, %v478, 0.0
  %v699 = vadd.f32 %v697, %v698
  %v700 = vsel %vm662, %v481, 0.0
  %v701 = vadd.f32 %v699, %v700
  %v702 = vsel %vm662, %v486, 0.0
  %v703 = vadd.f32 %v701, %v702
  %v704 = vsel %vm662, %v489, 0.0
  %v705 = vadd.f32 %v703, %v704
  %v706 = vsel %vm662, %v494, 0.0
  %v707 = vadd.f32 %v705, %v706
  %v708 = vsel %vm662, %v497, 0.0
  %v709 = vadd.f32 %v707, %v708
  %v710 = vsel %vm662, %v502, 0.0
  %v711 = vadd.f32 %v709, %v710
  %v712 = vsel %vm662, %v505, 0.0
  %v713 = vadd.f32 %v711, %v712
  %v714 = vsel %vm662, %v510, 0.0
  %v715 = vadd.f32 %v713, %v714
  %v716 = vsel %vm662, %v513, 0.0
  %v717 = vadd.f32 %v715, %v716
  %v718 = vsel %vm662, %v518, 0.0
  %v719 = vadd.f32 %v717, %v718
  %v720 = vsel %vm662, %v521, 0.0
  %v721 = vadd.f32 %v719, %v720
  %v722 = vsel %vm662, %v526, 0.0
  %v723 = vadd.f32 %v721, %v722
  %v724 = vsel %vm662, %v529, 0.0
  %v725 = vadd.f32 %v723, %v724
  %v726 = vsel %vm662, %v534, 0.0
  %v727 = vadd.f32 %v725, %v726
  %v728 = vsel %vm662, %v537, 0.0
  %v729 = vadd.f32 %v727, %v728
  %v730 = vsel %vm662, %v542, 0.0
  %v731 = vadd.f32 %v729, %v730
  %v732 = vsel %vm662, %v545, 0.0
  %v733 = vadd.f32 %v731, %v732
  %v734 = vsel %vm662, %v550, 0.0
  %v735 = vadd.f32 %v733, %v734
  %v736 = vsel %vm662, %v553, 0.0
  %v737 = vadd.f32 %v735, %v736
  %v738 = vsel %vm662, %v558, 0.0
  %v739 = vadd.f32 %v737, %v738
  %v740 = vsel %vm662, %v561, 0.0
  %v741 = vadd.f32 %v739, %v740
  %v742 = vsel %vm662, %v566, 0.0
  %v743 = vadd.f32 %v741, %v742
  %v744 = vsel %vm662, %v569, 0.0
  %v745 = vadd.f32 %v743, %v744
  %v746 = vsel %vm662, %v574, 0.0
  %v747 = vadd.f32 %v745, %v746
  %v748 = vsel %vm662, %v577, 0.0
  %v749 = vadd.f32 %v747, %v748
  %v750 = vsel %vm662, %v582, 0.0
  %v751 = vadd.f32 %v749, %v750
  %v752 = vsel %vm662, %v585, 0.0
  %v753 = vadd.f32 %v751, %v752
  %v754 = vsel %vm662, %v590, 0.0
  %v755 = vadd.f32 %v753, %v754
  %v756 = vsel %vm662, %v593, 0.0
  %v757 = vadd.f32 %v755, %v756
  %v758 = vsel %vm662, %v598, 0.0
  %v759 = vadd.f32 %v757, %v758
  %v760 = vsel %vm662, %v601, 0.0
  %v761 = vadd.f32 %v759, %v760
  %v762 = vsel %vm662, %v606, 0.0
  %v763 = vadd.f32 %v761, %v762
  %v764 = vsel %vm662, %v609, 0.0
  %v765 = vadd.f32 %v763, %v764
  %v766 = vsel %vm662, %v614, 0.0
  %v767 = vadd.f32 %v765, %v766
  %v768 = vsel %vm662, %v617, 0.0
  %v769 = vadd.f32 %v767, %v768
  %v770 = vsel %vm662, %v622, 0.0
  %v771 = vadd.f32 %v769, %v770
  %v772 = vsel %vm662, %v625, 0.0
  %v773 = vadd.f32 %v771, %v772
  %v774 = vsel %vm662, %v630, 0.0
  %v775 = vadd.f32 %v773, %v774
  %v776 = vsel %vm662, %v633, 0.0
  %v777 = vadd.f32 %v775, %v776
  %v778 = vsel %vm662, %v638, 0.0
  %v779 = vadd.f32 %v777, %v778
  %v780 = vsel %vm662, %v641, 0.0
  %v781 = vadd.f32 %v779, %v780
  %v782 = vsel %vm662, %v646, 0.0
  %v783 = vadd.f32 %v781, %v782
  %v784 = vsel %vm662, %v649, 0.0
  %v785 = vadd.f32 %v783, %v784
  %v786 = vsel %vm662, %v654, 0.0
  %v787 = vadd.f32 %v785, %v786
  %v788 = vsel %vm662, %v657, 0.0
  %v789 = vadd.f32 %v787, %v788
  %v790 = vrot.slane %v789, 4
  %v791 = vadd.f32 %v789, %v790
  %v792 = vrot.slane %v791, 2
  %v793 = vadd.f32 %v791, %v792
  %v794 = vrot.slane %v793, 1
  %v795 = vadd.f32 %v793, %v794
  %v796 = vrcp.pop 512.0
  %v797 = vmul.f32 %v795, %v796
  %v798 = vsub.f32 %v406, %v797
  %v799 = vsub.f32 %v409, %v797
  %v800 = vsub.f32 %v414, %v797
  %v801 = vsub.f32 %v417, %v797
  %v802 = vsub.f32 %v422, %v797
  %v803 = vsub.f32 %v425, %v797
  %v804 = vsub.f32 %v430, %v797
  %v805 = vsub.f32 %v433, %v797
  %v806 = vsub.f32 %v438, %v797
  %v807 = vsub.f32 %v441, %v797
  %v808 = vsub.f32 %v446, %v797
  %v809 = vsub.f32 %v449, %v797
  %v810 = vsub.f32 %v454, %v797
  %v811 = vsub.f32 %v457, %v797
  %v812 = vsub.f32 %v462, %v797
  %v813 = vsub.f32 %v465, %v797
  %v814 = vsub.f32 %v470, %v797
  %v815 = vsub.f32 %v473, %v797
  %v816 = vsub.f32 %v478, %v797
  %v817 = vsub.f32 %v481, %v797
  %v818 = vsub.f32 %v486, %v797
  %v819 = vsub.f32 %v489, %v797
  %v820 = vsub.f32 %v494, %v797
  %v821 = vsub.f32 %v497, %v797
  %v822 = vsub.f32 %v502, %v797
  %v823 = vsub.f32 %v505, %v797
  %v824 = vsub.f32 %v510, %v797
  %v825 = vsub.f32 %v513, %v797
  %v826 = vsub.f32 %v518, %v797
  %v827 = vsub.f32 %v521, %v797
  %v828 = vsub.f32 %v526, %v797
  %v829 = vsub.f32 %v529, %v797
  %v830 = vsub.f32 %v534, %v797
  %v831 = vsub.f32 %v537, %v797
  %v832 = vsub.f32 %v542, %v797
  %v833 = vsub.f32 %v545, %v797
  %v834 = vsub.f32 %v550, %v797
  %v835 = vsub.f32 %v553, %v797
  %v836 = vsub.f32 %v558, %v797
  %v837 = vsub.f32 %v561, %v797
  %v838 = vsub.f32 %v566, %v797
  %v839 = vsub.f32 %v569, %v797
  %v840 = vsub.f32 %v574, %v797
  %v841 = vsub.f32 %v577, %v797
  %v842 = vsub.f32 %v582, %v797
  %v843 = vsub.f32 %v585, %v797
  %v844 = vsub.f32 %v590, %v797
  %v845 = vsub.f32 %v593, %v797
  %v846 = vsub.f32 %v598, %v797
  %v847 = vsub.f32 %v601, %v797
  %v848 = vsub.f32 %v606, %v797
  %v849 = vsub.f32 %v609, %v797
  %v850 = vsub.f32 %v614, %v797
  %v851 = vsub.f32 %v617, %v797
  %v852 = vsub.f32 %v622, %v797
  %v853 = vsub.f32 %v625, %v797
  %v854 = vsub.f32 %v630, %v797
  %v855 = vsub.f32 %v633, %v797
  %v856 = vsub.f32 %v638, %v797
  %v857 = vsub.f32 %v641, %v797
  %v858 = vsub.f32 %v646, %v797
  %v859 = vsub.f32 %v649, %v797
  %v860 = vsub.f32 %v654, %v797
  %v861 = vsub.f32 %v657, %v797
  %v862 = vmul.f32 %v798, %v798
  %v863 = vmul.f32 %v799, %v799
  %v864 = vmul.f32 %v800, %v800
  %v865 = vmul.f32 %v801, %v801
  %v866 = vmul.f32 %v802, %v802
  %v867 = vmul.f32 %v803, %v803
  %v868 = vmul.f32 %v804, %v804
  %v869 = vmul.f32 %v805, %v805
  %v870 = vmul.f32 %v806, %v806
  %v871 = vmul.f32 %v807, %v807
  %v872 = vmul.f32 %v808, %v808
  %v873 = vmul.f32 %v809, %v809
  %v874 = vmul.f32 %v810, %v810
  %v875 = vmul.f32 %v811, %v811
  %v876 = vmul.f32 %v812, %v812
  %v877 = vmul.f32 %v813, %v813
  %v878 = vmul.f32 %v814, %v814
  %v879 = vmul.f32 %v815, %v815
  %v880 = vmul.f32 %v816, %v816
  %v881 = vmul.f32 %v817, %v817
  %v882 = vmul.f32 %v818, %v818
  %v883 = vmul.f32 %v819, %v819
  %v884 = vmul.f32 %v820, %v820
  %v885 = vmul.f32 %v821, %v821
  %v886 = vmul.f32 %v822, %v822
  %v887 = vmul.f32 %v823, %v823
  %v888 = vmul.f32 %v824, %v824
  %v889 = vmul.f32 %v825, %v825
  %v890 = vmul.f32 %v826, %v826
  %v891 = vmul.f32 %v827, %v827
  %v892 = vmul.f32 %v828, %v828
  %v893 = vmul.f32 %v829, %v829
  %v894 = vmul.f32 %v830, %v830
  %v895 = vmul.f32 %v831, %v831
  %v896 = vmul.f32 %v832, %v832
  %v897 = vmul.f32 %v833, %v833
  %v898 = vmul.f32 %v834, %v834
  %v899 = vmul.f32 %v835, %v835
  %v900 = vmul.f32 %v836, %v836
  %v901 = vmul.f32 %v837, %v837
  %v902 = vmul.f32 %v838, %v838
  %v903 = vmul.f32 %v839, %v839
  %v904 = vmul.f32 %v840, %v840
  %v905 = vmul.f32 %v841, %v841
  %v906 = vmul.f32 %v842, %v842
  %v907 = vmul.f32 %v843, %v843
  %v908 = vmul.f32 %v844, %v844
  %v909 = vmul.f32 %v845, %v845
  %v910 = vmul.f32 %v846, %v846
  %v911 = vmul.f32 %v847, %v847
  %v912 = vmul.f32 %v848, %v848
  %v913 = vmul.f32 %v849, %v849
  %v914 = vmul.f32 %v850, %v850
  %v915 = vmul.f32 %v851, %v851
  %v916 = vmul.f32 %v852, %v852
  %v917 = vmul.f32 %v853, %v853
  %v918 = vmul.f32 %v854, %v854
  %v919 = vmul.f32 %v855, %v855
  %v920 = vmul.f32 %v856, %v856
  %v921 = vmul.f32 %v857, %v857
  %v922 = vmul.f32 %v858, %v858
  %v923 = vmul.f32 %v859, %v859
  %v924 = vmul.f32 %v860, %v860
  %v925 = vmul.f32 %v861, %v861
  %v926 = vsel %vm662, %v862, 0.0
  %v927 = vsel %vm662, %v863, 0.0
  %v928 = vadd.f32 %v926, %v927
  %v929 = vsel %vm662, %v864, 0.0
  %v930 = vadd.f32 %v928, %v929
  %v931 = vsel %vm662, %v865, 0.0
  %v932 = vadd.f32 %v930, %v931
  %v933 = vsel %vm662, %v866, 0.0
  %v934 = vadd.f32 %v932, %v933
  %v935 = vsel %vm662, %v867, 0.0
  %v936 = vadd.f32 %v934, %v935
  %v937 = vsel %vm662, %v868, 0.0
  %v938 = vadd.f32 %v936, %v937
  %v939 = vsel %vm662, %v869, 0.0
  %v940 = vadd.f32 %v938, %v939
  %v941 = vsel %vm662, %v870, 0.0
  %v942 = vadd.f32 %v940, %v941
  %v943 = vsel %vm662, %v871, 0.0
  %v944 = vadd.f32 %v942, %v943
  %v945 = vsel %vm662, %v872, 0.0
  %v946 = vadd.f32 %v944, %v945
  %v947 = vsel %vm662, %v873, 0.0
  %v948 = vadd.f32 %v946, %v947
  %v949 = vsel %vm662, %v874, 0.0
  %v950 = vadd.f32 %v948, %v949
  %v951 = vsel %vm662, %v875, 0.0
  %v952 = vadd.f32 %v950, %v951
  %v953 = vsel %vm662, %v876, 0.0
  %v954 = vadd.f32 %v952, %v953
  %v955 = vsel %vm662, %v877, 0.0
  %v956 = vadd.f32 %v954, %v955
  %v957 = vsel %vm662, %v878, 0.0
  %v958 = vadd.f32 %v956, %v957
  %v959 = vsel %vm662, %v879, 0.0
  %v960 = vadd.f32 %v958, %v959
  %v961 = vsel %vm662, %v880, 0.0
  %v962 = vadd.f32 %v960, %v961
  %v963 = vsel %vm662, %v881, 0.0
  %v964 = vadd.f32 %v962, %v963
  %v965 = vsel %vm662, %v882, 0.0
  %v966 = vadd.f32 %v964, %v965
  %v967 = vsel %vm662, %v883, 0.0
  %v968 = vadd.f32 %v966, %v967
  %v969 = vsel %vm662, %v884, 0.0
  %v970 = vadd.f32 %v968, %v969
  %v971 = vsel %vm662, %v885, 0.0
  %v972 = vadd.f32 %v970, %v971
  %v973 = vsel %vm662, %v886, 0.0
  %v974 = vadd.f32 %v972, %v973
  %v975 = vsel %vm662, %v887, 0.0
  %v976 = vadd.f32 %v974, %v975
  %v977 = vsel %vm662, %v888, 0.0
  %v978 = vadd.f32 %v976, %v977
  %v979 = vsel %vm662, %v889, 0.0
  %v980 = vadd.f32 %v978, %v979
  %v981 = vsel %vm662, %v890, 0.0
  %v982 = vadd.f32 %v980, %v981
  %v983 = vsel %vm662, %v891, 0.0
  %v984 = vadd.f32 %v982, %v983
  %v985 = vsel %vm662, %v892, 0.0
  %v986 = vadd.f32 %v984, %v985
  %v987 = vsel %vm662, %v893, 0.0
  %v988 = vadd.f32 %v986, %v987
  %v989 = vsel %vm662, %v894, 0.0
  %v990 = vadd.f32 %v988, %v989
  %v991 = vsel %vm662, %v895, 0.0
  %v992 = vadd.f32 %v990, %v991
  %v993 = vsel %vm662, %v896, 0.0
  %v994 = vadd.f32 %v992, %v993
  %v995 = vsel %vm662, %v897, 0.0
  %v996 = vadd.f32 %v994, %v995
  %v997 = vsel %vm662, %v898, 0.0
  %v998 = vadd.f32 %v996, %v997
  %v999 = vsel %vm662, %v899, 0.0
  %v1000 = vadd.f32 %v998, %v999
  %v1001 = vsel %vm662, %v900, 0.0
  %v1002 = vadd.f32 %v1000, %v1001
  %v1003 = vsel %vm662, %v901, 0.0
  %v1004 = vadd.f32 %v1002, %v1003
  %v1005 = vsel %vm662, %v902, 0.0
  %v1006 = vadd.f32 %v1004, %v1005
  %v1007 = vsel %vm662, %v903, 0.0
  %v1008 = vadd.f32 %v1006, %v1007
  %v1009 = vsel %vm662, %v904, 0.0
  %v1010 = vadd.f32 %v1008, %v1009
  %v1011 = vsel %vm662, %v905, 0.0
  %v1012 = vadd.f32 %v1010, %v1011
  %v1013 = vsel %vm662, %v906, 0.0
  %v1014 = vadd.f32 %v1012, %v1013
  %v1015 = vsel %vm662, %v907, 0.0
  %v1016 = vadd.f32 %v1014, %v1015
  %v1017 = vsel %vm662, %v908, 0.0
  %v1018 = vadd.f32 %v1016, %v1017
  %v1019 = vsel %vm662, %v909, 0.0
  %v1020 = vadd.f32 %v1018, %v1019
  %v1021 = vsel %vm662, %v910, 0.0
  %v1022 = vadd.f32 %v1020, %v1021
  %v1023 = vsel %vm662, %v911, 0.0
  %v1024 = vadd.f32 %v1022, %v1023
  %v1025 = vsel %vm662, %v912, 0.0
  %v1026 = vadd.f32 %v1024, %v1025
  %v1027 = vsel %vm662, %v913, 0.0
  %v1028 = vadd.f32 %v1026, %v1027
  %v1029 = vsel %vm662, %v914, 0.0
  %v1030 = vadd.f32 %v1028, %v1029
  %v1031 = vsel %vm662, %v915, 0.0
  %v1032 = vadd.f32 %v1030, %v1031
  %v1033 = vsel %vm662, %v916, 0.0
  %v1034 = vadd.f32 %v1032, %v1033
  %v1035 = vsel %vm662, %v917, 0.0
  %v1036 = vadd.f32 %v1034, %v1035
  %v1037 = vsel %vm662, %v918, 0.0
  %v1038 = vadd.f32 %v1036, %v1037
  %v1039 = vsel %vm662, %v919, 0.0
  %v1040 = vadd.f32 %v1038, %v1039
  %v1041 = vsel %vm662, %v920, 0.0
  %v1042 = vadd.f32 %v1040, %v1041
  %v1043 = vsel %vm662, %v921, 0.0
  %v1044 = vadd.f32 %v1042, %v1043
  %v1045 = vsel %vm662, %v922, 0.0
  %v1046 = vadd.f32 %v1044, %v1045
  %v1047 = vsel %vm662, %v923, 0.0
  %v1048 = vadd.f32 %v1046, %v1047
  %v1049 = vsel %vm662, %v924, 0.0
  %v1050 = vadd.f32 %v1048, %v1049
  %v1051 = vsel %vm662, %v925, 0.0
  %v1052 = vadd.f32 %v1050, %v1051
  %v1053 = vrot.slane %v1052, 4
  %v1054 = vadd.f32 %v1052, %v1053
  %v1055 = vrot.slane %v1054, 2
  %v1056 = vadd.f32 %v1054, %v1055
  %v1057 = vrot.slane %v1056, 1
  %v1058 = vadd.f32 %v1056, %v1057
  %v1059 = vmul.f32 %v1058, %v796
  %v1060 = vadd.f32 %v1059, 1e-05
  %v1061 = vrsqrt.pop %v1060
  %v1062 = vmul.f32 %v660, %v1061
  %v1063 = vmul.f32 %v797, %v1062
  %v1064 = vsub.f32 %v661, %v1063
  %v1066 = vlaneseq
  %v1067 = vshrl.u32 %v1066, 7
  %v1068 = vsub.s32 0, %v1067
  %v1069 = vrot.slane %v1062, %v1068
  %v1071 = vmul.f32 %v406, %v1069
  %v1072 = vmul.f32 %v409, %v1069
  %v1073 = vmul.f32 %v414, %v1069
  %v1074 = vmul.f32 %v417, %v1069
  %v1075 = vmul.f32 %v422, %v1069
  %v1076 = vmul.f32 %v425, %v1069
  %v1077 = vmul.f32 %v430, %v1069
  %v1078 = vmul.f32 %v433, %v1069
  %v1079 = vmul.f32 %v438, %v1069
  %v1080 = vmul.f32 %v441, %v1069
  %v1081 = vmul.f32 %v446, %v1069
  %v1082 = vmul.f32 %v449, %v1069
  %v1083 = vmul.f32 %v454, %v1069
  %v1084 = vmul.f32 %v457, %v1069
  %v1085 = vmul.f32 %v462, %v1069
  %v1086 = vmul.f32 %v465, %v1069
  %v1087 = vmul.f32 %v470, %v1069
  %v1088 = vmul.f32 %v473, %v1069
  %v1089 = vmul.f32 %v478, %v1069
  %v1090 = vmul.f32 %v481, %v1069
  %v1091 = vmul.f32 %v486, %v1069
  %v1092 = vmul.f32 %v489, %v1069
  %v1093 = vmul.f32 %v494, %v1069
  %v1094 = vmul.f32 %v497, %v1069
  %v1095 = vmul.f32 %v502, %v1069
  %v1096 = vmul.f32 %v505, %v1069
  %v1097 = vmul.f32 %v510, %v1069
  %v1098 = vmul.f32 %v513, %v1069
  %v1099 = vmul.f32 %v518, %v1069
  %v1100 = vmul.f32 %v521, %v1069
  %v1101 = vmul.f32 %v526, %v1069
  %v1102 = vmul.f32 %v529, %v1069
  %v1103 = vmul.f32 %v534, %v1069
  %v1104 = vmul.f32 %v537, %v1069
  %v1105 = vmul.f32 %v542, %v1069
  %v1106 = vmul.f32 %v545, %v1069
  %v1107 = vmul.f32 %v550, %v1069
  %v1108 = vmul.f32 %v553, %v1069
  %v1109 = vmul.f32 %v558, %v1069
  %v1110 = vmul.f32 %v561, %v1069
  %v1111 = vmul.f32 %v566, %v1069
  %v1112 = vmul.f32 %v569, %v1069
  %v1113 = vmul.f32 %v574, %v1069
  %v1114 = vmul.f32 %v577, %v1069
  %v1115 = vmul.f32 %v582, %v1069
  %v1116 = vmul.f32 %v585, %v1069
  %v1117 = vmul.f32 %v590, %v1069
  %v1118 = vmul.f32 %v593, %v1069
  %v1119 = vmul.f32 %v598, %v1069
  %v1120 = vmul.f32 %v601, %v1069
  %v1121 = vmul.f32 %v606, %v1069
  %v1122 = vmul.f32 %v609, %v1069
  %v1123 = vmul.f32 %v614, %v1069
  %v1124 = vmul.f32 %v617, %v1069
  %v1125 = vmul.f32 %v622, %v1069
  %v1126 = vmul.f32 %v625, %v1069
  %v1127 = vmul.f32 %v630, %v1069
  %v1128 = vmul.f32 %v633, %v1069
  %v1129 = vmul.f32 %v638, %v1069
  %v1130 = vmul.f32 %v641, %v1069
  %v1131 = vmul.f32 %v646, %v1069
  %v1132 = vmul.f32 %v649, %v1069
  %v1133 = vmul.f32 %v654, %v1069
  %v1134 = vmul.f32 %v657, %v1069
  %v1136 = vlaneseq
  %v1137 = vshrl.u32 %v1136, 7
  %v1138 = vsub.s32 0, %v1137
  %v1139 = vrot.slane %v1064, %v1138
  %v1141 = vadd.f32 %v1071, %v1139
  %v1142 = vadd.f32 %v1072, %v1139
  %v1143 = vadd.f32 %v1073, %v1139
  %v1144 = vadd.f32 %v1074, %v1139
  %v1145 = vadd.f32 %v1075, %v1139
  %v1146 = vadd.f32 %v1076, %v1139
  %v1147 = vadd.f32 %v1077, %v1139
  %v1148 = vadd.f32 %v1078, %v1139
  %v1149 = vadd.f32 %v1079, %v1139
  %v1150 = vadd.f32 %v1080, %v1139
  %v1151 = vadd.f32 %v1081, %v1139
  %v1152 = vadd.f32 %v1082, %v1139
  %v1153 = vadd.f32 %v1083, %v1139
  %v1154 = vadd.f32 %v1084, %v1139
  %v1155 = vadd.f32 %v1085, %v1139
  %v1156 = vadd.f32 %v1086, %v1139
  %v1157 = vadd.f32 %v1087, %v1139
  %v1158 = vadd.f32 %v1088, %v1139
  %v1159 = vadd.f32 %v1089, %v1139
  %v1160 = vadd.f32 %v1090, %v1139
  %v1161 = vadd.f32 %v1091, %v1139
  %v1162 = vadd.f32 %v1092, %v1139
  %v1163 = vadd.f32 %v1093, %v1139
  %v1164 = vadd.f32 %v1094, %v1139
  %v1165 = vadd.f32 %v1095, %v1139
  %v1166 = vadd.f32 %v1096, %v1139
  %v1167 = vadd.f32 %v1097, %v1139
  %v1168 = vadd.f32 %v1098, %v1139
  %v1169 = vadd.f32 %v1099, %v1139
  %v1170 = vadd.f32 %v1100, %v1139
  %v1171 = vadd.f32 %v1101, %v1139
  %v1172 = vadd.f32 %v1102, %v1139
  %v1173 = vadd.f32 %v1103, %v1139
  %v1174 = vadd.f32 %v1104, %v1139
  %v1175 = vadd.f32 %v1105, %v1139
  %v1176 = vadd.f32 %v1106, %v1139
  %v1177 = vadd.f32 %v1107, %v1139
  %v1178 = vadd.f32 %v1108, %v1139
  %v1179 = vadd.f32 %v1109, %v1139
  %v1180 = vadd.f32 %v1110, %v1139
  %v1181 = vadd.f32 %v1111, %v1139
  %v1182 = vadd.f32 %v1112, %v1139
  %v1183 = vadd.f32 %v1113, %v1139
  %v1184 = vadd.f32 %v1114, %v1139
  %v1185 = vadd.f32 %v1115, %v1139
  %v1186 = vadd.f32 %v1116, %v1139
  %v1187 = vadd.f32 %v1117, %v1139
  %v1188 = vadd.f32 %v1118, %v1139
  %v1189 = vadd.f32 %v1119, %v1139
  %v1190 = vadd.f32 %v1120, %v1139
  %v1191 = vadd.f32 %v1121, %v1139
  %v1192 = vadd.f32 %v1122, %v1139
  %v1193 = vadd.f32 %v1123, %v1139
  %v1194 = vadd.f32 %v1124, %v1139
  %v1195 = vadd.f32 %v1125, %v1139
  %v1196 = vadd.f32 %v1126, %v1139
  %v1197 = vadd.f32 %v1127, %v1139
  %v1198 = vadd.f32 %v1128, %v1139
  %v1199 = vadd.f32 %v1129, %v1139
  %v1200 = vadd.f32 %v1130, %v1139
  %v1201 = vadd.f32 %v1131, %v1139
  %v1202 = vadd.f32 %v1132, %v1139
  %v1203 = vadd.f32 %v1133, %v1139
  %v1204 = vadd.f32 %v1134, %v1139
  %v1205 = vmax.f32 %v1141, 0.0
  %v1206 = vmax.f32 %v1142, 0.0
  %v1207 = vmax.f32 %v1143, 0.0
  %v1208 = vmax.f32 %v1144, 0.0
  %v1209 = vmax.f32 %v1145, 0.0
  %v1210 = vmax.f32 %v1146, 0.0
  %v1211 = vmax.f32 %v1147, 0.0
  %v1212 = vmax.f32 %v1148, 0.0
  %v1213 = vmax.f32 %v1149, 0.0
  %v1214 = vmax.f32 %v1150, 0.0
  %v1215 = vmax.f32 %v1151, 0.0
  %v1216 = vmax.f32 %v1152, 0.0
  %v1217 = vmax.f32 %v1153, 0.0
  %v1218 = vmax.f32 %v1154, 0.0
  %v1219 = vmax.f32 %v1155, 0.0
  %v1220 = vmax.f32 %v1156, 0.0
  %v1221 = vmax.f32 %v1157, 0.0
  %v1222 = vmax.f32 %v1158, 0.0
  %v1223 = vmax.f32 %v1159, 0.0
  %v1224 = vmax.f32 %v1160, 0.0
  %v1225 = vmax.f32 %v1161, 0.0
  %v1226 = vmax.f32 %v1162, 0.0
  %v1227 = vmax.f32 %v1163, 0.0
  %v1228 = vmax.f32 %v1164, 0.0
  %v1229 = vmax.f32 %v1165, 0.0
  %v1230 = vmax.f32 %v1166, 0.0
  %v1231 = vmax.f32 %v1167, 0.0
  %v1232 = vmax.f32 %v1168, 0.0
  %v1233 = vmax.f32 %v1169, 0.0
  %v1234 = vmax.f32 %v1170, 0.0
  %v1235 = vmax.f32 %v1171, 0.0
  %v1236 = vmax.f32 %v1172, 0.0
  %v1237 = vmax.f32 %v1173, 0.0
  %v1238 = vmax.f32 %v1174, 0.0
  %v1239 = vmax.f32 %v1175, 0.0
  %v1240 = vmax.f32 %v1176, 0.0
  %v1241 = vmax.f32 %v1177, 0.0
  %v1242 = vmax.f32 %v1178, 0.0
  %v1243 = vmax.f32 %v1179, 0.0
  %v1244 = vmax.f32 %v1180, 0.0
  %v1245 = vmax.f32 %v1181, 0.0
  %v1246 = vmax.f32 %v1182, 0.0
  %v1247 = vmax.f32 %v1183, 0.0
  %v1248 = vmax.f32 %v1184, 0.0
  %v1249 = vmax.f32 %v1185, 0.0
  %v1250 = vmax.f32 %v1186, 0.0
  %v1251 = vmax.f32 %v1187, 0.0
  %v1252 = vmax.f32 %v1188, 0.0
  %v1253 = vmax.f32 %v1189, 0.0
  %v1254 = vmax.f32 %v1190, 0.0
  %v1255 = vmax.f32 %v1191, 0.0
  %v1256 = vmax.f32 %v1192, 0.0
  %v1257 = vmax.f32 %v1193, 0.0
  %v1258 = vmax.f32 %v1194, 0.0
  %v1259 = vmax.f32 %v1195, 0.0
  %v1260 = vmax.f32 %v1196, 0.0
  %v1261 = vmax.f32 %v1197, 0.0
  %v1262 = vmax.f32 %v1198, 0.0
  %v1263 = vmax.f32 %v1199, 0.0
  %v1264 = vmax.f32 %v1200, 0.0
  %v1265 = vmax.f32 %v1201, 0.0
  %v1266 = vmax.f32 %v1202, 0.0
  %v1267 = vmax.f32 %v1203, 0.0
  %v1268 = vmax.f32 %v1204, 0.0
  %v1269 = vmax.f32 %v1205, %v1221
  %v1270 = vmax.f32 %v1206, %v1222
  %v1271 = vmax.f32 %v1207, %v1223
  %v1272 = vmax.f32 %v1208, %v1224
  %v1273 = vmax.f32 %v1209, %v1225
  %v1274 = vmax.f32 %v1210, %v1226
  %v1275 = vmax.f32 %v1211, %v1227
  %v1276 = vmax.f32 %v1212, %v1228
  %v1277 = vmax.f32 %v1213, %v1229
  %v1278 = vmax.f32 %v1214, %v1230
  %v1279 = vmax.f32 %v1215, %v1231
  %v1280 = vmax.f32 %v1216, %v1232
  %v1281 = vmax.f32 %v1217, %v1233
  %v1282 = vmax.f32 %v1218, %v1234
  %v1283 = vmax.f32 %v1219, %v1235
  %v1284 = vmax.f32 %v1220, %v1236
  %v1285 = vmax.f32 %v1237, %v1253
  %v1286 = vmax.f32 %v1238, %v1254
  %v1287 = vmax.f32 %v1239, %v1255
  %v1288 = vmax.f32 %v1240, %v1256
  %v1289 = vmax.f32 %v1241, %v1257
  %v1290 = vmax.f32 %v1242, %v1258
  %v1291 = vmax.f32 %v1243, %v1259
  %v1292 = vmax.f32 %v1244, %v1260
  %v1293 = vmax.f32 %v1245, %v1261
  %v1294 = vmax.f32 %v1246, %v1262
  %v1295 = vmax.f32 %v1247, %v1263
  %v1296 = vmax.f32 %v1248, %v1264
  %v1297 = vmax.f32 %v1249, %v1265
  %v1298 = vmax.f32 %v1250, %v1266
  %v1299 = vmax.f32 %v1251, %v1267
  %v1300 = vmax.f32 %v1252, %v1268
  %v1301 = vmax.f32 %v1269, %v1285
  %v1302 = vmax.f32 %v1270, %v1286
  %v1303 = vmax.f32 %v1271, %v1287
  %v1304 = vmax.f32 %v1272, %v1288
  %v1305 = vmax.f32 %v1273, %v1289
  %v1306 = vmax.f32 %v1274, %v1290
  %v1307 = vmax.f32 %v1275, %v1291
  %v1308 = vmax.f32 %v1276, %v1292
  %v1309 = vmax.f32 %v1277, %v1293
  %v1310 = vmax.f32 %v1278, %v1294
  %v1311 = vmax.f32 %v1279, %v1295
  %v1312 = vmax.f32 %v1280, %v1296
  %v1313 = vmax.f32 %v1281, %v1297
  %v1314 = vmax.f32 %v1282, %v1298
  %v1315 = vmax.f32 %v1283, %v1299
  %v1316 = vmax.f32 %v1284, %v1300
  %1317 = vst.msk [vmem:[%s4] sm:$0xff] %vm662, %v1301
  %1318 = vst.msk [vmem:[%s4 + $0x8] sm:$0xff] %vm662, %v1302
  %1319 = vst.msk [vmem:[%s4 + $0x10] sm:$0xff] %vm662, %v1303
  %1320 = vst.msk [vmem:[%s4 + $0x18] sm:$0xff] %vm662, %v1304
  %1321 = vst.msk [vmem:[%s4 + $0x20] sm:$0xff] %vm662, %v1305
  %1322 = vst.msk [vmem:[%s4 + $0x28] sm:$0xff] %vm662, %v1306
  %1323 = vst.msk [vmem:[%s4 + $0x30] sm:$0xff] %vm662, %v1307
  %1324 = vst.msk [vmem:[%s4 + $0x38] sm:$0xff] %vm662, %v1308
  %1325 = vst.msk [vmem:[%s4 + $0x40] sm:$0xff] %vm662, %v1309
  %1326 = vst.msk [vmem:[%s4 + $0x48] sm:$0xff] %vm662, %v1310
  %1327 = vst.msk [vmem:[%s4 + $0x50] sm:$0xff] %vm662, %v1311
  %1328 = vst.msk [vmem:[%s4 + $0x58] sm:$0xff] %vm662, %v1312
  %1329 = vst.msk [vmem:[%s4 + $0x60] sm:$0xff] %vm662, %v1313
  %1330 = vst.msk [vmem:[%s4 + $0x68] sm:$0xff] %vm662, %v1314
  %1331 = vst.msk [vmem:[%s4 + $0x70] sm:$0xff] %vm662, %v1315
  %1332 = vst.msk [vmem:[%s4 + $0x78] sm:$0xff] %vm662, %v1316
  // Predicated region
  $region18: #{discriminator_forward.4} parent=0 // pred_check
    _
  $region19: #{discriminator_forward.4} parent=0 // pred_check_branch
    %1334 = sbr.rel (0) target = $region21
  $region20: #{discriminator_forward.4} parent=0 // pred_region
    _
  $region21: #{discriminator_forward.4} parent=0 // pred_fallthru
    _
  // Predicated region
  $region22: #{discriminator_forward.4} parent=0 // pred_check
    _
  $region23: #{discriminator_forward.4} parent=0 // pred_check_branch
    %1336 = sbr.rel (0) target = $region25
  $region24: #{discriminator_forward.4} parent=0 // pred_region
    _
  $region25: #{discriminator_forward.4} parent=0 // pred_fallthru
    _

// kernel: discriminator_forward.5
$region0: #{discriminator_forward.5}
  #allocation0 [shape = 'u32[]', space=smem, size = 0x4, offset = 0x4, fixed_abs, tag = 'smem constant byte address 0x4 - core index']
  #allocation1 [shape = 'u32[144,128]{1,0:T(1,128)}', space=vmem, size = 0x12000, scoped, tag = 'internal scratch']
  %s0 = inlined_call_operand.vmem [shape: bf16[128,576], index: 0, kind: input, shape index: {}]
  %s1 = inlined_call_operand.vmem [shape: bf16[576,128], index: 1, kind: input, shape index: {}]
  %s2 = inlined_call_operand.vmem [shape: f32[1,128], index: 2, kind: input, shape index: {}]
  %s3 = inlined_call_operand.vmem [shape: f32[1,128], index: 3, kind: input, shape index: {}]
  %s4 = inlined_call_operand.vmem [shape: f32[32,128], index: 4, kind: output, shape index: {}]
  %s5 = sld [smem:[#allocation0]]
  $region26: #{discriminator_forward.5} parent=0
    _
  %s7 = ssub.s32 1, %s5
  %s8 = scalar_select 0, %s7, %s5
  // Predicated region
  $region2: #{discriminator_forward.5} parent=0 // pred_check
    _
  $region3: #{discriminator_forward.5} parent=0 // pred_check_branch
    %10 = sbr.rel (0) target = $region5
  $region4: #{discriminator_forward.5} parent=0 // pred_region
    _
  $region5: #{discriminator_forward.5} parent=0 // pred_fallthru
    _
  // Predicated region
  $region6: #{discriminator_forward.5} parent=0 // pred_check
    _
  $region7: #{discriminator_forward.5} parent=0 // pred_check_branch
    %12 = sbr.rel (0) target = $region9
  $region8: #{discriminator_forward.5} parent=0 // pred_region
    _
  $region9: #{discriminator_forward.5} parent=0 // pred_fallthru
    _
  // Predicated region
  $region10: #{discriminator_forward.5} parent=0 // pred_check
    _
  $region11: #{discriminator_forward.5} parent=0 // pred_check_branch
    %14 = sbr.rel (0) target = $region13
  $region12: #{discriminator_forward.5} parent=0 // pred_region
    _
  $region13: #{discriminator_forward.5} parent=0 // pred_fallthru
    _
  // Predicated region
  $region14: #{discriminator_forward.5} parent=0 // pred_check
    _
  $region15: #{discriminator_forward.5} parent=0 // pred_check_branch
    %16 = sbr.rel (0) target = $region17
  $region16: #{discriminator_forward.5} parent=0 // pred_region
    _
  $region17: #{discriminator_forward.5} parent=0 // pred_fallthru
    _
  %v18 = vld [vmem:[%s0] sm:$0xff]
  %v19 = vld [vmem:[%s0 + $0x8] sm:$0xff]
  %v20 = vld [vmem:[%s0 + $0x10] sm:$0xf]
  %v21 = vld [vmem:[%s0 + $0x14] sm:$0xff]
  %v22 = vld [vmem:[%s0 + $0x1c] sm:$0xff]
  %v23 = vld [vmem:[%s0 + $0x24] sm:$0xf]
  %v24 = vld [vmem:[%s0 + $0x28] sm:$0xff]
  %v25 = vld [vmem:[%s0 + $0x30] sm:$0xff]
  %v26 = vld [vmem:[%s0 + $0x38] sm:$0xf]
  %v27 = vld [vmem:[%s0 + $0x3c] sm:$0xff]
  %v28 = vld [vmem:[%s0 + $0x44] sm:$0xff]
  %v29 = vld [vmem:[%s0 + $0x4c] sm:$0xf]
  %v30 = vld [vmem:[%s0 + $0x50] sm:$0xff]
  %v31 = vld [vmem:[%s0 + $0x58] sm:$0xff]
  %v32 = vld [vmem:[%s0 + $0x60] sm:$0xf]
  %v33 = vld [vmem:[%s0 + $0x64] sm:$0xff]
  %v34 = vld [vmem:[%s0 + $0x6c] sm:$0xff]
  %v35 = vld [vmem:[%s0 + $0x74] sm:$0xf]
  %v36 = vld [vmem:[%s0 + $0x78] sm:$0xff]
  %v37 = vld [vmem:[%s0 + $0x80] sm:$0xff]
  %v38 = vld [vmem:[%s0 + $0x88] sm:$0xf]
  %v39 = vld [vmem:[%s0 + $0x8c] sm:$0xff]
  %v40 = vld [vmem:[%s0 + $0x94] sm:$0xff]
  %v41 = vld [vmem:[%s0 + $0x9c] sm:$0xf]
  %v42 = vld [vmem:[%s0 + $0xa0] sm:$0xff]
  %v43 = vld [vmem:[%s0 + $0xa8] sm:$0xff]
  %v44 = vld [vmem:[%s0 + $0xb0] sm:$0xf]
  %v45 = vld [vmem:[%s0 + $0xb4] sm:$0xff]
  %v46 = vld [vmem:[%s0 + $0xbc] sm:$0xff]
  %v47 = vld [vmem:[%s0 + $0xc4] sm:$0xf]
  %v48 = vld [vmem:[%s0 + $0xc8] sm:$0xff]
  %v49 = vld [vmem:[%s0 + $0xd0] sm:$0xff]
  %v50 = vld [vmem:[%s0 + $0xd8] sm:$0xf]
  %v51 = vld [vmem:[%s0 + $0xdc] sm:$0xff]
  %v52 = vld [vmem:[%s0 + $0xe4] sm:$0xff]
  %v53 = vld [vmem:[%s0 + $0xec] sm:$0xf]
  %v54 = vld [vmem:[%s0 + $0xf0] sm:$0xff]
  %v55 = vld [vmem:[%s0 + $0xf8] sm:$0xff]
  %v56 = vld [vmem:[%s0 + $0x100] sm:$0xf]
  %v57 = vld [vmem:[%s0 + $0x104] sm:$0xff]
  %v58 = vld [vmem:[%s0 + $0x10c] sm:$0xff]
  %v59 = vld [vmem:[%s0 + $0x114] sm:$0xf]
  %v60 = vld [vmem:[%s0 + $0x118] sm:$0xff]
  %v61 = vld [vmem:[%s0 + $0x120] sm:$0xff]
  %v62 = vld [vmem:[%s0 + $0x128] sm:$0xf]
  %v63 = vld [vmem:[%s0 + $0x12c] sm:$0xff]
  %v64 = vld [vmem:[%s0 + $0x134] sm:$0xff]
  %v65 = vld [vmem:[%s0 + $0x13c] sm:$0xf]
  %v66 = vld [vmem:[%s1] sm:$0xf]
  %v67 = vld [vmem:[%s1 + $0x4] sm:$0xf]
  %v68 = vld [vmem:[%s1 + $0x8] sm:$0xf]
  %v69 = vld [vmem:[%s1 + $0xc] sm:$0xf]
  %v70 = vld [vmem:[%s1 + $0x10] sm:$0xf]
  %v71 = vld [vmem:[%s1 + $0x14] sm:$0xf]
  %v72 = vld [vmem:[%s1 + $0x18] sm:$0xf]
  %v73 = vld [vmem:[%s1 + $0x1c] sm:$0xf]
  %v74 = vld [vmem:[%s1 + $0x20] sm:$0xf]
  %v75 = vld [vmem:[%s1 + $0x24] sm:$0xf]
  %v76 = vld [vmem:[%s1 + $0x28] sm:$0xf]
  %v77 = vld [vmem:[%s1 + $0x2c] sm:$0xf]
  %v78 = vld [vmem:[%s1 + $0x30] sm:$0xf]
  %v79 = vld [vmem:[%s1 + $0x34] sm:$0xf]
  %v80 = vld [vmem:[%s1 + $0x38] sm:$0xf]
  %v81 = vld [vmem:[%s1 + $0x3c] sm:$0xf]
  %v82 = vld [vmem:[%s1 + $0x40] sm:$0xf]
  %v83 = vld [vmem:[%s1 + $0x44] sm:$0xf]
  %v84 = vld [vmem:[%s1 + $0x48] sm:$0xf]
  %v85 = vld [vmem:[%s1 + $0x4c] sm:$0xf]
  %v86 = vld [vmem:[%s1 + $0x50] sm:$0xf]
  %v87 = vld [vmem:[%s1 + $0x54] sm:$0xf]
  %v88 = vld [vmem:[%s1 + $0x58] sm:$0xf]
  %v89 = vld [vmem:[%s1 + $0x5c] sm:$0xf]
  %v90 = vld [vmem:[%s1 + $0x60] sm:$0xf]
  %v91 = vld [vmem:[%s1 + $0x64] sm:$0xf]
  %v92 = vld [vmem:[%s1 + $0x68] sm:$0xf]
  %v93 = vld [vmem:[%s1 + $0x6c] sm:$0xf]
  %v94 = vld [vmem:[%s1 + $0x70] sm:$0xf]
  %v95 = vld [vmem:[%s1 + $0x74] sm:$0xf]
  %v96 = vld [vmem:[%s1 + $0x78] sm:$0xf]
  %v97 = vld [vmem:[%s1 + $0x7c] sm:$0xf]
  %v98 = vld [vmem:[%s1 + $0x80] sm:$0xf]
  %v99 = vld [vmem:[%s1 + $0x84] sm:$0xf]
  %v100 = vld [vmem:[%s1 + $0x88] sm:$0xf]
  %v101 = vld [vmem:[%s1 + $0x8c] sm:$0xf]
  %v102 = vld [vmem:[%s1 + $0x90] sm:$0xf]
  %v103 = vld [vmem:[%s1 + $0x94] sm:$0xf]
  %v104 = vld [vmem:[%s1 + $0x98] sm:$0xf]
  %v105 = vld [vmem:[%s1 + $0x9c] sm:$0xf]
  %v106 = vld [vmem:[%s1 + $0xa0] sm:$0xf]
  %v107 = vld [vmem:[%s1 + $0xa4] sm:$0xf]
  %v108 = vld [vmem:[%s1 + $0xa8] sm:$0xf]
  %v109 = vld [vmem:[%s1 + $0xac] sm:$0xf]
  %v110 = vld [vmem:[%s1 + $0xb0] sm:$0xf]
  %v111 = vld [vmem:[%s1 + $0xb4] sm:$0xf]
  %v112 = vld [vmem:[%s1 + $0xb8] sm:$0xf]
  %v113 = vld [vmem:[%s1 + $0xbc] sm:$0xf]
  %v114 = vld [vmem:[%s1 + $0xc0] sm:$0xf]
  %v115 = vld [vmem:[%s1 + $0xc4] sm:$0xf]
  %v116 = vld [vmem:[%s1 + $0xc8] sm:$0xf]
  %v117 = vld [vmem:[%s1 + $0xcc] sm:$0xf]
  %v118 = vld [vmem:[%s1 + $0xd0] sm:$0xf]
  %v119 = vld [vmem:[%s1 + $0xd4] sm:$0xf]
  %v120 = vld [vmem:[%s1 + $0xd8] sm:$0xf]
  %v121 = vld [vmem:[%s1 + $0xdc] sm:$0xf]
  %v122 = vld [vmem:[%s1 + $0xe0] sm:$0xf]
  %v123 = vld [vmem:[%s1 + $0xe4] sm:$0xf]
  %v124 = vld [vmem:[%s1 + $0xe8] sm:$0xf]
  %v125 = vld [vmem:[%s1 + $0xec] sm:$0xf]
  %v126 = vld [vmem:[%s1 + $0xf0] sm:$0xf]
  %v127 = vld [vmem:[%s1 + $0xf4] sm:$0xf]
  %v128 = vld [vmem:[%s1 + $0xf8] sm:$0xf]
  %v129 = vld [vmem:[%s1 + $0xfc] sm:$0xf]
  %v130 = vld [vmem:[%s1 + $0x100] sm:$0xf]
  %v131 = vld [vmem:[%s1 + $0x104] sm:$0xf]
  %v132 = vld [vmem:[%s1 + $0x108] sm:$0xf]
  %v133 = vld [vmem:[%s1 + $0x10c] sm:$0xf]
  %v134 = vld [vmem:[%s1 + $0x110] sm:$0xf]
  %v135 = vld [vmem:[%s1 + $0x114] sm:$0xf]
  %v136 = vld [vmem:[%s1 + $0x118] sm:$0xf]
  %v137 = vld [vmem:[%s1 + $0x11c] sm:$0xf]
  %v186 = vunpack.c.l.b16 %v18
  %v187 = vunpack.c.h.b16 %v18
  %v188 = vunpack.c.l.b16 %v19
  %v189 = vunpack.c.h.b16 %v19
  %v190 = vunpack.c.l.b16 %v20
  %v191 = vunpack.c.l.b16 %v21
  %v192 = vunpack.c.h.b16 %v21
  %v193 = vunpack.c.l.b16 %v22
  %v194 = vunpack.c.h.b16 %v22
  %v195 = vunpack.c.l.b16 %v23
  %v196 = vunpack.c.l.b16 %v24
  %v197 = vunpack.c.h.b16 %v24
  %v198 = vunpack.c.l.b16 %v25
  %v199 = vunpack.c.h.b16 %v25
  %v200 = vunpack.c.l.b16 %v26
  %v201 = vunpack.c.l.b16 %v27
  %v202 = vunpack.c.h.b16 %v27
  %v203 = vunpack.c.l.b16 %v28
  %v204 = vunpack.c.h.b16 %v28
  %v205 = vunpack.c.l.b16 %v29
  %v206 = vunpack.c.l.b16 %v30
  %v207 = vunpack.c.h.b16 %v30
  %v208 = vunpack.c.l.b16 %v31
  %v209 = vunpack.c.h.b16 %v31
  %v210 = vunpack.c.l.b16 %v32
  %v211 = vunpack.c.l.b16 %v33
  %v212 = vunpack.c.h.b16 %v33
  %v213 = vunpack.c.l.b16 %v34
  %v214 = vunpack.c.h.b16 %v34
  %v215 = vunpack.c.l.b16 %v35
  %v216 = vunpack.c.l.b16 %v36
  %v217 = vunpack.c.h.b16 %v36
  %v218 = vunpack.c.l.b16 %v37
  %v219 = vunpack.c.h.b16 %v37
  %v220 = vunpack.c.l.b16 %v38
  %v221 = vunpack.c.l.b16 %v39
  %v222 = vunpack.c.h.b16 %v39
  %v223 = vunpack.c.l.b16 %v40
  %v224 = vunpack.c.h.b16 %v40
  %v225 = vunpack.c.l.b16 %v41
  %v226 = vunpack.c.l.b16 %v42
  %v227 = vunpack.c.h.b16 %v42
  %v228 = vunpack.c.l.b16 %v43
  %v229 = vunpack.c.h.b16 %v43
  %v230 = vunpack.c.l.b16 %v44
  %v231 = vunpack.c.l.b16 %v45
  %v232 = vunpack.c.h.b16 %v45
  %v233 = vunpack.c.l.b16 %v46
  %v234 = vunpack.c.h.b16 %v46
  %v235 = vunpack.c.l.b16 %v47
  %v236 = vunpack.c.l.b16 %v48
  %v237 = vunpack.c.h.b16 %v48
  %v238 = vunpack.c.l.b16 %v49
  %v239 = vunpack.c.h.b16 %v49
  %v240 = vunpack.c.l.b16 %v50
  %v241 = vunpack.c.l.b16 %v51
  %v242 = vunpack.c.h.b16 %v51
  %v243 = vunpack.c.l.b16 %v52
  %v244 = vunpack.c.h.b16 %v52
  %v245 = vunpack.c.l.b16 %v53
  %v246 = vunpack.c.l.b16 %v54
  %v247 = vunpack.c.h.b16 %v54
  %v248 = vunpack.c.l.b16 %v55
  %v249 = vunpack.c.h.b16 %v55
  %v250 = vunpack.c.l.b16 %v56
  %v251 = vunpack.c.l.b16 %v57
  %v252 = vunpack.c.h.b16 %v57
  %v253 = vunpack.c.l.b16 %v58
  %v254 = vunpack.c.h.b16 %v58
  %v255 = vunpack.c.l.b16 %v59
  %v256 = vunpack.c.l.b16 %v60
  %v257 = vunpack.c.h.b16 %v60
  %v258 = vunpack.c.l.b16 %v61
  %v259 = vunpack.c.h.b16 %v61
  %v260 = vunpack.c.l.b16 %v62
  %v261 = vunpack.c.l.b16 %v63
  %v262 = vunpack.c.h.b16 %v63
  %v263 = vunpack.c.l.b16 %v64
  %v264 = vunpack.c.h.b16 %v64
  %v265 = vunpack.c.l.b16 %v65
  %v266 = vpack.c.b16 %v191, %v186
  %v267 = vpack.c.b16 %v192, %v187
  %v268 = vpack.c.b16 %v193, %v188
  %v269 = vpack.c.b16 %v194, %v189
  %v270 = vpack.c.b16 %v195, %v190
  %v271 = vpack.c.b16 %v201, %v196
  %v272 = vpack.c.b16 %v202, %v197
  %v273 = vpack.c.b16 %v203, %v198
  %v274 = vpack.c.b16 %v204, %v199
  %v275 = vpack.c.b16 %v205, %v200
  %v276 = vpack.c.b16 %v211, %v206
  %v277 = vpack.c.b16 %v212, %v207
  %v278 = vpack.c.b16 %v213, %v208
  %v279 = vpack.c.b16 %v214, %v209
  %v280 = vpack.c.b16 %v215, %v210
  %v281 = vpack.c.b16 %v221, %v216
  %v282 = vpack.c.b16 %v222, %v217
  %v283 = vpack.c.b16 %v223, %v218
  %v284 = vpack.c.b16 %v224, %v219
  %v285 = vpack.c.b16 %v225, %v220
  %v286 = vpack.c.b16 %v231, %v226
  %v287 = vpack.c.b16 %v232, %v227
  %v288 = vpack.c.b16 %v233, %v228
  %v289 = vpack.c.b16 %v234, %v229
  %v290 = vpack.c.b16 %v235, %v230
  %v291 = vpack.c.b16 %v241, %v236
  %v292 = vpack.c.b16 %v242, %v237
  %v293 = vpack.c.b16 %v243, %v238
  %v294 = vpack.c.b16 %v244, %v239
  %v295 = vpack.c.b16 %v245, %v240
  %v296 = vpack.c.b16 %v251, %v246
  %v297 = vpack.c.b16 %v252, %v247
  %v298 = vpack.c.b16 %v253, %v248
  %v299 = vpack.c.b16 %v254, %v249
  %v300 = vpack.c.b16 %v255, %v250
  %v301 = vpack.c.b16 %v261, %v256
  %v302 = vpack.c.b16 %v262, %v257
  %v303 = vpack.c.b16 %v263, %v258
  %v304 = vpack.c.b16 %v264, %v259
  %v305 = vpack.c.b16 %v265, %v260
  %v410 = vunpack.c.l.b16 %v66
  %v411 = vunpack.c.l.b16 %v67
  %v412 = vunpack.c.l.b16 %v68
  %v413 = vunpack.c.l.b16 %v69
  %v414 = vunpack.c.l.b16 %v70
  %v415 = vunpack.c.l.b16 %v71
  %v416 = vunpack.c.l.b16 %v72
  %v417 = vunpack.c.l.b16 %v73
  %v418 = vunpack.c.l.b16 %v74
  %v419 = vunpack.c.l.b16 %v75
  %v420 = vunpack.c.l.b16 %v76
  %v421 = vunpack.c.l.b16 %v77
  %v422 = vunpack.c.l.b16 %v78
  %v423 = vunpack.c.l.b16 %v79
  %v424 = vunpack.c.l.b16 %v80
  %v425 = vunpack.c.l.b16 %v81
  %v426 = vunpack.c.l.b16 %v82
  %v427 = vunpack.c.l.b16 %v83
  %v428 = vunpack.c.l.b16 %v84
  %v429 = vunpack.c.l.b16 %v85
  %v430 = vunpack.c.l.b16 %v86
  %v431 = vunpack.c.l.b16 %v87
  %v432 = vunpack.c.l.b16 %v88
  %v433 = vunpack.c.l.b16 %v89
  %v434 = vunpack.c.l.b16 %v90
  %v435 = vunpack.c.l.b16 %v91
  %v436 = vunpack.c.l.b16 %v92
  %v437 = vunpack.c.l.b16 %v93
  %v438 = vunpack.c.l.b16 %v94
  %v439 = vunpack.c.l.b16 %v95
  %v440 = vunpack.c.l.b16 %v96
  %v441 = vunpack.c.l.b16 %v97
  %v442 = vunpack.c.l.b16 %v98
  %v443 = vunpack.c.l.b16 %v99
  %v444 = vunpack.c.l.b16 %v100
  %v445 = vunpack.c.l.b16 %v101
  %v446 = vunpack.c.l.b16 %v102
  %v447 = vunpack.c.l.b16 %v103
  %v448 = vunpack.c.l.b16 %v104
  %v449 = vunpack.c.l.b16 %v105
  %v450 = vunpack.c.l.b16 %v106
  %v451 = vunpack.c.l.b16 %v107
  %v452 = vunpack.c.l.b16 %v108
  %v453 = vunpack.c.l.b16 %v109
  %v454 = vunpack.c.l.b16 %v110
  %v455 = vunpack.c.l.b16 %v111
  %v456 = vunpack.c.l.b16 %v112
  %v457 = vunpack.c.l.b16 %v113
  %v458 = vunpack.c.l.b16 %v114
  %v459 = vunpack.c.l.b16 %v115
  %v460 = vunpack.c.l.b16 %v116
  %v461 = vunpack.c.l.b16 %v117
  %v462 = vunpack.c.l.b16 %v118
  %v463 = vunpack.c.l.b16 %v119
  %v464 = vunpack.c.l.b16 %v120
  %v465 = vunpack.c.l.b16 %v121
  %v466 = vunpack.c.l.b16 %v122
  %v467 = vunpack.c.l.b16 %v123
  %v468 = vunpack.c.l.b16 %v124
  %v469 = vunpack.c.l.b16 %v125
  %v470 = vunpack.c.l.b16 %v126
  %v471 = vunpack.c.l.b16 %v127
  %v472 = vunpack.c.l.b16 %v128
  %v473 = vunpack.c.l.b16 %v129
  %v474 = vunpack.c.l.b16 %v130
  %v475 = vunpack.c.l.b16 %v131
  %v476 = vunpack.c.l.b16 %v132
  %v477 = vunpack.c.l.b16 %v133
  %v478 = vunpack.c.l.b16 %v134
  %v479 = vunpack.c.l.b16 %v135
  %v480 = vunpack.c.l.b16 %v136
  %v481 = vunpack.c.l.b16 %v137
  %v482 = vpack.c.b16 %v411, %v410
  %v483 = vpack.c.b16 %v413, %v412
  %v484 = vpack.c.b16 %v415, %v414
  %v485 = vpack.c.b16 %v417, %v416
  %v486 = vpack.c.b16 %v419, %v418
  %v487 = vpack.c.b16 %v421, %v420
  %v488 = vpack.c.b16 %v423, %v422
  %v489 = vpack.c.b16 %v425, %v424
  %v490 = vpack.c.b16 %v427, %v426
  %v491 = vpack.c.b16 %v429, %v428
  %v492 = vpack.c.b16 %v431, %v430
  %v493 = vpack.c.b16 %v433, %v432
  %v494 = vpack.c.b16 %v435, %v434
  %v495 = vpack.c.b16 %v437, %v436
  %v496 = vpack.c.b16 %v439, %v438
  %v497 = vpack.c.b16 %v441, %v440
  %v498 = vpack.c.b16 %v443, %v442
  %v499 = vpack.c.b16 %v445, %v444
  %v500 = vpack.c.b16 %v447, %v446
  %v501 = vpack.c.b16 %v449, %v448
  %v502 = vpack.c.b16 %v451, %v450
  %v503 = vpack.c.b16 %v453, %v452
  %v504 = vpack.c.b16 %v455, %v454
  %v505 = vpack.c.b16 %v457, %v456
  %v506 = vpack.c.b16 %v459, %v458
  %v507 = vpack.c.b16 %v461, %v460
  %v508 = vpack.c.b16 %v463, %v462
  %v509 = vpack.c.b16 %v465, %v464
  %v510 = vpack.c.b16 %v467, %v466
  %v511 = vpack.c.b16 %v469, %v468
  %v512 = vpack.c.b16 %v471, %v470
  %v513 = vpack.c.b16 %v473, %v472
  %v514 = vpack.c.b16 %v475, %v474
  %v515 = vpack.c.b16 %v477, %v476
  %v516 = vpack.c.b16 %v479, %v478
  %v517 = vpack.c.b16 %v481, %v480
  %vm554 = vcmask 523264
  %v556 = vsel %vm554, %v270, 0
  %v559 = vsel %vm554, %v275, 0
  %v562 = vsel %vm554, %v280, 0
  %v565 = vsel %vm554, %v285, 0
  %v568 = vsel %vm554, %v290, 0
  %v571 = vsel %vm554, %v295, 0
  %v574 = vsel %vm554, %v300, 0
  %v577 = vsel %vm554, %v305, 0
  %579 = vmatprep.subr.bf16.mxu0 0
  %580 = vmatpush1.bf16.msra.mxu0 %v489
  %581 = vmatprep.subr.bf16.mxu0 0
  %582 = vmatpush1.bf16.msra.mxu0 %v488
  %583 = vmatprep.subr.bf16.mxu0 0
  %584 = vmatpush1.bf16.msra.mxu0 %v487
  %585 = vmatprep.subr.bf16.mxu0 0
  %586 = vmatpush1.bf16.msra.mxu0 %v486
  %587 = vmatprep.subr.bf16.mxu0 0
  %588 = vmatpush1.bf16.msra.mxu0 %v485
  %589 = vmatprep.subr.bf16.mxu0 0
  %590 = vmatpush1.bf16.msra.mxu0 %v484
  %591 = vmatprep.subr.bf16.mxu0 0
  %592 = vmatpush1.bf16.msra.mxu0 %v483
  %593 = vmatprep.subr.bf16.mxu0 0
  %594 = vmatpush1.bf16.msra.mxu0 %v482
  %595 = vmatprep.subr.bf16.mxu0 0
  %596 = vmatpush2.bf16.msra.mxu0 %v497
  %597 = vmatprep.subr.bf16.mxu0 0
  %598 = vmatpush2.bf16.msra.mxu0 %v496
  %599 = vmatprep.subr.bf16.mxu0 0
  %600 = vmatpush2.bf16.msra.mxu0 %v495
  %601 = vmatprep.subr.bf16.mxu0 0
  %602 = vmatpush2.bf16.msra.mxu0 %v494
  %603 = vmatprep.subr.bf16.mxu0 0
  %604 = vmatpush2.bf16.msra.mxu0 %v493
  %605 = vmatprep.subr.bf16.mxu0 0
  %606 = vmatpush2.bf16.msra.mxu0 %v492
  %607 = vmatprep.subr.bf16.mxu0 0
  %608 = vmatpush2.bf16.msra.mxu0 %v491
  %609 = vmatprep.subr.bf16.mxu0 0
  %610 = vmatpush2.bf16.msra.mxu0 %v490
  %611 = vmatprep.mubr.bf16.mxu0 %v267
  %612 = vmatmul.mubr.bf16.gmra.mxu0 %v266
  %v613 = vpop.f32.mrf.mxu0
  %v614 = vadd.f32 0.0, %v613
  %v615 = vpop.f32.mrf.mxu0
  %v616 = vpop.f32.mrf.mxu0
  %v617 = vadd.f32 0.0, %v616
  %v618 = vpop.f32.mrf.mxu0
  %619 = vmatprep.mubr.bf16.mxu0 %v272
  %620 = vmatmul.mubr.bf16.gmra.mxu0 %v271
  %v621 = vpop.f32.mrf.mxu0
  %v622 = vadd.f32 0.0, %v621
  %v623 = vpop.f32.mrf.mxu0
  %v624 = vpop.f32.mrf.mxu0
  %v625 = vadd.f32 0.0, %v624
  %v626 = vpop.f32.mrf.mxu0
  %627 = vmatprep.mubr.bf16.mxu0 %v277
  %628 = vmatmul.mubr.bf16.gmra.mxu0 %v276
  %v629 = vpop.f32.mrf.mxu0
  %v630 = vadd.f32 0.0, %v629
  %v631 = vpop.f32.mrf.mxu0
  %v632 = vpop.f32.mrf.mxu0
  %v633 = vadd.f32 0.0, %v632
  %v634 = vpop.f32.mrf.mxu0
  %635 = vmatprep.mubr.bf16.mxu0 %v282
  %636 = vmatmul.mubr.bf16.gmra.mxu0 %v281
  %v637 = vpop.f32.mrf.mxu0
  %v638 = vadd.f32 0.0, %v637
  %v639 = vpop.f32.mrf.mxu0
  %v640 = vpop.f32.mrf.mxu0
  %v641 = vadd.f32 0.0, %v640
  %v642 = vpop.f32.mrf.mxu0
  %643 = vmatprep.mubr.bf16.mxu0 %v287
  %644 = vmatmul.mubr.bf16.gmra.mxu0 %v286
  %v645 = vpop.f32.mrf.mxu0
  %v646 = vadd.f32 0.0, %v645
  %v647 = vpop.f32.mrf.mxu0
  %v648 = vpop.f32.mrf.mxu0
  %v649 = vadd.f32 0.0, %v648
  %v650 = vpop.f32.mrf.mxu0
  %651 = vmatprep.mubr.bf16.mxu0 %v292
  %652 = vmatmul.mubr.bf16.gmra.mxu0 %v291
  %v653 = vpop.f32.mrf.mxu0
  %v654 = vadd.f32 0.0, %v653
  %v655 = vpop.f32.mrf.mxu0
  %v656 = vpop.f32.mrf.mxu0
  %v657 = vadd.f32 0.0, %v656
  %v658 = vpop.f32.mrf.mxu0
  %659 = vmatprep.mubr.bf16.mxu0 %v297
  %660 = vmatmul.mubr.bf16.gmra.mxu0 %v296
  %v661 = vpop.f32.mrf.mxu0
  %v662 = vadd.f32 0.0, %v661
  %v663 = vpop.f32.mrf.mxu0
  %v664 = vpop.f32.mrf.mxu0
  %v665 = vadd.f32 0.0, %v664
  %v666 = vpop.f32.mrf.mxu0
  %667 = vmatprep.mubr.bf16.mxu0 %v302
  %668 = vmatmul.mubr.bf16.gmra.mxu0 %v301
  %v669 = vpop.f32.mrf.mxu0
  %v670 = vadd.f32 0.0, %v669
  %v671 = vpop.f32.mrf.mxu0
  %v672 = vpop.f32.mrf.mxu0
  %v673 = vadd.f32 0.0, %v672
  %v674 = vpop.f32.mrf.mxu0
  %675 = vdwg.mxu0
  %676 = vmatprep.subr.bf16.mxu0 0
  %677 = vmatpush1.bf16.msra.mxu0 %v505
  %678 = vmatprep.subr.bf16.mxu0 0
  %679 = vmatpush1.bf16.msra.mxu0 %v504
  %680 = vmatprep.subr.bf16.mxu0 0
  %681 = vmatpush1.bf16.msra.mxu0 %v503
  %682 = vmatprep.subr.bf16.mxu0 0
  %683 = vmatpush1.bf16.msra.mxu0 %v502
  %684 = vmatprep.subr.bf16.mxu0 0
  %685 = vmatpush1.bf16.msra.mxu0 %v501
  %686 = vmatprep.subr.bf16.mxu0 0
  %687 = vmatpush1.bf16.msra.mxu0 %v500
  %688 = vmatprep.subr.bf16.mxu0 0
  %689 = vmatpush1.bf16.msra.mxu0 %v499
  %690 = vmatprep.subr.bf16.mxu0 0
  %691 = vmatpush1.bf16.msra.mxu0 %v498
  %692 = vmatprep.subr.bf16.mxu0 0
  %693 = vmatpush2.bf16.msra.mxu0 %v513
  %694 = vmatprep.subr.bf16.mxu0 0
  %695 = vmatpush2.bf16.msra.mxu0 %v512
  %696 = vmatprep.subr.bf16.mxu0 0
  %697 = vmatpush2.bf16.msra.mxu0 %v511
  %698 = vmatprep.subr.bf16.mxu0 0
  %699 = vmatpush2.bf16.msra.mxu0 %v510
  %700 = vmatprep.subr.bf16.mxu0 0
  %701 = vmatpush2.bf16.msra.mxu0 %v509
  %702 = vmatprep.subr.bf16.mxu0 0
  %703 = vmatpush2.bf16.msra.mxu0 %v508
  %704 = vmatprep.subr.bf16.mxu0 0
  %705 = vmatpush2.bf16.msra.mxu0 %v507
  %706 = vmatprep.subr.bf16.mxu0 0
  %707 = vmatpush2.bf16.msra.mxu0 %v506
  %708 = vmatprep.mubr.bf16.mxu0 %v269
  %709 = vmatmul.mubr.bf16.gmra.mxu0 %v268
  %v710 = vpop.f32.mrf.mxu0
  %v711 = vadd.f32 %v614, %v710
  %v712 = vpop.f32.mrf.mxu0
  %v713 = vpop.f32.mrf.mxu0
  %v714 = vadd.f32 %v617, %v713
  %v715 = vpop.f32.mrf.mxu0
  %716 = vmatprep.mubr.bf16.mxu0 %v274
  %717 = vmatmul.mubr.bf16.gmra.mxu0 %v273
  %v718 = vpop.f32.mrf.mxu0
  %v719 = vadd.f32 %v622, %v718
  %v720 = vpop.f32.mrf.mxu0
  %v721 = vpop.f32.mrf.mxu0
  %v722 = vadd.f32 %v625, %v721
  %v723 = vpop.f32.mrf.mxu0
  %724 = vmatprep.mubr.bf16.mxu0 %v279
  %725 = vmatmul.mubr.bf16.gmra.mxu0 %v278
  %v726 = vpop.f32.mrf.mxu0
  %v727 = vadd.f32 %v630, %v726
  %v728 = vpop.f32.mrf.mxu0
  %v729 = vpop.f32.mrf.mxu0
  %v730 = vadd.f32 %v633, %v729
  %v731 = vpop.f32.mrf.mxu0
  %732 = vmatprep.mubr.bf16.mxu0 %v284
  %733 = vmatmul.mubr.bf16.gmra.mxu0 %v283
  %v734 = vpop.f32.mrf.mxu0
  %v735 = vadd.f32 %v638, %v734
  %v736 = vpop.f32.mrf.mxu0
  %v737 = vpop.f32.mrf.mxu0
  %v738 = vadd.f32 %v641, %v737
  %v739 = vpop.f32.mrf.mxu0
  %740 = vmatprep.mubr.bf16.mxu0 %v289
  %741 = vmatmul.mubr.bf16.gmra.mxu0 %v288
  %v742 = vpop.f32.mrf.mxu0
  %v743 = vadd.f32 %v646, %v742
  %v744 = vpop.f32.mrf.mxu0
  %v745 = vpop.f32.mrf.mxu0
  %v746 = vadd.f32 %v649, %v745
  %v747 = vpop.f32.mrf.mxu0
  %748 = vmatprep.mubr.bf16.mxu0 %v294
  %749 = vmatmul.mubr.bf16.gmra.mxu0 %v293
  %v750 = vpop.f32.mrf.mxu0
  %v751 = vadd.f32 %v654, %v750
  %v752 = vpop.f32.mrf.mxu0
  %v753 = vpop.f32.mrf.mxu0
  %v754 = vadd.f32 %v657, %v753
  %v755 = vpop.f32.mrf.mxu0
  %756 = vmatprep.mubr.bf16.mxu0 %v299
  %757 = vmatmul.mubr.bf16.gmra.mxu0 %v298
  %v758 = vpop.f32.mrf.mxu0
  %v759 = vadd.f32 %v662, %v758
  %v760 = vpop.f32.mrf.mxu0
  %v761 = vpop.f32.mrf.mxu0
  %v762 = vadd.f32 %v665, %v761
  %v763 = vpop.f32.mrf.mxu0
  %764 = vmatprep.mubr.bf16.mxu0 %v304
  %765 = vmatmul.mubr.bf16.gmra.mxu0 %v303
  %v766 = vpop.f32.mrf.mxu0
  %v767 = vadd.f32 %v670, %v766
  %v768 = vpop.f32.mrf.mxu0
  %v769 = vpop.f32.mrf.mxu0
  %v770 = vadd.f32 %v673, %v769
  %v771 = vpop.f32.mrf.mxu0
  %772 = vdwg.mxu0
  %773 = vmatprep.subr.bf16.mxu0 0
  %774 = vmatpush1.bf16.msra.mxu0 0
  %775 = vmatprep.subr.bf16.mxu0 0
  %776 = vmatpush1.bf16.msra.mxu0 0
  %777 = vmatprep.subr.bf16.mxu0 0
  %778 = vmatpush1.bf16.msra.mxu0 0
  %779 = vmatprep.subr.bf16.mxu0 0
  %780 = vmatpush1.bf16.msra.mxu0 0
  %781 = vmatprep.subr.bf16.mxu0 0
  %782 = vmatpush1.bf16.msra.mxu0 %v517
  %783 = vmatprep.subr.bf16.mxu0 0
  %784 = vmatpush1.bf16.msra.mxu0 %v516
  %785 = vmatprep.subr.bf16.mxu0 0
  %786 = vmatpush1.bf16.msra.mxu0 %v515
  %787 = vmatprep.subr.bf16.mxu0 0
  %788 = vmatpush1.bf16.msra.mxu0 %v514
  %789 = vmatprep.subr.bf16.mxu0 0
  %790 = vmatpush2.bf16.msra.mxu0 0
  %791 = vmatprep.subr.bf16.mxu0 0
  %792 = vmatpush2.bf16.msra.mxu0 0
  %793 = vmatprep.subr.bf16.mxu0 0
  %794 = vmatpush2.bf16.msra.mxu0 0
  %795 = vmatprep.subr.bf16.mxu0 0
  %796 = vmatpush2.bf16.msra.mxu0 0
  %797 = vmatprep.subr.bf16.mxu0 0
  %798 = vmatpush2.bf16.msra.mxu0 0
  %799 = vmatprep.subr.bf16.mxu0 0
  %800 = vmatpush2.bf16.msra.mxu0 0
  %801 = vmatprep.subr.bf16.mxu0 0
  %802 = vmatpush2.bf16.msra.mxu0 0
  %803 = vmatprep.subr.bf16.mxu0 0
  %804 = vmatpush2.bf16.msra.mxu0 0
  %805 = vmatprep.mubr.bf16.mxu0 0
  %806 = vmatmul.mubr.bf16.gmra.mxu0 %v556
  %v807 = vpop.f32.mrf.mxu0
  %v808 = vadd.f32 %v711, %v807
  %v809 = vpop.f32.mrf.mxu0
  %v810 = vpop.f32.mrf.mxu0
  %v811 = vadd.f32 %v714, %v810
  %v812 = vpop.f32.mrf.mxu0
  %813 = vmatprep.mubr.bf16.mxu0 0
  %814 = vmatmul.mubr.bf16.gmra.mxu0 %v559
  %v815 = vpop.f32.mrf.mxu0
  %v816 = vadd.f32 %v719, %v815
  %v817 = vpop.f32.mrf.mxu0
  %v818 = vpop.f32.mrf.mxu0
  %v819 = vadd.f32 %v722, %v818
  %v820 = vpop.f32.mrf.mxu0
  %821 = vmatprep.mubr.bf16.mxu0 0
  %822 = vmatmul.mubr.bf16.gmra.mxu0 %v562
  %v823 = vpop.f32.mrf.mxu0
  %v824 = vadd.f32 %v727, %v823
  %v825 = vpop.f32.mrf.mxu0
  %v826 = vpop.f32.mrf.mxu0
  %v827 = vadd.f32 %v730, %v826
  %v828 = vpop.f32.mrf.mxu0
  %829 = vmatprep.mubr.bf16.mxu0 0
  %830 = vmatmul.mubr.bf16.gmra.mxu0 %v565
  %v831 = vpop.f32.mrf.mxu0
  %v832 = vadd.f32 %v735, %v831
  %v833 = vpop.f32.mrf.mxu0
  %v834 = vpop.f32.mrf.mxu0
  %v835 = vadd.f32 %v738, %v834
  %v836 = vpop.f32.mrf.mxu0
  %837 = vmatprep.mubr.bf16.mxu0 0
  %838 = vmatmul.mubr.bf16.gmra.mxu0 %v568
  %v839 = vpop.f32.mrf.mxu0
  %v840 = vadd.f32 %v743, %v839
  %v841 = vpop.f32.mrf.mxu0
  %v842 = vpop.f32.mrf.mxu0
  %v843 = vadd.f32 %v746, %v842
  %v844 = vpop.f32.mrf.mxu0
  %845 = vmatprep.mubr.bf16.mxu0 0
  %846 = vmatmul.mubr.bf16.gmra.mxu0 %v571
  %v847 = vpop.f32.mrf.mxu0
  %v848 = vadd.f32 %v751, %v847
  %v849 = vpop.f32.mrf.mxu0
  %v850 = vpop.f32.mrf.mxu0
  %v851 = vadd.f32 %v754, %v850
  %v852 = vpop.f32.mrf.mxu0
  %853 = vmatprep.mubr.bf16.mxu0 0
  %854 = vmatmul.mubr.bf16.gmra.mxu0 %v574
  %v855 = vpop.f32.mrf.mxu0
  %v856 = vadd.f32 %v759, %v855
  %v857 = vpop.f32.mrf.mxu0
  %v858 = vpop.f32.mrf.mxu0
  %v859 = vadd.f32 %v762, %v858
  %v860 = vpop.f32.mrf.mxu0
  %861 = vmatprep.mubr.bf16.mxu0 0
  %862 = vmatmul.mubr.bf16.gmra.mxu0 %v577
  %v863 = vpop.f32.mrf.mxu0
  %v864 = vadd.f32 %v767, %v863
  %v865 = vpop.f32.mrf.mxu0
  %v866 = vpop.f32.mrf.mxu0
  %v867 = vadd.f32 %v770, %v866
  %v868 = vpop.f32.mrf.mxu0
  %869 = vdwg.mxu0
  %v870 = vld [vmem:[%s2] sm:$0x1]
  %v871 = vld [vmem:[%s3] sm:$0x1]
  %v872 = vadd.f32 %v808, %v811
  %v873 = vadd.f32 %v872, %v816
  %v874 = vadd.f32 %v873, %v819
  %v875 = vadd.f32 %v874, %v824
  %v876 = vadd.f32 %v875, %v827
  %v877 = vadd.f32 %v876, %v832
  %v878 = vadd.f32 %v877, %v835
  %v879 = vadd.f32 %v878, %v840
  %v880 = vadd.f32 %v879, %v843
  %v881 = vadd.f32 %v880, %v848
  %v882 = vadd.f32 %v881, %v851
  %v883 = vadd.f32 %v882, %v856
  %v884 = vadd.f32 %v883, %v859
  %v885 = vadd.f32 %v884, %v864
  %v886 = vadd.f32 %v885, %v867
  %v887 = vrot.slane %v886, 4
  %v888 = vadd.f32 %v886, %v887
  %v889 = vrot.slane %v888, 2
  %v890 = vadd.f32 %v888, %v889
  %v891 = vrot.slane %v890, 1
  %v892 = vadd.f32 %v890, %v891
  %v893 = vrcp.pop 128.0
  %v894 = vmul.f32 %v892, %v893
  %v895 = vsub.f32 %v808, %v894
  %v896 = vsub.f32 %v811, %v894
  %v897 = vsub.f32 %v816, %v894
  %v898 = vsub.f32 %v819, %v894
  %v899 = vsub.f32 %v824, %v894
  %v900 = vsub.f32 %v827, %v894
  %v901 = vsub.f32 %v832, %v894
  %v902 = vsub.f32 %v835, %v894
  %v903 = vsub.f32 %v840, %v894
  %v904 = vsub.f32 %v843, %v894
  %v905 = vsub.f32 %v848, %v894
  %v906 = vsub.f32 %v851, %v894
  %v907 = vsub.f32 %v856, %v894
  %v908 = vsub.f32 %v859, %v894
  %v909 = vsub.f32 %v864, %v894
  %v910 = vsub.f32 %v867, %v894
  %v911 = vmul.f32 %v895, %v895
  %v912 = vmul.f32 %v896, %v896
  %v913 = vmul.f32 %v897, %v897
  %v914 = vmul.f32 %v898, %v898
  %v915 = vmul.f32 %v899, %v899
  %v916 = vmul.f32 %v900, %v900
  %v917 = vmul.f32 %v901, %v901
  %v918 = vmul.f32 %v902, %v902
  %v919 = vmul.f32 %v903, %v903
  %v920 = vmul.f32 %v904, %v904
  %v921 = vmul.f32 %v905, %v905
  %v922 = vmul.f32 %v906, %v906
  %v923 = vmul.f32 %v907, %v907
  %v924 = vmul.f32 %v908, %v908
  %v925 = vmul.f32 %v909, %v909
  %v926 = vmul.f32 %v910, %v910
  %v927 = vadd.f32 %v911, %v912
  %v928 = vadd.f32 %v927, %v913
  %v929 = vadd.f32 %v928, %v914
  %v930 = vadd.f32 %v929, %v915
  %v931 = vadd.f32 %v930, %v916
  %v932 = vadd.f32 %v931, %v917
  %v933 = vadd.f32 %v932, %v918
  %v934 = vadd.f32 %v933, %v919
  %v935 = vadd.f32 %v934, %v920
  %v936 = vadd.f32 %v935, %v921
  %v937 = vadd.f32 %v936, %v922
  %v938 = vadd.f32 %v937, %v923
  %v939 = vadd.f32 %v938, %v924
  %v940 = vadd.f32 %v939, %v925
  %v941 = vadd.f32 %v940, %v926
  %v942 = vrot.slane %v941, 4
  %v943 = vadd.f32 %v941, %v942
  %v944 = vrot.slane %v943, 2
  %v945 = vadd.f32 %v943, %v944
  %v946 = vrot.slane %v945, 1
  %v947 = vadd.f32 %v945, %v946
  %v948 = vmul.f32 %v947, %v893
  %v949 = vadd.f32 %v948, 1e-05
  %v950 = vrsqrt.pop %v949
  %v951 = vmul.f32 %v870, %v950
  %v952 = vmul.f32 %v894, %v951
  %v953 = vsub.f32 %v871, %v952
  %v955 = vlaneseq
  %v956 = vshrl.u32 %v955, 7
  %v957 = vsub.s32 0, %v956
  %v958 = vrot.slane %v951, %v957
  %v960 = vmul.f32 %v808, %v958
  %v961 = vmul.f32 %v811, %v958
  %v962 = vmul.f32 %v816, %v958
  %v963 = vmul.f32 %v819, %v958
  %v964 = vmul.f32 %v824, %v958
  %v965 = vmul.f32 %v827, %v958
  %v966 = vmul.f32 %v832, %v958
  %v967 = vmul.f32 %v835, %v958
  %v968 = vmul.f32 %v840, %v958
  %v969 = vmul.f32 %v843, %v958
  %v970 = vmul.f32 %v848, %v958
  %v971 = vmul.f32 %v851, %v958
  %v972 = vmul.f32 %v856, %v958
  %v973 = vmul.f32 %v859, %v958
  %v974 = vmul.f32 %v864, %v958
  %v975 = vmul.f32 %v867, %v958
  %v977 = vlaneseq
  %v978 = vshrl.u32 %v977, 7
  %v979 = vsub.s32 0, %v978
  %v980 = vrot.slane %v953, %v979
  %v982 = vadd.f32 %v960, %v980
  %v983 = vadd.f32 %v961, %v980
  %v984 = vadd.f32 %v962, %v980
  %v985 = vadd.f32 %v963, %v980
  %v986 = vadd.f32 %v964, %v980
  %v987 = vadd.f32 %v965, %v980
  %v988 = vadd.f32 %v966, %v980
  %v989 = vadd.f32 %v967, %v980
  %v990 = vadd.f32 %v968, %v980
  %v991 = vadd.f32 %v969, %v980
  %v992 = vadd.f32 %v970, %v980
  %v993 = vadd.f32 %v971, %v980
  %v994 = vadd.f32 %v972, %v980
  %v995 = vadd.f32 %v973, %v980
  %v996 = vadd.f32 %v974, %v980
  %v997 = vadd.f32 %v975, %v980
  %v998 = vmax.f32 %v982, 0.0
  %v999 = vmax.f32 %v983, 0.0
  %v1000 = vmax.f32 %v984, 0.0
  %v1001 = vmax.f32 %v985, 0.0
  %v1002 = vmax.f32 %v986, 0.0
  %v1003 = vmax.f32 %v987, 0.0
  %v1004 = vmax.f32 %v988, 0.0
  %v1005 = vmax.f32 %v989, 0.0
  %v1006 = vmax.f32 %v990, 0.0
  %v1007 = vmax.f32 %v991, 0.0
  %v1008 = vmax.f32 %v992, 0.0
  %v1009 = vmax.f32 %v993, 0.0
  %v1010 = vmax.f32 %v994, 0.0
  %v1011 = vmax.f32 %v995, 0.0
  %v1012 = vmax.f32 %v996, 0.0
  %v1013 = vmax.f32 %v997, 0.0
  %v1014 = vmax.f32 %v998, %v1002
  %v1015 = vmax.f32 %v999, %v1003
  %v1016 = vmax.f32 %v1000, %v1004
  %v1017 = vmax.f32 %v1001, %v1005
  %v1018 = vmax.f32 %v1006, %v1010
  %v1019 = vmax.f32 %v1007, %v1011
  %v1020 = vmax.f32 %v1008, %v1012
  %v1021 = vmax.f32 %v1009, %v1013
  %v1022 = vmax.f32 %v1014, %v1018
  %v1023 = vmax.f32 %v1015, %v1019
  %v1024 = vmax.f32 %v1016, %v1020
  %v1025 = vmax.f32 %v1017, %v1021
  %1026 = vst [vmem:[%s4] sm:$0xff] %v1022
  %1027 = vst [vmem:[%s4 + $0x8] sm:$0xff] %v1023
  %1028 = vst [vmem:[%s4 + $0x10] sm:$0xff] %v1024
  %1029 = vst [vmem:[%s4 + $0x18] sm:$0xff] %v1025
  // Predicated region
  $region18: #{discriminator_forward.5} parent=0 // pred_check
    _
  $region19: #{discriminator_forward.5} parent=0 // pred_check_branch
    %1031 = sbr.rel (0) target = $region21
  $region20: #{discriminator_forward.5} parent=0 // pred_region
    _
  $region21: #{discriminator_forward.5} parent=0 // pred_fallthru
    _
  // Predicated region
  $region22: #{discriminator_forward.5} parent=0 // pred_check
    _
  $region23: #{discriminator_forward.5} parent=0 // pred_check_branch
    %1033 = sbr.rel (0) target = $region25
  $region24: #{discriminator_forward.5} parent=0 // pred_region
    _
  $region25: #{discriminator_forward.5} parent=0 // pred_fallthru
    _

// kernel: discriminator_forward.7
$region0: #{discriminator_forward.7}
  #allocation0 [shape = 'u32[]', space=smem, size = 0x4, offset = 0x4, fixed_abs, tag = 'smem constant byte address 0x4 - core index']
  #allocation1 [shape = 'u32[144,128]{1,0:T(1,128)}', space=vmem, size = 0x12000, scoped, tag = 'internal scratch']
  #allocation2 [shape = 'f32[1,1]{1,0:T(1,128)S(1)}', space=vmem, size = 0x200, scoped, tag = 'scoped memory for discriminator_forward.7']
  %s0 = inlined_call_operand.vmem [shape: f32[32,64], index: 0, kind: input, shape index: {}]
  %s1 = inlined_call_operand.vmem [shape: f32[1,64], index: 1, kind: input, shape index: {}]
  %s2 = inlined_call_operand.<no memory space> [shape: f32[1,1], index: 2, kind: input, shape index: {}]
  %s3 = inlined_call_operand.vmem [shape: f32[2,1], index: 3, kind: output, shape index: {}]
  %s4 = sld [smem:[#allocation0]]
  $region22: #{discriminator_forward.7} parent=0
    _
  %s6 = ssub.s32 1, %s4
  %s7 = scalar_select 0, %s6, %s4
  %v8 = vstv %s2
  %9 = vst [vmem:[#allocation2] sm:$0x1] %v8
  // Predicated region
  $region2: #{discriminator_forward.7} parent=0 // pred_check
    _
  $region3: #{discriminator_forward.7} parent=0 // pred_check_branch
    %11 = sbr.rel (0) target = $region5
  $region4: #{discriminator_forward.7} parent=0 // pred_region
    _
  $region5: #{discriminator_forward.7} parent=0 // pred_fallthru
    _
  // Predicated region
  $region6: #{discriminator_forward.7} parent=0 // pred_check
    _
  $region7: #{discriminator_forward.7} parent=0 // pred_check_branch
    %13 = sbr.rel (0) target = $region9
  $region8: #{discriminator_forward.7} parent=0 // pred_region
    _
  $region9: #{discriminator_forward.7} parent=0 // pred_fallthru
    _
  // Predicated region
  $region10: #{discriminator_forward.7} parent=0 // pred_check
    _
  $region11: #{discriminator_forward.7} parent=0 // pred_check_branch
    %15 = sbr.rel (0) target = $region13
  $region12: #{discriminator_forward.7} parent=0 // pred_region
    _
  $region13: #{discriminator_forward.7} parent=0 // pred_fallthru
    _
  %v16 = vld [vmem:[%s0] sm:$0xff]
  %v17 = vld [vmem:[%s0 + $0x8] sm:$0xff]
  %v18 = vld [vmem:[%s0 + $0x10] sm:$0xff]
  %v19 = vld [vmem:[%s0 + $0x18] sm:$0xff]
  %v20 = vld [vmem:[%s1] sm:$0x1]
  %v22 = vlaneseq
  %v23 = vshrl.u32 %v22, 7
  %v24 = vsub.s32 0, %v23
  %v25 = vrot.slane %v20, %v24
  %v27 = vmul.f32 %v16, %v25
  %v28 = vmul.f32 %v17, %v25
  %v29 = vmul.f32 %v18, %v25
  %v30 = vmul.f32 %v19, %v25
  %vm31 = vcmask 523264
  %v32 = vsel %vm31, %v27, 0.0
  %33 = vadd.xlane.f32.xlu0 %v32
  %v34 = vpop.xlane.xlu0 %33
  %v35 = vsel %vm31, %v28, 0.0
  %36 = vadd.xlane.f32.xlu0 %v35
  %v37 = vpop.xlane.xlu0 %36
  %v38 = vsel %vm31, %v29, 0.0
  %39 = vadd.xlane.f32.xlu0 %v38
  %v40 = vpop.xlane.xlu0 %39
  %v41 = vsel %vm31, %v30, 0.0
  %42 = vadd.xlane.f32.xlu0 %v41
  %v43 = vpop.xlane.xlu0 %42
  %v44 = vld [vmem:[#allocation2] sm:$0x1]
  %v46 = vlaneseq
  %v47 = vshrl.u32 %v46, 7
  %v48 = vsub.s32 0, %v47
  %v49 = vrot.slane %v44, %v48
  %v51 = vadd.f32 %v34, %v49
  %v52 = vadd.f32 %v37, %v49
  %v53 = vadd.f32 %v40, %v49
  %v54 = vadd.f32 %v43, %v49
  %v55 = vmin.f32 %v51, 0.0
  %v56 = vmin.f32 %v52, 0.0
  %v57 = vmin.f32 %v53, 0.0
  %v58 = vmin.f32 %v54, 0.0
  %v59 = vand.u32 2147483647, %v51
  %v60 = vand.u32 2147483647, %v52
  %v61 = vand.u32 2147483647, %v53
  %v62 = vand.u32 2147483647, %v54
  %v63 = vsub.f32 0.0, %v59
  %v64 = vsub.f32 0.0, %v60
  %v65 = vsub.f32 0.0, %v61
  %v66 = vsub.f32 0.0, %v62
  %v67 = vmul.f32 %v63, 1.442695
  %v68 = vpow.pop %v67
  %v69 = vmul.f32 %v64, 1.442695
  %v70 = vpow.pop %v69
  %v71 = vmul.f32 %v65, 1.442695
  %v72 = vpow.pop %v71
  %v73 = vmul.f32 %v66, 1.442695
  %v74 = vpow.pop %v73
  %v75 = vadd.f32 %v68, 1.0
  %v76 = vadd.f32 %v70, 1.0
  %v77 = vadd.f32 %v72, 1.0
  %v78 = vadd.f32 %v74, 1.0
  %v79 = vlog2.pop %v75
  %v80 = vmul.f32 %v79, 0.6931472
  %v81 = vlog2.pop %v76
  %v82 = vmul.f32 %v81, 0.6931472
  %v83 = vlog2.pop %v77
  %v84 = vmul.f32 %v83, 0.6931472
  %v85 = vlog2.pop %v78
  %v86 = vmul.f32 %v85, 0.6931472
  %v87 = vsub.f32 %v55, %v80
  %v88 = vsub.f32 %v56, %v82
  %v89 = vsub.f32 %v57, %v84
  %v90 = vsub.f32 %v58, %v86
  %vm91 = vcmask 7168
  %v92 = vsel %vm91, %v87, 0.0
  %v93 = vsel %vm91, %v88, 0.0
  %v94 = vadd.f32 %v92, %v93
  %v95 = vrot.slane %v94, 4
  %v96 = vadd.f32 %v94, %v95
  %v97 = vrot.slane %v96, 2
  %v98 = vadd.f32 %v96, %v97
  %v99 = vrot.slane %v98, 1
  %v100 = vadd.f32 %v98, %v99
  %v101 = vrcp.pop 16.0
  %v102 = vmul.f32 %v100, %v101
  %vm103 = vcmask 0
  %104 = vst.msk [vmem:[%s3] sm:$0x1] %vm103, %v102
  %v105 = vsel %vm91, %v89, 0.0
  %v106 = vsel %vm91, %v90, 0.0
  %v107 = vadd.f32 %v105, %v106
  %v108 = vrot.slane %v107, 4
  %v109 = vadd.f32 %v107, %v108
  %v110 = vrot.slane %v109, 2
  %v111 = vadd.f32 %v109, %v110
  %v112 = vrot.slane %v111, 1
  %v113 = vadd.f32 %v111, %v112
  %v114 = vmul.f32 %v113, %v101
  %115 = vst.msk [vmem:[%s3 + $0x1] sm:$0x1] %vm103, %v114
  // Predicated region
  $region14: #{discriminator_forward.7} parent=0 // pred_check
    _
  $region15: #{discriminator_forward.7} parent=0 // pred_check_branch
    %117 = sbr.rel (0) target = $region17
  $region16: #{discriminator_forward.7} parent=0 // pred_region
    _
  $region17: #{discriminator_forward.7} parent=0 // pred_fallthru
    _
  // Predicated region
  $region18: #{discriminator_forward.7} parent=0 // pred_check
    _
  $region19: #{discriminator_forward.7} parent=0 // pred_check_branch
    %119 = sbr.rel (0) target = $region21
  $region20: #{discriminator_forward.7} parent=0 // pred_region
    _
  $region21: #{discriminator_forward.7} parent=0 // pred_fallthru
    _

// kernel: discriminator_forward.6
$region0: #{discriminator_forward.6}
  #allocation0 [shape = 'u32[]', space=smem, size = 0x4, offset = 0x4, fixed_abs, tag = 'smem constant byte address 0x4 - core index']
  #allocation1 [shape = 'u32[144,128]{1,0:T(1,128)}', space=vmem, size = 0x12000, scoped, tag = 'internal scratch']
  %s0 = inlined_call_operand.vmem [shape: bf16[32,1152], index: 0, kind: input, shape index: {}]
  %s1 = inlined_call_operand.vmem [shape: bf16[1152,64], index: 1, kind: input, shape index: {}]
  %s2 = inlined_call_operand.vmem [shape: f32[1,64], index: 2, kind: input, shape index: {}]
  %s3 = inlined_call_operand.vmem [shape: f32[1,64], index: 3, kind: input, shape index: {}]
  %s4 = inlined_call_operand.vmem [shape: f32[32,64], index: 4, kind: output, shape index: {}]
  %s5 = sld [smem:[#allocation0]]
  $region26: #{discriminator_forward.6} parent=0
    _
  %s7 = ssub.s32 1, %s5
  %s8 = scalar_select 0, %s7, %s5
  // Predicated region
  $region2: #{discriminator_forward.6} parent=0 // pred_check
    _
  $region3: #{discriminator_forward.6} parent=0 // pred_check_branch
    %10 = sbr.rel (0) target = $region5
  $region4: #{discriminator_forward.6} parent=0 // pred_region
    _
  $region5: #{discriminator_forward.6} parent=0 // pred_fallthru
    _
  // Predicated region
  $region6: #{discriminator_forward.6} parent=0 // pred_check
    _
  $region7: #{discriminator_forward.6} parent=0 // pred_check_branch
    %12 = sbr.rel (0) target = $region9
  $region8: #{discriminator_forward.6} parent=0 // pred_region
    _
  $region9: #{discriminator_forward.6} parent=0 // pred_fallthru
    _
  // Predicated region
  $region10: #{discriminator_forward.6} parent=0 // pred_check
    _
  $region11: #{discriminator_forward.6} parent=0 // pred_check_branch
    %14 = sbr.rel (0) target = $region13
  $region12: #{discriminator_forward.6} parent=0 // pred_region
    _
  $region13: #{discriminator_forward.6} parent=0 // pred_fallthru
    _
  // Predicated region
  $region14: #{discriminator_forward.6} parent=0 // pred_check
    _
  $region15: #{discriminator_forward.6} parent=0 // pred_check_branch
    %16 = sbr.rel (0) target = $region17
  $region16: #{discriminator_forward.6} parent=0 // pred_region
    _
  $region17: #{discriminator_forward.6} parent=0 // pred_fallthru
    _
  %v18 = vld [vmem:[%s0] sm:$0xff]
  %v19 = vld [vmem:[%s0 + $0x8] sm:$0xff]
  %v20 = vld [vmem:[%s0 + $0x10] sm:$0xff]
  %v21 = vld [vmem:[%s0 + $0x18] sm:$0xff]
  %v22 = vld [vmem:[%s0 + $0x20] sm:$0xf]
  %v23 = vld [vmem:[%s0 + $0x24] sm:$0xff]
  %v24 = vld [vmem:[%s0 + $0x2c] sm:$0xff]
  %v25 = vld [vmem:[%s0 + $0x34] sm:$0xff]
  %v26 = vld [vmem:[%s0 + $0x3c] sm:$0xff]
  %v27 = vld [vmem:[%s0 + $0x44] sm:$0xf]
  %v28 = vld [vmem:[%s0 + $0x48] sm:$0xff]
  %v29 = vld [vmem:[%s0 + $0x50] sm:$0xff]
  %v30 = vld [vmem:[%s0 + $0x58] sm:$0xff]
  %v31 = vld [vmem:[%s0 + $0x60] sm:$0xff]
  %v32 = vld [vmem:[%s0 + $0x68] sm:$0xf]
  %v33 = vld [vmem:[%s0 + $0x6c] sm:$0xff]
  %v34 = vld [vmem:[%s0 + $0x74] sm:$0xff]
  %v35 = vld [vmem:[%s0 + $0x7c] sm:$0xff]
  %v36 = vld [vmem:[%s0 + $0x84] sm:$0xff]
  %v37 = vld [vmem:[%s0 + $0x8c] sm:$0xf]
  %v38 = vld [vmem:[%s1] sm:$0xf]
  %v39 = vld [vmem:[%s1 + $0x4] sm:$0xf]
  %v40 = vld [vmem:[%s1 + $0x8] sm:$0xf]
  %v41 = vld [vmem:[%s1 + $0xc] sm:$0xf]
  %v42 = vld [vmem:[%s1 + $0x10] sm:$0xf]
  %v43 = vld [vmem:[%s1 + $0x14] sm:$0xf]
  %v44 = vld [vmem:[%s1 + $0x18] sm:$0xf]
  %v45 = vld [vmem:[%s1 + $0x1c] sm:$0xf]
  %v46 = vld [vmem:[%s1 + $0x20] sm:$0xf]
  %v47 = vld [vmem:[%s1 + $0x24] sm:$0xf]
  %v48 = vld [vmem:[%s1 + $0x28] sm:$0xf]
  %v49 = vld [vmem:[%s1 + $0x2c] sm:$0xf]
  %v50 = vld [vmem:[%s1 + $0x30] sm:$0xf]
  %v51 = vld [vmem:[%s1 + $0x34] sm:$0xf]
  %v52 = vld [vmem:[%s1 + $0x38] sm:$0xf]
  %v53 = vld [vmem:[%s1 + $0x3c] sm:$0xf]
  %v54 = vld [vmem:[%s1 + $0x40] sm:$0xf]
  %v55 = vld [vmem:[%s1 + $0x44] sm:$0xf]
  %v56 = vld [vmem:[%s1 + $0x48] sm:$0xf]
  %v57 = vld [vmem:[%s1 + $0x4c] sm:$0xf]
  %v58 = vld [vmem:[%s1 + $0x50] sm:$0xf]
  %v59 = vld [vmem:[%s1 + $0x54] sm:$0xf]
  %v60 = vld [vmem:[%s1 + $0x58] sm:$0xf]
  %v61 = vld [vmem:[%s1 + $0x5c] sm:$0xf]
  %v62 = vld [vmem:[%s1 + $0x60] sm:$0xf]
  %v63 = vld [vmem:[%s1 + $0x64] sm:$0xf]
  %v64 = vld [vmem:[%s1 + $0x68] sm:$0xf]
  %v65 = vld [vmem:[%s1 + $0x6c] sm:$0xf]
  %v66 = vld [vmem:[%s1 + $0x70] sm:$0xf]
  %v67 = vld [vmem:[%s1 + $0x74] sm:$0xf]
  %v68 = vld [vmem:[%s1 + $0x78] sm:$0xf]
  %v69 = vld [vmem:[%s1 + $0x7c] sm:$0xf]
  %v70 = vld [vmem:[%s1 + $0x80] sm:$0xf]
  %v71 = vld [vmem:[%s1 + $0x84] sm:$0xf]
  %v72 = vld [vmem:[%s1 + $0x88] sm:$0xf]
  %v73 = vld [vmem:[%s1 + $0x8c] sm:$0xf]
  %v74 = vld [vmem:[%s1 + $0x90] sm:$0xf]
  %v75 = vld [vmem:[%s1 + $0x94] sm:$0xf]
  %v76 = vld [vmem:[%s1 + $0x98] sm:$0xf]
  %v77 = vld [vmem:[%s1 + $0x9c] sm:$0xf]
  %v78 = vld [vmem:[%s1 + $0xa0] sm:$0xf]
  %v79 = vld [vmem:[%s1 + $0xa4] sm:$0xf]
  %v80 = vld [vmem:[%s1 + $0xa8] sm:$0xf]
  %v81 = vld [vmem:[%s1 + $0xac] sm:$0xf]
  %v82 = vld [vmem:[%s1 + $0xb0] sm:$0xf]
  %v83 = vld [vmem:[%s1 + $0xb4] sm:$0xf]
  %v84 = vld [vmem:[%s1 + $0xb8] sm:$0xf]
  %v85 = vld [vmem:[%s1 + $0xbc] sm:$0xf]
  %v86 = vld [vmem:[%s1 + $0xc0] sm:$0xf]
  %v87 = vld [vmem:[%s1 + $0xc4] sm:$0xf]
  %v88 = vld [vmem:[%s1 + $0xc8] sm:$0xf]
  %v89 = vld [vmem:[%s1 + $0xcc] sm:$0xf]
  %v90 = vld [vmem:[%s1 + $0xd0] sm:$0xf]
  %v91 = vld [vmem:[%s1 + $0xd4] sm:$0xf]
  %v92 = vld [vmem:[%s1 + $0xd8] sm:$0xf]
  %v93 = vld [vmem:[%s1 + $0xdc] sm:$0xf]
  %v94 = vld [vmem:[%s1 + $0xe0] sm:$0xf]
  %v95 = vld [vmem:[%s1 + $0xe4] sm:$0xf]
  %v96 = vld [vmem:[%s1 + $0xe8] sm:$0xf]
  %v97 = vld [vmem:[%s1 + $0xec] sm:$0xf]
  %v98 = vld [vmem:[%s1 + $0xf0] sm:$0xf]
  %v99 = vld [vmem:[%s1 + $0xf4] sm:$0xf]
  %v100 = vld [vmem:[%s1 + $0xf8] sm:$0xf]
  %v101 = vld [vmem:[%s1 + $0xfc] sm:$0xf]
  %v102 = vld [vmem:[%s1 + $0x100] sm:$0xf]
  %v103 = vld [vmem:[%s1 + $0x104] sm:$0xf]
  %v104 = vld [vmem:[%s1 + $0x108] sm:$0xf]
  %v105 = vld [vmem:[%s1 + $0x10c] sm:$0xf]
  %v106 = vld [vmem:[%s1 + $0x110] sm:$0xf]
  %v107 = vld [vmem:[%s1 + $0x114] sm:$0xf]
  %v108 = vld [vmem:[%s1 + $0x118] sm:$0xf]
  %v109 = vld [vmem:[%s1 + $0x11c] sm:$0xf]
  %v110 = vld [vmem:[%s1 + $0x120] sm:$0xf]
  %v111 = vld [vmem:[%s1 + $0x124] sm:$0xf]
  %v112 = vld [vmem:[%s1 + $0x128] sm:$0xf]
  %v113 = vld [vmem:[%s1 + $0x12c] sm:$0xf]
  %v114 = vld [vmem:[%s1 + $0x130] sm:$0xf]
  %v115 = vld [vmem:[%s1 + $0x134] sm:$0xf]
  %v116 = vld [vmem:[%s1 + $0x138] sm:$0xf]
  %v117 = vld [vmem:[%s1 + $0x13c] sm:$0xf]
  %v118 = vld [vmem:[%s1 + $0x140] sm:$0xf]
  %v119 = vld [vmem:[%s1 + $0x144] sm:$0xf]
  %v120 = vld [vmem:[%s1 + $0x148] sm:$0xf]
  %v121 = vld [vmem:[%s1 + $0x14c] sm:$0xf]
  %v122 = vld [vmem:[%s1 + $0x150] sm:$0xf]
  %v123 = vld [vmem:[%s1 + $0x154] sm:$0xf]
  %v124 = vld [vmem:[%s1 + $0x158] sm:$0xf]
  %v125 = vld [vmem:[%s1 + $0x15c] sm:$0xf]
  %v126 = vld [vmem:[%s1 + $0x160] sm:$0xf]
  %v127 = vld [vmem:[%s1 + $0x164] sm:$0xf]
  %v128 = vld [vmem:[%s1 + $0x168] sm:$0xf]
  %v129 = vld [vmem:[%s1 + $0x16c] sm:$0xf]
  %v130 = vld [vmem:[%s1 + $0x170] sm:$0xf]
  %v131 = vld [vmem:[%s1 + $0x174] sm:$0xf]
  %v132 = vld [vmem:[%s1 + $0x178] sm:$0xf]
  %v133 = vld [vmem:[%s1 + $0x17c] sm:$0xf]
  %v134 = vld [vmem:[%s1 + $0x180] sm:$0xf]
  %v135 = vld [vmem:[%s1 + $0x184] sm:$0xf]
  %v136 = vld [vmem:[%s1 + $0x188] sm:$0xf]
  %v137 = vld [vmem:[%s1 + $0x18c] sm:$0xf]
  %v138 = vld [vmem:[%s1 + $0x190] sm:$0xf]
  %v139 = vld [vmem:[%s1 + $0x194] sm:$0xf]
  %v140 = vld [vmem:[%s1 + $0x198] sm:$0xf]
  %v141 = vld [vmem:[%s1 + $0x19c] sm:$0xf]
  %v142 = vld [vmem:[%s1 + $0x1a0] sm:$0xf]
  %v143 = vld [vmem:[%s1 + $0x1a4] sm:$0xf]
  %v144 = vld [vmem:[%s1 + $0x1a8] sm:$0xf]
  %v145 = vld [vmem:[%s1 + $0x1ac] sm:$0xf]
  %v146 = vld [vmem:[%s1 + $0x1b0] sm:$0xf]
  %v147 = vld [vmem:[%s1 + $0x1b4] sm:$0xf]
  %v148 = vld [vmem:[%s1 + $0x1b8] sm:$0xf]
  %v149 = vld [vmem:[%s1 + $0x1bc] sm:$0xf]
  %v150 = vld [vmem:[%s1 + $0x1c0] sm:$0xf]
  %v151 = vld [vmem:[%s1 + $0x1c4] sm:$0xf]
  %v152 = vld [vmem:[%s1 + $0x1c8] sm:$0xf]
  %v153 = vld [vmem:[%s1 + $0x1cc] sm:$0xf]
  %v154 = vld [vmem:[%s1 + $0x1d0] sm:$0xf]
  %v155 = vld [vmem:[%s1 + $0x1d4] sm:$0xf]
  %v156 = vld [vmem:[%s1 + $0x1d8] sm:$0xf]
  %v157 = vld [vmem:[%s1 + $0x1dc] sm:$0xf]
  %v158 = vld [vmem:[%s1 + $0x1e0] sm:$0xf]
  %v159 = vld [vmem:[%s1 + $0x1e4] sm:$0xf]
  %v160 = vld [vmem:[%s1 + $0x1e8] sm:$0xf]
  %v161 = vld [vmem:[%s1 + $0x1ec] sm:$0xf]
  %v162 = vld [vmem:[%s1 + $0x1f0] sm:$0xf]
  %v163 = vld [vmem:[%s1 + $0x1f4] sm:$0xf]
  %v164 = vld [vmem:[%s1 + $0x1f8] sm:$0xf]
  %v165 = vld [vmem:[%s1 + $0x1fc] sm:$0xf]
  %v166 = vld [vmem:[%s1 + $0x200] sm:$0xf]
  %v167 = vld [vmem:[%s1 + $0x204] sm:$0xf]
  %v168 = vld [vmem:[%s1 + $0x208] sm:$0xf]
  %v169 = vld [vmem:[%s1 + $0x20c] sm:$0xf]
  %v170 = vld [vmem:[%s1 + $0x210] sm:$0xf]
  %v171 = vld [vmem:[%s1 + $0x214] sm:$0xf]
  %v172 = vld [vmem:[%s1 + $0x218] sm:$0xf]
  %v173 = vld [vmem:[%s1 + $0x21c] sm:$0xf]
  %v174 = vld [vmem:[%s1 + $0x220] sm:$0xf]
  %v175 = vld [vmem:[%s1 + $0x224] sm:$0xf]
  %v176 = vld [vmem:[%s1 + $0x228] sm:$0xf]
  %v177 = vld [vmem:[%s1 + $0x22c] sm:$0xf]
  %v178 = vld [vmem:[%s1 + $0x230] sm:$0xf]
  %v179 = vld [vmem:[%s1 + $0x234] sm:$0xf]
  %v180 = vld [vmem:[%s1 + $0x238] sm:$0xf]
  %v181 = vld [vmem:[%s1 + $0x23c] sm:$0xf]
  %v202 = vunpack.c.l.b16 %v18
  %v203 = vunpack.c.h.b16 %v18
  %v204 = vunpack.c.l.b16 %v19
  %v205 = vunpack.c.h.b16 %v19
  %v206 = vunpack.c.l.b16 %v20
  %v207 = vunpack.c.h.b16 %v20
  %v208 = vunpack.c.l.b16 %v21
  %v209 = vunpack.c.h.b16 %v21
  %v210 = vunpack.c.l.b16 %v22
  %v211 = vunpack.c.l.b16 %v23
  %v212 = vunpack.c.h.b16 %v23
  %v213 = vunpack.c.l.b16 %v24
  %v214 = vunpack.c.h.b16 %v24
  %v215 = vunpack.c.l.b16 %v25
  %v216 = vunpack.c.h.b16 %v25
  %v217 = vunpack.c.l.b16 %v26
  %v218 = vunpack.c.h.b16 %v26
  %v219 = vunpack.c.l.b16 %v27
  %v220 = vunpack.c.l.b16 %v28
  %v221 = vunpack.c.h.b16 %v28
  %v222 = vunpack.c.l.b16 %v29
  %v223 = vunpack.c.h.b16 %v29
  %v224 = vunpack.c.l.b16 %v30
  %v225 = vunpack.c.h.b16 %v30
  %v226 = vunpack.c.l.b16 %v31
  %v227 = vunpack.c.h.b16 %v31
  %v228 = vunpack.c.l.b16 %v32
  %v229 = vunpack.c.l.b16 %v33
  %v230 = vunpack.c.h.b16 %v33
  %v231 = vunpack.c.l.b16 %v34
  %v232 = vunpack.c.h.b16 %v34
  %v233 = vunpack.c.l.b16 %v35
  %v234 = vunpack.c.h.b16 %v35
  %v235 = vunpack.c.l.b16 %v36
  %v236 = vunpack.c.h.b16 %v36
  %v237 = vunpack.c.l.b16 %v37
  %v238 = vpack.c.b16 %v211, %v202
  %v239 = vpack.c.b16 %v212, %v203
  %v240 = vpack.c.b16 %v213, %v204
  %v241 = vpack.c.b16 %v214, %v205
  %v242 = vpack.c.b16 %v215, %v206
  %v243 = vpack.c.b16 %v216, %v207
  %v244 = vpack.c.b16 %v217, %v208
  %v245 = vpack.c.b16 %v218, %v209
  %v246 = vpack.c.b16 %v219, %v210
  %v247 = vpack.c.b16 %v229, %v220
  %v248 = vpack.c.b16 %v230, %v221
  %v249 = vpack.c.b16 %v231, %v222
  %v250 = vpack.c.b16 %v232, %v223
  %v251 = vpack.c.b16 %v233, %v224
  %v252 = vpack.c.b16 %v234, %v225
  %v253 = vpack.c.b16 %v235, %v226
  %v254 = vpack.c.b16 %v236, %v227
  %v255 = vpack.c.b16 %v237, %v228
  %v418 = vunpack.c.l.b16 %v38
  %v419 = vunpack.c.l.b16 %v39
  %v420 = vunpack.c.l.b16 %v40
  %v421 = vunpack.c.l.b16 %v41
  %v422 = vunpack.c.l.b16 %v42
  %v423 = vunpack.c.l.b16 %v43
  %v424 = vunpack.c.l.b16 %v44
  %v425 = vunpack.c.l.b16 %v45
  %v426 = vunpack.c.l.b16 %v46
  %v427 = vunpack.c.l.b16 %v47
  %v428 = vunpack.c.l.b16 %v48
  %v429 = vunpack.c.l.b16 %v49
  %v430 = vunpack.c.l.b16 %v50
  %v431 = vunpack.c.l.b16 %v51
  %v432 = vunpack.c.l.b16 %v52
  %v433 = vunpack.c.l.b16 %v53
  %v434 = vunpack.c.l.b16 %v54
  %v435 = vunpack.c.l.b16 %v55
  %v436 = vunpack.c.l.b16 %v56
  %v437 = vunpack.c.l.b16 %v57
  %v438 = vunpack.c.l.b16 %v58
  %v439 = vunpack.c.l.b16 %v59
  %v440 = vunpack.c.l.b16 %v60
  %v441 = vunpack.c.l.b16 %v61
  %v442 = vunpack.c.l.b16 %v62
  %v443 = vunpack.c.l.b16 %v63
  %v444 = vunpack.c.l.b16 %v64
  %v445 = vunpack.c.l.b16 %v65
  %v446 = vunpack.c.l.b16 %v66
  %v447 = vunpack.c.l.b16 %v67
  %v448 = vunpack.c.l.b16 %v68
  %v449 = vunpack.c.l.b16 %v69
  %v450 = vunpack.c.l.b16 %v70
  %v451 = vunpack.c.l.b16 %v71
  %v452 = vunpack.c.l.b16 %v72
  %v453 = vunpack.c.l.b16 %v73
  %v454 = vunpack.c.l.b16 %v74
  %v455 = vunpack.c.l.b16 %v75
  %v456 = vunpack.c.l.b16 %v76
  %v457 = vunpack.c.l.b16 %v77
  %v458 = vunpack.c.l.b16 %v78
  %v459 = vunpack.c.l.b16 %v79
  %v460 = vunpack.c.l.b16 %v80
  %v461 = vunpack.c.l.b16 %v81
  %v462 = vunpack.c.l.b16 %v82
  %v463 = vunpack.c.l.b16 %v83
  %v464 = vunpack.c.l.b16 %v84
  %v465 = vunpack.c.l.b16 %v85
  %v466 = vunpack.c.l.b16 %v86
  %v467 = vunpack.c.l.b16 %v87
  %v468 = vunpack.c.l.b16 %v88
  %v469 = vunpack.c.l.b16 %v89
  %v470 = vunpack.c.l.b16 %v90
  %v471 = vunpack.c.l.b16 %v91
  %v472 = vunpack.c.l.b16 %v92
  %v473 = vunpack.c.l.b16 %v93
  %v474 = vunpack.c.l.b16 %v94
  %v475 = vunpack.c.l.b16 %v95
  %v476 = vunpack.c.l.b16 %v96
  %v477 = vunpack.c.l.b16 %v97
  %v478 = vunpack.c.l.b16 %v98
  %v479 = vunpack.c.l.b16 %v99
  %v480 = vunpack.c.l.b16 %v100
  %v481 = vunpack.c.l.b16 %v101
  %v482 = vunpack.c.l.b16 %v102
  %v483 = vunpack.c.l.b16 %v103
  %v484 = vunpack.c.l.b16 %v104
  %v485 = vunpack.c.l.b16 %v105
  %v486 = vunpack.c.l.b16 %v106
  %v487 = vunpack.c.l.b16 %v107
  %v488 = vunpack.c.l.b16 %v108
  %v489 = vunpack.c.l.b16 %v109
  %v490 = vunpack.c.l.b16 %v110
  %v491 = vunpack.c.l.b16 %v111
  %v492 = vunpack.c.l.b16 %v112
  %v493 = vunpack.c.l.b16 %v113
  %v494 = vunpack.c.l.b16 %v114
  %v495 = vunpack.c.l.b16 %v115
  %v496 = vunpack.c.l.b16 %v116
  %v497 = vunpack.c.l.b16 %v117
  %v498 = vunpack.c.l.b16 %v118
  %v499 = vunpack.c.l.b16 %v119
  %v500 = vunpack.c.l.b16 %v120
  %v501 = vunpack.c.l.b16 %v121
  %v502 = vunpack.c.l.b16 %v122
  %v503 = vunpack.c.l.b16 %v123
  %v504 = vunpack.c.l.b16 %v124
  %v505 = vunpack.c.l.b16 %v125
  %v506 = vunpack.c.l.b16 %v126
  %v507 = vunpack.c.l.b16 %v127
  %v508 = vunpack.c.l.b16 %v128
  %v509 = vunpack.c.l.b16 %v129
  %v510 = vunpack.c.l.b16 %v130
  %v511 = vunpack.c.l.b16 %v131
  %v512 = vunpack.c.l.b16 %v132
  %v513 = vunpack.c.l.b16 %v133
  %v514 = vunpack.c.l.b16 %v134
  %v515 = vunpack.c.l.b16 %v135
  %v516 = vunpack.c.l.b16 %v136
  %v517 = vunpack.c.l.b16 %v137
  %v518 = vunpack.c.l.b16 %v138
  %v519 = vunpack.c.l.b16 %v139
  %v520 = vunpack.c.l.b16 %v140
  %v521 = vunpack.c.l.b16 %v141
  %v522 = vunpack.c.l.b16 %v142
  %v523 = vunpack.c.l.b16 %v143
  %v524 = vunpack.c.l.b16 %v144
  %v525 = vunpack.c.l.b16 %v145
  %v526 = vunpack.c.l.b16 %v146
  %v527 = vunpack.c.l.b16 %v147
  %v528 = vunpack.c.l.b16 %v148
  %v529 = vunpack.c.l.b16 %v149
  %v530 = vunpack.c.l.b16 %v150
  %v531 = vunpack.c.l.b16 %v151
  %v532 = vunpack.c.l.b16 %v152
  %v533 = vunpack.c.l.b16 %v153
  %v534 = vunpack.c.l.b16 %v154
  %v535 = vunpack.c.l.b16 %v155
  %v536 = vunpack.c.l.b16 %v156
  %v537 = vunpack.c.l.b16 %v157
  %v538 = vunpack.c.l.b16 %v158
  %v539 = vunpack.c.l.b16 %v159
  %v540 = vunpack.c.l.b16 %v160
  %v541 = vunpack.c.l.b16 %v161
  %v542 = vunpack.c.l.b16 %v162
  %v543 = vunpack.c.l.b16 %v163
  %v544 = vunpack.c.l.b16 %v164
  %v545 = vunpack.c.l.b16 %v165
  %v546 = vunpack.c.l.b16 %v166
  %v547 = vunpack.c.l.b16 %v167
  %v548 = vunpack.c.l.b16 %v168
  %v549 = vunpack.c.l.b16 %v169
  %v550 = vunpack.c.l.b16 %v170
  %v551 = vunpack.c.l.b16 %v171
  %v552 = vunpack.c.l.b16 %v172
  %v553 = vunpack.c.l.b16 %v173
  %v554 = vunpack.c.l.b16 %v174
  %v555 = vunpack.c.l.b16 %v175
  %v556 = vunpack.c.l.b16 %v176
  %v557 = vunpack.c.l.b16 %v177
  %v558 = vunpack.c.l.b16 %v178
  %v559 = vunpack.c.l.b16 %v179
  %v560 = vunpack.c.l.b16 %v180
  %v561 = vunpack.c.l.b16 %v181
  %v562 = vpack.c.b16 %v419, %v418
  %v563 = vpack.c.b16 %v421, %v420
  %v564 = vpack.c.b16 %v423, %v422
  %v565 = vpack.c.b16 %v425, %v424
  %v566 = vpack.c.b16 %v427, %v426
  %v567 = vpack.c.b16 %v429, %v428
  %v568 = vpack.c.b16 %v431, %v430
  %v569 = vpack.c.b16 %v433, %v432
  %v570 = vpack.c.b16 %v435, %v434
  %v571 = vpack.c.b16 %v437, %v436
  %v572 = vpack.c.b16 %v439, %v438
  %v573 = vpack.c.b16 %v441, %v440
  %v574 = vpack.c.b16 %v443, %v442
  %v575 = vpack.c.b16 %v445, %v444
  %v576 = vpack.c.b16 %v447, %v446
  %v577 = vpack.c.b16 %v449, %v448
  %v578 = vpack.c.b16 %v451, %v450
  %v579 = vpack.c.b16 %v453, %v452
  %v580 = vpack.c.b16 %v455, %v454
  %v581 = vpack.c.b16 %v457, %v456
  %v582 = vpack.c.b16 %v459, %v458
  %v583 = vpack.c.b16 %v461, %v460
  %v584 = vpack.c.b16 %v463, %v462
  %v585 = vpack.c.b16 %v465, %v464
  %v586 = vpack.c.b16 %v467, %v466
  %v587 = vpack.c.b16 %v469, %v468
  %v588 = vpack.c.b16 %v471, %v470
  %v589 = vpack.c.b16 %v473, %v472
  %v590 = vpack.c.b16 %v475, %v474
  %v591 = vpack.c.b16 %v477, %v476
  %v592 = vpack.c.b16 %v479, %v478
  %v593 = vpack.c.b16 %v481, %v480
  %v594 = vpack.c.b16 %v483, %v482
  %v595 = vpack.c.b16 %v485, %v484
  %v596 = vpack.c.b16 %v487, %v486
  %v597 = vpack.c.b16 %v489, %v488
  %v598 = vpack.c.b16 %v491, %v490
  %v599 = vpack.c.b16 %v493, %v492
  %v600 = vpack.c.b16 %v495, %v494
  %v601 = vpack.c.b16 %v497, %v496
  %v602 = vpack.c.b16 %v499, %v498
  %v603 = vpack.c.b16 %v501, %v500
  %v604 = vpack.c.b16 %v503, %v502
  %v605 = vpack.c.b16 %v505, %v504
  %v606 = vpack.c.b16 %v507, %v506
  %v607 = vpack.c.b16 %v509, %v508
  %v608 = vpack.c.b16 %v511, %v510
  %v609 = vpack.c.b16 %v513, %v512
  %v610 = vpack.c.b16 %v515, %v514
  %v611 = vpack.c.b16 %v517, %v516
  %v612 = vpack.c.b16 %v519, %v518
  %v613 = vpack.c.b16 %v521, %v520
  %v614 = vpack.c.b16 %v523, %v522
  %v615 = vpack.c.b16 %v525, %v524
  %v616 = vpack.c.b16 %v527, %v526
  %v617 = vpack.c.b16 %v529, %v528
  %v618 = vpack.c.b16 %v531, %v530
  %v619 = vpack.c.b16 %v533, %v532
  %v620 = vpack.c.b16 %v535, %v534
  %v621 = vpack.c.b16 %v537, %v536
  %v622 = vpack.c.b16 %v539, %v538
  %v623 = vpack.c.b16 %v541, %v540
  %v624 = vpack.c.b16 %v543, %v542
  %v625 = vpack.c.b16 %v545, %v544
  %v626 = vpack.c.b16 %v547, %v546
  %v627 = vpack.c.b16 %v549, %v548
  %v628 = vpack.c.b16 %v551, %v550
  %v629 = vpack.c.b16 %v553, %v552
  %v630 = vpack.c.b16 %v555, %v554
  %v631 = vpack.c.b16 %v557, %v556
  %v632 = vpack.c.b16 %v559, %v558
  %v633 = vpack.c.b16 %v561, %v560
  %706 = vmatprep.subr.bf16.mxu0 0
  %707 = vmatpush1.bf16.msra.mxu0 %v569
  %708 = vmatprep.subr.bf16.mxu0 0
  %709 = vmatpush1.bf16.msra.mxu0 %v568
  %710 = vmatprep.subr.bf16.mxu0 0
  %711 = vmatpush1.bf16.msra.mxu0 %v567
  %712 = vmatprep.subr.bf16.mxu0 0
  %713 = vmatpush1.bf16.msra.mxu0 %v566
  %714 = vmatprep.subr.bf16.mxu0 0
  %715 = vmatpush1.bf16.msra.mxu0 %v565
  %716 = vmatprep.subr.bf16.mxu0 0
  %717 = vmatpush1.bf16.msra.mxu0 %v564
  %718 = vmatprep.subr.bf16.mxu0 0
  %719 = vmatpush1.bf16.msra.mxu0 %v563
  %720 = vmatprep.subr.bf16.mxu0 0
  %721 = vmatpush1.bf16.msra.mxu0 %v562
  %722 = vmatprep.subr.bf16.mxu0 0
  %723 = vmatpush2.bf16.msra.mxu0 %v577
  %724 = vmatprep.subr.bf16.mxu0 0
  %725 = vmatpush2.bf16.msra.mxu0 %v576
  %726 = vmatprep.subr.bf16.mxu0 0
  %727 = vmatpush2.bf16.msra.mxu0 %v575
  %728 = vmatprep.subr.bf16.mxu0 0
  %729 = vmatpush2.bf16.msra.mxu0 %v574
  %730 = vmatprep.subr.bf16.mxu0 0
  %731 = vmatpush2.bf16.msra.mxu0 %v573
  %732 = vmatprep.subr.bf16.mxu0 0
  %733 = vmatpush2.bf16.msra.mxu0 %v572
  %734 = vmatprep.subr.bf16.mxu0 0
  %735 = vmatpush2.bf16.msra.mxu0 %v571
  %736 = vmatprep.subr.bf16.mxu0 0
  %737 = vmatpush2.bf16.msra.mxu0 %v570
  %738 = vmatprep.mubr.bf16.mxu0 %v239
  %739 = vmatmul.mubr.bf16.gmra.mxu0 %v238
  %v740 = vpop.f32.mrf.mxu0
  %v741 = vadd.f32 0.0, %v740
  %v742 = vpop.f32.mrf.mxu0
  %v743 = vpop.f32.mrf.mxu0
  %v744 = vadd.f32 0.0, %v743
  %v745 = vpop.f32.mrf.mxu0
  %746 = vmatprep.mubr.bf16.mxu0 %v248
  %747 = vmatmul.mubr.bf16.gmra.mxu0 %v247
  %v748 = vpop.f32.mrf.mxu0
  %v749 = vadd.f32 0.0, %v748
  %v750 = vpop.f32.mrf.mxu0
  %v751 = vpop.f32.mrf.mxu0
  %v752 = vadd.f32 0.0, %v751
  %v753 = vpop.f32.mrf.mxu0
  %754 = vdwg.mxu0
  %755 = vmatprep.subr.bf16.mxu0 0
  %756 = vmatpush1.bf16.msra.mxu0 %v585
  %757 = vmatprep.subr.bf16.mxu0 0
  %758 = vmatpush1.bf16.msra.mxu0 %v584
  %759 = vmatprep.subr.bf16.mxu0 0
  %760 = vmatpush1.bf16.msra.mxu0 %v583
  %761 = vmatprep.subr.bf16.mxu0 0
  %762 = vmatpush1.bf16.msra.mxu0 %v582
  %763 = vmatprep.subr.bf16.mxu0 0
  %764 = vmatpush1.bf16.msra.mxu0 %v581
  %765 = vmatprep.subr.bf16.mxu0 0
  %766 = vmatpush1.bf16.msra.mxu0 %v580
  %767 = vmatprep.subr.bf16.mxu0 0
  %768 = vmatpush1.bf16.msra.mxu0 %v579
  %769 = vmatprep.subr.bf16.mxu0 0
  %770 = vmatpush1.bf16.msra.mxu0 %v578
  %771 = vmatprep.subr.bf16.mxu0 0
  %772 = vmatpush2.bf16.msra.mxu0 %v593
  %773 = vmatprep.subr.bf16.mxu0 0
  %774 = vmatpush2.bf16.msra.mxu0 %v592
  %775 = vmatprep.subr.bf16.mxu0 0
  %776 = vmatpush2.bf16.msra.mxu0 %v591
  %777 = vmatprep.subr.bf16.mxu0 0
  %778 = vmatpush2.bf16.msra.mxu0 %v590
  %779 = vmatprep.subr.bf16.mxu0 0
  %780 = vmatpush2.bf16.msra.mxu0 %v589
  %781 = vmatprep.subr.bf16.mxu0 0
  %782 = vmatpush2.bf16.msra.mxu0 %v588
  %783 = vmatprep.subr.bf16.mxu0 0
  %784 = vmatpush2.bf16.msra.mxu0 %v587
  %785 = vmatprep.subr.bf16.mxu0 0
  %786 = vmatpush2.bf16.msra.mxu0 %v586
  %787 = vmatprep.mubr.bf16.mxu0 %v241
  %788 = vmatmul.mubr.bf16.gmra.mxu0 %v240
  %v789 = vpop.f32.mrf.mxu0
  %v790 = vadd.f32 %v741, %v789
  %v791 = vpop.f32.mrf.mxu0
  %v792 = vpop.f32.mrf.mxu0
  %v793 = vadd.f32 %v744, %v792
  %v794 = vpop.f32.mrf.mxu0
  %795 = vmatprep.mubr.bf16.mxu0 %v250
  %796 = vmatmul.mubr.bf16.gmra.mxu0 %v249
  %v797 = vpop.f32.mrf.mxu0
  %v798 = vadd.f32 %v749, %v797
  %v799 = vpop.f32.mrf.mxu0
  %v800 = vpop.f32.mrf.mxu0
  %v801 = vadd.f32 %v752, %v800
  %v802 = vpop.f32.mrf.mxu0
  %803 = vdwg.mxu0
  %804 = vmatprep.subr.bf16.mxu0 0
  %805 = vmatpush1.bf16.msra.mxu0 %v601
  %806 = vmatprep.subr.bf16.mxu0 0
  %807 = vmatpush1.bf16.msra.mxu0 %v600
  %808 = vmatprep.subr.bf16.mxu0 0
  %809 = vmatpush1.bf16.msra.mxu0 %v599
  %810 = vmatprep.subr.bf16.mxu0 0
  %811 = vmatpush1.bf16.msra.mxu0 %v598
  %812 = vmatprep.subr.bf16.mxu0 0
  %813 = vmatpush1.bf16.msra.mxu0 %v597
  %814 = vmatprep.subr.bf16.mxu0 0
  %815 = vmatpush1.bf16.msra.mxu0 %v596
  %816 = vmatprep.subr.bf16.mxu0 0
  %817 = vmatpush1.bf16.msra.mxu0 %v595
  %818 = vmatprep.subr.bf16.mxu0 0
  %819 = vmatpush1.bf16.msra.mxu0 %v594
  %820 = vmatprep.subr.bf16.mxu0 0
  %821 = vmatpush2.bf16.msra.mxu0 %v609
  %822 = vmatprep.subr.bf16.mxu0 0
  %823 = vmatpush2.bf16.msra.mxu0 %v608
  %824 = vmatprep.subr.bf16.mxu0 0
  %825 = vmatpush2.bf16.msra.mxu0 %v607
  %826 = vmatprep.subr.bf16.mxu0 0
  %827 = vmatpush2.bf16.msra.mxu0 %v606
  %828 = vmatprep.subr.bf16.mxu0 0
  %829 = vmatpush2.bf16.msra.mxu0 %v605
  %830 = vmatprep.subr.bf16.mxu0 0
  %831 = vmatpush2.bf16.msra.mxu0 %v604
  %832 = vmatprep.subr.bf16.mxu0 0
  %833 = vmatpush2.bf16.msra.mxu0 %v603
  %834 = vmatprep.subr.bf16.mxu0 0
  %835 = vmatpush2.bf16.msra.mxu0 %v602
  %836 = vmatprep.mubr.bf16.mxu0 %v243
  %837 = vmatmul.mubr.bf16.gmra.mxu0 %v242
  %v838 = vpop.f32.mrf.mxu0
  %v839 = vadd.f32 %v790, %v838
  %v840 = vpop.f32.mrf.mxu0
  %v841 = vpop.f32.mrf.mxu0
  %v842 = vadd.f32 %v793, %v841
  %v843 = vpop.f32.mrf.mxu0
  %844 = vmatprep.mubr.bf16.mxu0 %v252
  %845 = vmatmul.mubr.bf16.gmra.mxu0 %v251
  %v846 = vpop.f32.mrf.mxu0
  %v847 = vadd.f32 %v798, %v846
  %v848 = vpop.f32.mrf.mxu0
  %v849 = vpop.f32.mrf.mxu0
  %v850 = vadd.f32 %v801, %v849
  %v851 = vpop.f32.mrf.mxu0
  %852 = vdwg.mxu0
  %853 = vmatprep.subr.bf16.mxu0 0
  %854 = vmatpush1.bf16.msra.mxu0 %v617
  %855 = vmatprep.subr.bf16.mxu0 0
  %856 = vmatpush1.bf16.msra.mxu0 %v616
  %857 = vmatprep.subr.bf16.mxu0 0
  %858 = vmatpush1.bf16.msra.mxu0 %v615
  %859 = vmatprep.subr.bf16.mxu0 0
  %860 = vmatpush1.bf16.msra.mxu0 %v614
  %861 = vmatprep.subr.bf16.mxu0 0
  %862 = vmatpush1.bf16.msra.mxu0 %v613
  %863 = vmatprep.subr.bf16.mxu0 0
  %864 = vmatpush1.bf16.msra.mxu0 %v612
  %865 = vmatprep.subr.bf16.mxu0 0
  %866 = vmatpush1.bf16.msra.mxu0 %v611
  %867 = vmatprep.subr.bf16.mxu0 0
  %868 = vmatpush1.bf16.msra.mxu0 %v610
  %869 = vmatprep.subr.bf16.mxu0 0
  %870 = vmatpush2.bf16.msra.mxu0 %v625
  %871 = vmatprep.subr.bf16.mxu0 0
  %872 = vmatpush2.bf16.msra.mxu0 %v624
  %873 = vmatprep.subr.bf16.mxu0 0
  %874 = vmatpush2.bf16.msra.mxu0 %v623
  %875 = vmatprep.subr.bf16.mxu0 0
  %876 = vmatpush2.bf16.msra.mxu0 %v622
  %877 = vmatprep.subr.bf16.mxu0 0
  %878 = vmatpush2.bf16.msra.mxu0 %v621
  %879 = vmatprep.subr.bf16.mxu0 0
  %880 = vmatpush2.bf16.msra.mxu0 %v620
  %881 = vmatprep.subr.bf16.mxu0 0
  %882 = vmatpush2.bf16.msra.mxu0 %v619
  %883 = vmatprep.subr.bf16.mxu0 0
  %884 = vmatpush2.bf16.msra.mxu0 %v618
  %885 = vmatprep.mubr.bf16.mxu0 %v245
  %886 = vmatmul.mubr.bf16.gmra.mxu0 %v244
  %v887 = vpop.f32.mrf.mxu0
  %v888 = vadd.f32 %v839, %v887
  %v889 = vpop.f32.mrf.mxu0
  %v890 = vpop.f32.mrf.mxu0
  %v891 = vadd.f32 %v842, %v890
  %v892 = vpop.f32.mrf.mxu0
  %893 = vmatprep.mubr.bf16.mxu0 %v254
  %894 = vmatmul.mubr.bf16.gmra.mxu0 %v253
  %v895 = vpop.f32.mrf.mxu0
  %v896 = vadd.f32 %v847, %v895
  %v897 = vpop.f32.mrf.mxu0
  %v898 = vpop.f32.mrf.mxu0
  %v899 = vadd.f32 %v850, %v898
  %v900 = vpop.f32.mrf.mxu0
  %901 = vdwg.mxu0
  %902 = vmatprep.subr.bf16.mxu0 0
  %903 = vmatpush1.bf16.msra.mxu0 %v633
  %904 = vmatprep.subr.bf16.mxu0 0
  %905 = vmatpush1.bf16.msra.mxu0 %v632
  %906 = vmatprep.subr.bf16.mxu0 0
  %907 = vmatpush1.bf16.msra.mxu0 %v631
  %908 = vmatprep.subr.bf16.mxu0 0
  %909 = vmatpush1.bf16.msra.mxu0 %v630
  %910 = vmatprep.subr.bf16.mxu0 0
  %911 = vmatpush1.bf16.msra.mxu0 %v629
  %912 = vmatprep.subr.bf16.mxu0 0
  %913 = vmatpush1.bf16.msra.mxu0 %v628
  %914 = vmatprep.subr.bf16.mxu0 0
  %915 = vmatpush1.bf16.msra.mxu0 %v627
  %916 = vmatprep.subr.bf16.mxu0 0
  %917 = vmatpush1.bf16.msra.mxu0 %v626
  %918 = vmatprep.subr.bf16.mxu0 0
  %919 = vmatpush2.bf16.msra.mxu0 0
  %920 = vmatprep.subr.bf16.mxu0 0
  %921 = vmatpush2.bf16.msra.mxu0 0
  %922 = vmatprep.subr.bf16.mxu0 0
  %923 = vmatpush2.bf16.msra.mxu0 0
  %924 = vmatprep.subr.bf16.mxu0 0
  %925 = vmatpush2.bf16.msra.mxu0 0
  %926 = vmatprep.subr.bf16.mxu0 0
  %927 = vmatpush2.bf16.msra.mxu0 0
  %928 = vmatprep.subr.bf16.mxu0 0
  %929 = vmatpush2.bf16.msra.mxu0 0
  %930 = vmatprep.subr.bf16.mxu0 0
  %931 = vmatpush2.bf16.msra.mxu0 0
  %932 = vmatprep.subr.bf16.mxu0 0
  %933 = vmatpush2.bf16.msra.mxu0 0
  %934 = vmatprep.mubr.bf16.mxu0 0
  %935 = vmatmul.mubr.bf16.gmra.mxu0 %v246
  %v936 = vpop.f32.mrf.mxu0
  %v937 = vadd.f32 %v888, %v936
  %v938 = vpop.f32.mrf.mxu0
  %v939 = vpop.f32.mrf.mxu0
  %v940 = vadd.f32 %v891, %v939
  %v941 = vpop.f32.mrf.mxu0
  %942 = vmatprep.mubr.bf16.mxu0 0
  %943 = vmatmul.mubr.bf16.gmra.mxu0 %v255
  %v944 = vpop.f32.mrf.mxu0
  %v945 = vadd.f32 %v896, %v944
  %v946 = vpop.f32.mrf.mxu0
  %v947 = vpop.f32.mrf.mxu0
  %v948 = vadd.f32 %v899, %v947
  %v949 = vpop.f32.mrf.mxu0
  %950 = vdwg.mxu0
  %v951 = vld [vmem:[%s2] sm:$0x1]
  %v952 = vld [vmem:[%s3] sm:$0x1]
  %vm953 = vcmask 523264
  %v954 = vsel %vm953, %v937, 0.0
  %v955 = vsel %vm953, %v940, 0.0
  %v956 = vadd.f32 %v954, %v955
  %v957 = vsel %vm953, %v945, 0.0
  %v958 = vadd.f32 %v956, %v957
  %v959 = vsel %vm953, %v948, 0.0
  %v960 = vadd.f32 %v958, %v959
  %v961 = vrot.slane %v960, 4
  %v962 = vadd.f32 %v960, %v961
  %v963 = vrot.slane %v962, 2
  %v964 = vadd.f32 %v962, %v963
  %v965 = vrot.slane %v964, 1
  %v966 = vadd.f32 %v964, %v965
  %v967 = vrcp.pop 32.0
  %v968 = vmul.f32 %v966, %v967
  %v969 = vsub.f32 %v937, %v968
  %v970 = vsub.f32 %v940, %v968
  %v971 = vsub.f32 %v945, %v968
  %v972 = vsub.f32 %v948, %v968
  %v973 = vmul.f32 %v969, %v969
  %v974 = vmul.f32 %v970, %v970
  %v975 = vmul.f32 %v971, %v971
  %v976 = vmul.f32 %v972, %v972
  %v977 = vsel %vm953, %v973, 0.0
  %v978 = vsel %vm953, %v974, 0.0
  %v979 = vadd.f32 %v977, %v978
  %v980 = vsel %vm953, %v975, 0.0
  %v981 = vadd.f32 %v979, %v980
  %v982 = vsel %vm953, %v976, 0.0
  %v983 = vadd.f32 %v981, %v982
  %v984 = vrot.slane %v983, 4
  %v985 = vadd.f32 %v983, %v984
  %v986 = vrot.slane %v985, 2
  %v987 = vadd.f32 %v985, %v986
  %v988 = vrot.slane %v987, 1
  %v989 = vadd.f32 %v987, %v988
  %v990 = vmul.f32 %v989, %v967
  %v991 = vadd.f32 %v990, 1e-05
  %v992 = vrsqrt.pop %v991
  %v993 = vmul.f32 %v951, %v992
  %v994 = vmul.f32 %v968, %v993
  %v995 = vsub.f32 %v952, %v994
  %v997 = vlaneseq
  %v998 = vshrl.u32 %v997, 7
  %v999 = vsub.s32 0, %v998
  %v1000 = vrot.slane %v993, %v999
  %v1002 = vmul.f32 %v937, %v1000
  %v1003 = vmul.f32 %v940, %v1000
  %v1004 = vmul.f32 %v945, %v1000
  %v1005 = vmul.f32 %v948, %v1000
  %v1007 = vlaneseq
  %v1008 = vshrl.u32 %v1007, 7
  %v1009 = vsub.s32 0, %v1008
  %v1010 = vrot.slane %v995, %v1009
  %v1012 = vadd.f32 %v1002, %v1010
  %v1013 = vadd.f32 %v1003, %v1010
  %v1014 = vadd.f32 %v1004, %v1010
  %v1015 = vadd.f32 %v1005, %v1010
  %v1016 = vmax.f32 %v1012, 0.0
  %v1017 = vmax.f32 %v1013, 0.0
  %v1018 = vmax.f32 %v1014, 0.0
  %v1019 = vmax.f32 %v1015, 0.0
  %1020 = vst.msk [vmem:[%s4] sm:$0xff] %vm953, %v1016
  %1021 = vst.msk [vmem:[%s4 + $0x8] sm:$0xff] %vm953, %v1017
  %1022 = vst.msk [vmem:[%s4 + $0x10] sm:$0xff] %vm953, %v1018
  %1023 = vst.msk [vmem:[%s4 + $0x18] sm:$0xff] %vm953, %v1019
  // Predicated region
  $region18: #{discriminator_forward.6} parent=0 // pred_check
    _
  $region19: #{discriminator_forward.6} parent=0 // pred_check_branch
    %1025 = sbr.rel (0) target = $region21
  $region20: #{discriminator_forward.6} parent=0 // pred_region
    _
  $region21: #{discriminator_forward.6} parent=0 // pred_fallthru
    _
  // Predicated region
  $region22: #{discriminator_forward.6} parent=0 // pred_check
    _
  $region23: #{discriminator_forward.6} parent=0 // pred_check_branch
    %1027 = sbr.rel (0) target = $region25
  $region24: #{discriminator_forward.6} parent=0 // pred_region
    _
  $region25: #{discriminator_forward.6} parent=0 // pred_fallthru
    _

</llo_original>
